<compile_context>
chip_gen: v7x
topology: tpu7x:2x2x1
jax: 0.10.0
libtpu: 0.0.40
codegen_flags: <defaults>
</compile_context>

<pallas_src>
import math
import functools

import jax
import jax.numpy as jnp
from jax.experimental import pallas as pl
from jax.experimental.pallas import tpu as pltpu

# ---------------- small synthetic config ----------------
B, T = 2, 8
C = 32            # hidden_size
H = 4             # num_attention_heads
D = C // H        # head_dim
FF = 64           # intermediate_size
NUM_LAYERS = 2    # num_hidden_layers
NUM_BUCKETS = 32  # num_buckets
MAX_DISTANCE = 64 # max_bucket_distance
CONV_K = 8        # num_conv_pos_embeddings (even -> SamePadLayer drops last frame)
CONV_G = 4        # num_conv_pos_embedding_groups
EPS = 1e-5
DTYPE = jnp.float32          # hidden-state dtype between layers
ACT_DTYPE = jnp.bfloat16     # inter-kernel activation dtype (qkv / attn / ffn)
W_DTYPE = jnp.bfloat16       # matmul weights fed to the MXU in bf16


# ---------------- small helpers ----------------
def _round_up(x, m):
    return ((x + m - 1) // m) * m


def _row_tile(M, cap=128):
    """Row tile: multiple of 8 sublanes, capped (v5e/v7x VMEM friendly)."""
    return min(_round_up(max(M, 1), 8), cap)


def _pad_rows(x, m_padded):
    M = x.shape[0]
    if m_padded == M:
        return x
    return jnp.pad(x, ((0, m_padded - M), (0, 0)))


def _seq_tile(Tt, cap):
    """Sequence tile: full T when small, else a multiple of 128 dividing T."""
    if Tt <= cap:
        return Tt
    for t in range(cap, 0, -128):
        if Tt % t == 0:
            return t
    # TODO(synk): pad T to a tile multiple (with key masking) for arbitrary
    # audio lengths instead of falling back to a full-length block.
    return Tt


def _gelu_f32(x):
    """Exact (erf-based) GELU; erf via Abramowitz-Stegun 7.1.26 (|err|<1.5e-7),
    built only from exp/mul/add so it lowers cleanly inside a Pallas kernel."""
    z = x * 0.7071067811865475
    sign = jnp.where(z >= 0, 1.0, -1.0)
    az = jnp.abs(z)
    t = 1.0 / (1.0 + 0.3275911 * az)
    poly = ((((1.061405429 * t - 1.453152027) * t + 1.421413741) * t
             - 0.284496736) * t + 0.254829592) * t
    erf = sign * (1.0 - poly * jnp.exp(-az * az))
    return 0.5 * x * (1.0 + erf)


# ---------------- Pallas kernels ----------------
def _matmul_bias_act_kernel(x_ref, w_ref, b_ref, o_ref, *, activation):
    acc = jnp.dot(x_ref[...].astype(jnp.bfloat16), w_ref[...],
                  preferred_element_type=jnp.float32) + b_ref[...]
    if activation == "gelu":          # fused epilogue (no extra HBM round trip)
        acc = _gelu_f32(acc)
    o_ref[...] = acc.astype(o_ref.dtype)


def matmul_bias(x, w, b, *, activation=None, out_dtype=ACT_DTYPE, tm_cap=128):
    """y = act(x @ w + b). Row-grid only; weight block index is constant so the
    bf16 weight is DMA'd once and stays VMEM-resident."""
    M, K = x.shape
    N = w.shape[1]
    tm = _row_tile(M, tm_cap)
    Mp = _round_up(M, tm)
    xp = _pad_rows(x, Mp)
    out = pl.pallas_call(
        functools.partial(_matmul_bias_act_kernel, activation=activation),
        grid=(Mp // tm,),
        in_specs=[pl.BlockSpec((tm, K), lambda i: (i, 0)),
                  pl.BlockSpec((K, N), lambda i: (0, 0)),
                  pl.BlockSpec((1, N), lambda i: (0, 0))],
        out_specs=pl.BlockSpec((tm, N), lambda i: (i, 0)),
        out_shape=jax.ShapeDtypeStruct((Mp, N), out_dtype),
        compiler_params=pltpu.CompilerParams(dimension_semantics=("parallel",)),
    )(xp, w, b.reshape(1, N))
    # TODO(synk): for very large K add a K ("arbitrary") grid axis + f32 VMEM
    # accumulator so each (tm,K)/(K,N) block stays under v7x's 64 MiB VMEM.
    return out[:M]


def _qkv_proj_kernel(x_ref, w_ref, b_ref, q_ref, kv_ref, *, hidden):
    acc = jnp.dot(x_ref[...].astype(jnp.bfloat16), w_ref[...],
                  preferred_element_type=jnp.float32) + b_ref[...]
    q_ref[...] = acc[:, :hidden].astype(q_ref.dtype)
    kv_ref[...] = acc[:, hidden:].astype(kv_ref.dtype)


def qkv_projection(x, w, b, hidden, *, tm_cap=128):
    """Fused Q/K/V projection (one (C, 3C) matmul) with split q / kv outputs in
    bf16 so the attention kernel can stream K/V tiles without re-reading Q."""
    M, K = x.shape
    N = w.shape[1]
    tm = _row_tile(M, tm_cap)
    Mp = _round_up(M, tm)
    xp = _pad_rows(x, Mp)
    q, kv = pl.pallas_call(
        functools.partial(_qkv_proj_kernel, hidden=hidden),
        grid=(Mp // tm,),
        in_specs=[pl.BlockSpec((tm, K), lambda i: (i, 0)),
                  pl.BlockSpec((K, N), lambda i: (0, 0)),
                  pl.BlockSpec((1, N), lambda i: (0, 0))],
        out_specs=[pl.BlockSpec((tm, hidden), lambda i: (i, 0)),
                   pl.BlockSpec((tm, 2 * hidden), lambda i: (i, 0))],
        out_shape=[jax.ShapeDtypeStruct((Mp, hidden), ACT_DTYPE),
                   jax.ShapeDtypeStruct((Mp, 2 * hidden), ACT_DTYPE)],
        compiler_params=pltpu.CompilerParams(dimension_semantics=("parallel",)),
    )(xp, w, b.reshape(1, N))
    return q[:M], kv[:M]


def _matmul_bias_res_ln_kernel(x_ref, w_ref, b_ref, r_ref, g_ref, bb_ref,
                               o_ref, *, eps):
    y = jnp.dot(x_ref[...].astype(jnp.bfloat16), w_ref[...],
                preferred_element_type=jnp.float32)
    y = y + b_ref[...] + r_ref[...].astype(jnp.float32)
    mu = jnp.mean(y, axis=-1, keepdims=True)
    var = jnp.mean(jnp.square(y - mu), axis=-1, keepdims=True)
    y = (y - mu) * jax.lax.rsqrt(var + eps)
    o_ref[...] = (y * g_ref[...] + bb_ref[...]).astype(o_ref.dtype)


def matmul_bias_res_ln(x, w, b, res, gamma, beta, *, eps=EPS, tm_cap=128):
    """y = LayerNorm((x @ w + b) + res) * gamma + beta; row-grid, resident weight."""
    M, K = x.shape
    N = w.shape[1]
    tm = _row_tile(M, tm_cap)
    Mp = _round_up(M, tm)
    xp = _pad_rows(x, Mp)
    rp = _pad_rows(res, Mp)
    out = pl.pallas_call(
        functools.partial(_matmul_bias_res_ln_kernel, eps=eps),
        grid=(Mp // tm,),
        in_specs=[pl.BlockSpec((tm, K), lambda i: (i, 0)),
                  pl.BlockSpec((K, N), lambda i: (0, 0)),
                  pl.BlockSpec((1, N), lambda i: (0, 0)),
                  pl.BlockSpec((tm, N), lambda i: (i, 0)),
                  pl.BlockSpec((1, N), lambda i: (0, 0)),
                  pl.BlockSpec((1, N), lambda i: (0, 0))],
        out_specs=pl.BlockSpec((tm, N), lambda i: (i, 0)),
        out_shape=jax.ShapeDtypeStruct((Mp, N), DTYPE),
        compiler_params=pltpu.CompilerParams(dimension_semantics=("parallel",)),
    )(xp, w, b.reshape(1, N), rp, gamma.reshape(1, N), beta.reshape(1, N))
    return out[:M]


def _add_ln_kernel(x_ref, r_ref, g_ref, b_ref, o_ref, *, eps):
    y = x_ref[...].astype(jnp.float32) + r_ref[...].astype(jnp.float32)
    mu = jnp.mean(y, axis=-1, keepdims=True)
    var = jnp.mean(jnp.square(y - mu), axis=-1, keepdims=True)
    y = (y - mu) * jax.lax.rsqrt(var + eps)
    o_ref[...] = (y * g_ref[...] + b_ref[...]).astype(o_ref.dtype)


def add_layernorm(x, res, gamma, beta, *, eps=EPS, tm_cap=256):
    """LayerNorm(x + res) over last dim; x,res: (B,T,C). Row tiled."""
    Bb, Tt, Cc = x.shape
    M = Bb * Tt
    tm = _row_tile(M, tm_cap)
    Mp = _round_up(M, tm)
    xp = _pad_rows(x.reshape(M, Cc), Mp)
    rp = _pad_rows(res.reshape(M, Cc), Mp)
    out = pl.pallas_call(
        functools.partial(_add_ln_kernel, eps=eps),
        grid=(Mp // tm,),
        in_specs=[pl.BlockSpec((tm, Cc), lambda i: (i, 0)),
                  pl.BlockSpec((tm, Cc), lambda i: (i, 0)),
                  pl.BlockSpec((1, Cc), lambda i: (0, 0)),
                  pl.BlockSpec((1, Cc), lambda i: (0, 0))],
        out_specs=pl.BlockSpec((tm, Cc), lambda i: (i, 0)),
        out_shape=jax.ShapeDtypeStruct((Mp, Cc), DTYPE),
        compiler_params=pltpu.CompilerParams(dimension_semantics=("parallel",)),
    )(xp, rp, gamma.reshape(1, Cc), beta.reshape(1, Cc))
    return out[:M].reshape(Bb, Tt, Cc)


def _flash_attn_kernel(q_ref, kv_ref, gate_ref, pb_ref, mask_ref, o_ref,
                       m_s, l_s, acc_s, *, num_heads, head_dim, hidden):
    # q_ref:(1,TQ,C) bf16 (softmax scale pre-folded into Q weights)
    # kv_ref:(1,TK,2C) bf16; gate_ref:(1,TQ,H) f32; pb_ref:(H,TQ,TK) bf16
    # mask_ref:(1,1,TK) f32 additive key mask; o_ref:(1,TQ,C) bf16
    # scratch: m_s,l_s:(H,TQ,1) f32; acc_s:(TQ,C) f32 (persist across kv tiles)
    ki = pl.program_id(2)

    @pl.when(ki == 0)
    def _():
        m_s[...] = jnp.full(m_s.shape, -1e30, jnp.float32)
        l_s[...] = jnp.zeros(l_s.shape, jnp.float32)
        acc_s[...] = jnp.zeros(acc_s.shape, jnp.float32)

    mask_row = mask_ref[0].astype(jnp.float32)                      # (1, TK)
    for h in range(num_heads):                                      # static
        lo = h * head_dim
        hi = lo + head_dim
        q = q_ref[0, :, lo:hi]                                      # (TQ, D) bf16
        k = kv_ref[0, :, lo:hi]                                     # (TK, D) bf16
        v = kv_ref[0, :, hidden + lo:hidden + hi]                   # (TK, D) bf16
        s = jax.lax.dot_general(q, k, (((1,), (1,)), ((), ())),
                                preferred_element_type=jnp.float32)  # (TQ, TK)
        # gated position bias applied in-kernel (never materialized per batch)
        bias = (gate_ref[0, :, h:h + 1].astype(jnp.float32)
                * pb_ref[h].astype(jnp.float32))
        s = s + bias + mask_row
        m_prev = m_s[h]                                             # (TQ, 1)
        m_new = jnp.maximum(m_prev, jnp.max(s, axis=-1, keepdims=True))
        alpha = jnp.exp(m_prev - m_new)
        p = jnp.exp(s - m_new)
        l_s[h] = alpha * l_s[h] + jnp.sum(p, axis=-1, keepdims=True)
        pv = jnp.dot(p.astype(jnp.bfloat16), v,
                     preferred_element_type=jnp.float32)            # (TQ, D)
        acc_s[:, lo:hi] = alpha * acc_s[:, lo:hi] + pv
        m_s[h] = m_new

    @pl.when(ki == pl.num_programs(2) - 1)
    def _():
        cols = []
        for h in range(num_heads):
            lo = h * head_dim
            inv = pl.reciprocal(l_s[h], approx=True)                # EUP slot
            cols.append(acc_s[:, lo:lo + head_dim] * inv)
        # single lane-dense store per q-tile (no per-head masked HBM stores)
        o_ref[0] = jnp.concatenate(cols, axis=-1).astype(o_ref.dtype)


def attention_core(q, kv, gate, pbias, mask_add):
    """q:(B,T,C) bf16; kv:(B,T,2C) bf16; gate:(B,T,H) f32; pbias:(H,T,T) bf16;
    mask_add:(B,1,T) f32 -> (B,T,C) bf16.  Flash-style: grid over
    (batch, q-tile, kv-tile), online softmax over kv tiles."""
    Bb, Tt, Cc = q.shape
    TQ = _seq_tile(Tt, 256)
    TK = _seq_tile(Tt, 512)
    nq, nk = Tt // TQ, Tt // TK
    return pl.pallas_call(
        functools.partial(_flash_attn_kernel, num_heads=H, head_dim=D,
                          hidden=Cc),
        grid=(Bb, nq, nk),
        in_specs=[pl.BlockSpec((1, TQ, Cc), lambda b, qi, ki: (b, qi, 0)),
                  pl.BlockSpec((1, TK, 2 * Cc), lambda b, qi, ki: (b, ki, 0)),
                  pl.BlockSpec((1, TQ, H), lambda b, qi, ki: (b, qi, 0)),
                  pl.BlockSpec((H, TQ, TK), lambda b, qi, ki: (0, qi, ki)),
                  pl.BlockSpec((1, 1, TK), lambda b, qi, ki: (b, 0, ki))],
        out_specs=pl.BlockSpec((1, TQ, Cc), lambda b, qi, ki: (b, qi, 0)),
        out_shape=jax.ShapeDtypeStruct((Bb, Tt, Cc), ACT_DTYPE),
        scratch_shapes=[pltpu.VMEM((H, TQ, 1), jnp.float32),
                        pltpu.VMEM((H, TQ, 1), jnp.float32),
                        pltpu.VMEM((TQ, Cc), jnp.float32)],
        compiler_params=pltpu.CompilerParams(
            dimension_semantics=("parallel", "parallel", "arbitrary")),
    )(q, kv, gate, pbias, mask_add)


def _pos_conv_kernel(x_ref, w_ref, b_ref, o_ref, *, groups, cg, ksz):
    # x_ref:(1,T_pad,C) f32; w_ref:(G, K*Cg, Cg) bf16 (im2col layout);
    # b_ref:(1,C) f32; o_ref:(1,T,C) f32
    t_out = o_ref.shape[1]
    outs = []
    for g in range(groups):                                  # static group loop
        lo = g * cg
        xg = x_ref[0, :, lo:lo + cg].astype(jnp.bfloat16)    # (T_pad, Cg)
        slab = jnp.concatenate([xg[k:k + t_out, :] for k in range(ksz)],
                               axis=-1)                      # (T, K*Cg) im2col
        outs.append(jnp.dot(slab, w_ref[g],
                            preferred_element_type=jnp.float32))   # one MXU push
    y = jnp.concatenate(outs, axis=-1) + b_ref[...].astype(jnp.float32)
    y = _gelu_f32(y)                    # fused feat_extract_activation (gelu)
    o_ref[0] = y.astype(o_ref.dtype)


def pos_conv(x, w_flat, bias):
    """Grouped positional Conv1d (weight-norm folded) + SamePad + GELU, fused.
    No HBM transposes: input stays (B, T_pad, C); groups are static column
    slices in-kernel; output written lane-dense as (B, T, C).
    x:(B,T,C) f32; w_flat:(G, K*Cg, Cg) bf16; bias:(1,C) f32."""
    Bb, Tt, Cc = x.shape
    G, KCg, Cg = w_flat.shape
    K = KCg // Cg
    pad = K // 2
    x_pad = jnp.pad(x, ((0, 0), (pad, pad), (0, 0)))
    t_pad = Tt + 2 * pad
    # Only the first T output frames are computed: for even K this equals the
    # Wav2Vec2SamePadLayer "drop last frame"; for odd K the conv is length T.
    return pl.pallas_call(
        functools.partial(_pos_conv_kernel, groups=G, cg=Cg, ksz=K),
        grid=(Bb,),
        in_specs=[pl.BlockSpec((1, t_pad, Cc), lambda b: (b, 0, 0)),
                  pl.BlockSpec((G, KCg, Cg), lambda b: (0, 0, 0)),
                  pl.BlockSpec((1, Cc), lambda b: (0, 0))],
        out_specs=pl.BlockSpec((1, Tt, Cc), lambda b: (b, 0, 0)),
        out_shape=jax.ShapeDtypeStruct((Bb, Tt, Cc), DTYPE),
        compiler_params=pltpu.CompilerParams(dimension_semantics=("parallel",)),
    )(x_pad, w_flat, bias)
    # TODO(synk): tile the time axis (with a K-1 halo) for very long T so the
    # (1, T_pad, C) block stays well under v5e's 16 MiB scoped VMEM.


# ---------------- plain-JAX glue ----------------
def compute_position_bias(seq_len, rel_embed,
                          num_buckets=NUM_BUCKETS, max_distance=MAX_DISTANCE):
    """WavLMAttention.compute_bias -> (H, T, T), shared by all batch elems."""
    ctx = jnp.arange(seq_len)[:, None]
    mem = jnp.arange(seq_len)[None, :]
    rel = mem - ctx
    nb = num_buckets // 2
    rel_buckets = (rel > 0).astype(jnp.int32) * nb
    rel_abs = jnp.abs(rel)
    max_exact = nb // 2
    is_small = rel_abs < max_exact
    safe_abs = jnp.maximum(rel_abs, 1).astype(jnp.float32)   # avoid log(0)
    rel_if_large = (jnp.log(safe_abs / max_exact)
                    / math.log(max_distance / max_exact) * (nb - max_exact))
    rel_if_large = (max_exact + rel_if_large).astype(jnp.int32)
    rel_if_large = jnp.minimum(rel_if_large, nb - 1)
    rel_buckets = rel_buckets + jnp.where(is_small, rel_abs, rel_if_large)
    values = rel_embed[rel_buckets]              # (T, T, H)
    return jnp.transpose(values, (2, 0, 1))      # (H, T, T)


def wavlm_attention(h, p, position_bias, mask_add):
    Bb, Tt, Cc = h.shape
    if position_bias is None:
        # computed once (layer 0), stored bf16, reused by every layer
        position_bias = compute_position_bias(
            Tt, p["rel_attn_embed"]).astype(ACT_DTYPE)            # (H, T, T)

    # gated relative position gate — tiny projection + elementwise, plain JAX
    gh = h.reshape(Bb, Tt, H, D)
    rp = jnp.einsum("bthd,de->bthe", gh, p["gru_w"]) + p["gru_b"]
    rp = rp.reshape(Bb, Tt, H, 2, 4).sum(-1)
    gates = jax.nn.sigmoid(rp)
    const = p["gru_const"].reshape(1, 1, H)
    gate = gates[..., 0] * (gates[..., 1] * const - 1.0) + 2.0    # (B,T,H)

    # fused Q/K/V projection (one matmul, split bf16 q / kv outputs;
    # D^-0.5 softmax scale is pre-folded into the Q weights/bias)
    q, kv = qkv_projection(h.reshape(Bb * Tt, Cc), p["wqkv"], p["bqkv"], Cc)
    q = q.reshape(Bb, Tt, Cc)
    kv = kv.reshape(Bb, Tt, 2 * Cc)

    attn = attention_core(q, kv, gate, position_bias, mask_add)   # (B,T,C) bf16

    # fused: output projection + residual add + LayerNorm
    out = matmul_bias_res_ln(attn.reshape(Bb * Tt, Cc), p["wo"], p["bo"],
                             h.reshape(Bb * Tt, Cc), p["ln1_g"], p["ln1_b"])
    return out.reshape(Bb, Tt, Cc), position_bias


def encoder_layer(h, p, position_bias, mask_add):
    h1, position_bias = wavlm_attention(h, p, position_bias, mask_add)
    # fused: FFN first matmul + GELU epilogue (bf16 intermediate in HBM)
    ff = matmul_bias(h1.reshape(-1, C), p["ff_wi"], p["ff_bi"],
                     activation="gelu", out_dtype=ACT_DTYPE)
    # fused: FFN output projection + residual add + LayerNorm
    h2 = matmul_bias_res_ln(ff, p["ff_wo"], p["ff_bo"],
                            h1.reshape(-1, C), p["ln2_g"], p["ln2_b"])
    return h2.reshape(h.shape), position_bias


def wavlm_encoder(hidden_states, params, attention_mask=None):
    Bb, Tt, _ = hidden_states.shape
    if attention_mask is not None:
        hidden_states = hidden_states * attention_mask[..., None].astype(
            hidden_states.dtype)
        # finite large-negative instead of -inf to avoid NaN on fully-masked rows
        mask_add = jnp.where(attention_mask == 1, 0.0, -1e30
                             ).astype(jnp.float32).reshape(Bb, 1, Tt)
    else:
        mask_add = jnp.zeros((Bb, 1, Tt), jnp.float32)

    pos = pos_conv(hidden_states, params["conv_w"], params["conv_b"])  # gelu fused
    h = add_layernorm(hidden_states, pos, params["ln_g"], params["ln_b"])
    # dropout / layerdrop are identity in eval mode
    position_bias = None
    for p in params["layers"]:
        h, position_bias = encoder_layer(h, p, position_bias, mask_add)
    return h


# ---------------- deterministic parameter init ----------------
def init_params(key):
    keys = jax.random.split(key, 64)
    ki = iter(keys)

    def nrm(shape, scale=0.05):
        return (jax.random.normal(next(ki), shape, dtype=jnp.float32)
                * scale).astype(jnp.float32)

    Cg = C // CONV_G
    # Conv1d weight in PyTorch layout (C_out, C_in/G, K); weight_norm folds
    # into the effective weight. Stored grouped in im2col layout
    # (G, K*C_in/G, C_out/G) so the kernel does one matmul per group.
    w_conv = nrm((C, Cg, CONV_K))
    w_grp = jnp.transpose(w_conv.reshape(CONV_G, Cg, Cg, CONV_K),
                          (0, 3, 2, 1))                 # (G, K, Cin/G, Cout/G)
    w_flat = w_grp.reshape(CONV_G, CONV_K * Cg, Cg)

    params = {
        "conv_w": w_flat.astype(W_DTYPE),
        "conv_b": nrm((C,)).reshape(1, C),
        "ln_g": jnp.ones((C,), DTYPE),
        "ln_b": jnp.zeros((C,), DTYPE),
        "layers": [],
    }
    scale = D ** -0.5
    for i in range(NUM_LAYERS):
        # fused Q/K/V projection: (C, 3C) bf16 weight, (3C,) f32 bias;
        # softmax scaling D^-0.5 folded into the Q columns (perf: removes a
        # (TQ,TK) multiply per head inside the attention kernel).
        wqkv = nrm((C, 3 * C))
        bqkv = nrm((3 * C,))
        wqkv = wqkv.at[:, :C].multiply(scale)
        bqkv = bqkv.at[:C].multiply(scale)
        layer = {
            "wqkv": wqkv.astype(W_DTYPE), "bqkv": bqkv,
            "wo": nrm((C, C)).astype(W_DTYPE), "bo": nrm((C,)),
            "gru_w": nrm((D, 8)), "gru_b": nrm((8,)),
            "gru_const": jnp.ones((1, H, 1, 1), DTYPE),
            "ln1_g": jnp.ones((C,), DTYPE), "ln1_b": jnp.zeros((C,), DTYPE),
            "ff_wi": nrm((C, FF)).astype(W_DTYPE), "ff_bi": nrm((FF,)),
            "ff_wo": nrm((FF, C)).astype(W_DTYPE), "ff_bo": nrm((C,)),
            "ln2_g": jnp.ones((C,), DTYPE), "ln2_b": jnp.zeros((C,), DTYPE),
        }
        if i == 0:  # only layer 0 has the relative position embedding table
            layer["rel_attn_embed"] = nrm((NUM_BUCKETS, H))
        params["layers"].append(layer)
    return params


if __name__ == "__main__":
    key = jax.random.PRNGKey(0)
    pkey, xkey = jax.random.split(key)
    params = init_params(pkey)
    x = jax.random.normal(xkey, (B, T, C), dtype=DTYPE)

    out = jax.jit(lambda inp: wavlm_encoder(inp, params))(x)
    out = jax.block_until_ready(out)

    assert out.shape == (B, T, C)
    assert bool(jnp.all(jnp.isfinite(out)))
    print("KERNEL_OK")
</pallas_src>

<mosaic_0001>
module attributes {stable_mosaic.version = 11 : i64} {
  func.func @_add_ln_kernel(%arg0: i32, %arg1: memref<16x32xf32, #tpu.memory_space<vmem>>, %arg2: memref<16x32xf32, #tpu.memory_space<vmem>>, %arg3: memref<1x32xf32, #tpu.memory_space<vmem>>, %arg4: memref<1x32xf32, #tpu.memory_space<vmem>>, %arg5: memref<16x32xf32, #tpu.memory_space<vmem>>) attributes {dimension_semantics = [#tpu.dimension_semantics<parallel>], iteration_bounds = array<i64: 1>, scalar_prefetch = 0 : i64, scratch_operands = 0 : i64, tpu.core_type = #tpu.core_type<tc>, window_params = [{transform_indices = @transform_0, window_bounds = array<i64: 16, 32>}, {transform_indices = @transform_1, window_bounds = array<i64: 16, 32>}, {pipeline_mode = #tpu.pipeline_mode<synchronous>, transform_indices = @transform_2, window_bounds = array<i64: 1, 32>}, {pipeline_mode = #tpu.pipeline_mode<synchronous>, transform_indices = @transform_3, window_bounds = array<i64: 1, 32>}, {transform_indices = @transform_4, window_bounds = array<i64: 16, 32>}]} {
    %c0 = arith.constant 0 : index
    %c0_0 = arith.constant 0 : index
    %0 = vector.load %arg1[%c0, %c0_0] : memref<16x32xf32, #tpu.memory_space<vmem>>, vector<16x32xf32>
    %c0_1 = arith.constant 0 : index
    %c0_2 = arith.constant 0 : index
    %1 = vector.load %arg2[%c0_1, %c0_2] : memref<16x32xf32, #tpu.memory_space<vmem>>, vector<16x32xf32>
    %2 = arith.addf %0, %1 : vector<16x32xf32>
    %cst = arith.constant dense<0.000000e+00> : vector<16xf32>
    %3 = vector.multi_reduction <add>, %2, %cst [1] : vector<16x32xf32> to vector<16xf32>
    %4 = vector.shape_cast %3 : vector<16xf32> to vector<16x1xf32>
    %cst_3 = arith.constant 3.200000e+01 : f32
    %5 = vector.broadcast %cst_3 : f32 to vector<16x1xf32>
    %6 = arith.divf %4, %5 : vector<16x1xf32>
    %7 = vector.broadcast %6 : vector<16x1xf32> to vector<16x32xf32>
    %8 = arith.subf %2, %7 : vector<16x32xf32>
    %9 = arith.mulf %8, %8 : vector<16x32xf32>
    %cst_4 = arith.constant dense<0.000000e+00> : vector<16xf32>
    %10 = vector.multi_reduction <add>, %9, %cst_4 [1] : vector<16x32xf32> to vector<16xf32>
    %11 = vector.shape_cast %10 : vector<16xf32> to vector<16x1xf32>
    %cst_5 = arith.constant 3.200000e+01 : f32
    %12 = vector.broadcast %cst_5 : f32 to vector<16x1xf32>
    %13 = arith.divf %11, %12 : vector<16x1xf32>
    %14 = vector.broadcast %6 : vector<16x1xf32> to vector<16x32xf32>
    %15 = arith.subf %2, %14 : vector<16x32xf32>
    %cst_6 = arith.constant 9.99999974E-6 : f32
    %16 = vector.broadcast %cst_6 : f32 to vector<16x1xf32>
    %17 = arith.addf %13, %16 : vector<16x1xf32>
    %18 = math.rsqrt %17 : vector<16x1xf32>
    %19 = vector.broadcast %18 : vector<16x1xf32> to vector<16x32xf32>
    %20 = arith.mulf %15, %19 : vector<16x32xf32>
    %c0_7 = arith.constant 0 : index
    %c0_8 = arith.constant 0 : index
    %21 = vector.load %arg3[%c0_7, %c0_8] : memref<1x32xf32, #tpu.memory_space<vmem>>, vector<1x32xf32>
    %22 = vector.broadcast %21 : vector<1x32xf32> to vector<16x32xf32>
    %23 = arith.mulf %20, %22 : vector<16x32xf32>
    %c0_9 = arith.constant 0 : index
    %c0_10 = arith.constant 0 : index
    %24 = vector.load %arg4[%c0_9, %c0_10] : memref<1x32xf32, #tpu.memory_space<vmem>>, vector<1x32xf32>
    %25 = vector.broadcast %24 : vector<1x32xf32> to vector<16x32xf32>
    %26 = arith.addf %23, %25 : vector<16x32xf32>
    %c0_11 = arith.constant 0 : index
    %c0_12 = arith.constant 0 : index
    %27 = vector.load %arg5[%c0_11, %c0_12] : memref<16x32xf32, #tpu.memory_space<vmem>>, vector<16x32xf32>
    tpu.vector_store %arg5[%c0_11, %c0_12], %26 {strides = array<i32>} : memref<16x32xf32, #tpu.memory_space<vmem>>, vector<16x32xf32>,
    return
  }
  func.func @transform_0(%arg0: i32) -> (i32, i32) {
    %c0_i32 = arith.constant 0 : i32
    %c0_i32_0 = arith.constant 0 : i32
    return %arg0, %c0_i32 : i32, i32
  }
  func.func @transform_1(%arg0: i32) -> (i32, i32) {
    %c0_i32 = arith.constant 0 : i32
    %c0_i32_0 = arith.constant 0 : i32
    return %arg0, %c0_i32 : i32, i32
  }
  func.func @transform_2(%arg0: i32) -> (i32, i32) {
    %c0_i32 = arith.constant 0 : i32
    %c0_i32_0 = arith.constant 0 : i32
    %c0_i32_1 = arith.constant 0 : i32
    return %c0_i32, %c0_i32_0 : i32, i32
  }
  func.func @transform_3(%arg0: i32) -> (i32, i32) {
    %c0_i32 = arith.constant 0 : i32
    %c0_i32_0 = arith.constant 0 : i32
    %c0_i32_1 = arith.constant 0 : i32
    return %c0_i32, %c0_i32_0 : i32, i32
  }
  func.func @transform_4(%arg0: i32) -> (i32, i32) {
    %c0_i32 = arith.constant 0 : i32
    %c0_i32_0 = arith.constant 0 : i32
    return %arg0, %c0_i32 : i32, i32
  }
}

module attributes {stable_mosaic.version = 11 : i64} {
  func.func @_pos_conv_kernel(%arg0: i32, %arg1: memref<1x16x32xf32, #tpu.memory_space<vmem>>, %arg2: memref<4x64x8xbf16, #tpu.memory_space<vmem>>, %arg3: memref<1x32xf32, #tpu.memory_space<vmem>>, %arg4: memref<1x8x32xf32, #tpu.memory_space<vmem>>) attributes {dimension_semantics = [#tpu.dimension_semantics<parallel>], iteration_bounds = array<i64: 2>, scalar_prefetch = 0 : i64, scratch_operands = 0 : i64, tpu.core_type = #tpu.core_type<tc>, window_params = [{transform_indices = @transform_0, window_bounds = array<i64: 1, 16, 32>}, {pipeline_mode = #tpu.pipeline_mode<synchronous>, transform_indices = @transform_1, window_bounds = array<i64: 4, 64, 8>}, {pipeline_mode = #tpu.pipeline_mode<synchronous>, transform_indices = @transform_2, window_bounds = array<i64: 1, 32>}, {transform_indices = @transform_3, window_bounds = array<i64: 1, 8, 32>}]} {
    %c0 = arith.constant 0 : index
    %c0_0 = arith.constant 0 : index
    %c0_1 = arith.constant 0 : index
    %0 = vector.load %arg1[%c0, %c0_0, %c0_1] : memref<1x16x32xf32, #tpu.memory_space<vmem>>, vector<1x16x8xf32>
    %1 = vector.shape_cast %0 : vector<1x16x8xf32> to vector<16x8xf32>
    %2 = arith.truncf %1 : vector<16x8xf32> to vector<16x8xbf16>
    %3 = vector.extract_strided_slice %2 {offsets = [0, 0], sizes = [8, 8], strides = [1, 1]} : vector<16x8xbf16> to vector<8x8xbf16>
    %4 = vector.extract_strided_slice %2 {offsets = [1, 0], sizes = [8, 8], strides = [1, 1]} : vector<16x8xbf16> to vector<8x8xbf16>
    %5 = vector.extract_strided_slice %2 {offsets = [2, 0], sizes = [8, 8], strides = [1, 1]} : vector<16x8xbf16> to vector<8x8xbf16>
    %6 = vector.extract_strided_slice %2 {offsets = [3, 0], sizes = [8, 8], strides = [1, 1]} : vector<16x8xbf16> to vector<8x8xbf16>
    %7 = vector.extract_strided_slice %2 {offsets = [4, 0], sizes = [8, 8], strides = [1, 1]} : vector<16x8xbf16> to vector<8x8xbf16>
    %8 = vector.extract_strided_slice %2 {offsets = [5, 0], sizes = [8, 8], strides = [1, 1]} : vector<16x8xbf16> to vector<8x8xbf16>
    %9 = vector.extract_strided_slice %2 {offsets = [6, 0], sizes = [8, 8], strides = [1, 1]} : vector<16x8xbf16> to vector<8x8xbf16>
    %10 = vector.extract_strided_slice %2 {offsets = [7, 0], sizes = [8, 8], strides = [1, 1]} : vector<16x8xbf16> to vector<8x8xbf16>
    %11 = tpu.concatenate %3, %4, %5, %6, %7, %8, %9, %10 in 1 : vector<8x8xbf16>, vector<8x8xbf16>, vector<8x8xbf16>, vector<8x8xbf16>, vector<8x8xbf16>, vector<8x8xbf16>, vector<8x8xbf16>, vector<8x8xbf16> -> vector<8x64xbf16>
    %c0_2 = arith.constant 0 : index
    %c0_3 = arith.constant 0 : index
    %c0_4 = arith.constant 0 : index
    %12 = vector.load %arg2[%c0_2, %c0_3, %c0_4] : memref<4x64x8xbf16, #tpu.memory_space<vmem>>, vector<1x64x8xbf16>
    %13 = vector.shape_cast %12 : vector<1x64x8xbf16> to vector<64x8xbf16>
    %cst = arith.constant dense<0.000000e+00> : vector<8x8xf32>
    %14 = tpu.matmul %11, %13, %cst {dimension_numbers = #tpu.dot_dimension_numbers<[1], [0], [0], [1], [0, 0, 1, 1], [], []>} : vector<8x64xbf16>, vector<64x8xbf16>, vector<8x8xf32> -> vector<8x8xf32>
    %c0_5 = arith.constant 0 : index
    %c0_6 = arith.constant 0 : index
    %c8 = arith.constant 8 : index
    %15 = vector.load %arg1[%c0_5, %c0_6, %c8] : memref<1x16x32xf32, #tpu.memory_space<vmem>>, vector<1x16x8xf32>
    %16 = vector.shape_cast %15 : vector<1x16x8xf32> to vector<16x8xf32>
    %17 = arith.truncf %16 : vector<16x8xf32> to vector<16x8xbf16>
    %18 = vector.extract_strided_slice %17 {offsets = [0, 0], sizes = [8, 8], strides = [1, 1]} : vector<16x8xbf16> to vector<8x8xbf16>
    %19 = vector.extract_strided_slice %17 {offsets = [1, 0], sizes = [8, 8], strides = [1, 1]} : vector<16x8xbf16> to vector<8x8xbf16>
    %20 = vector.extract_strided_slice %17 {offsets = [2, 0], sizes = [8, 8], strides = [1, 1]} : vector<16x8xbf16> to vector<8x8xbf16>
    %21 = vector.extract_strided_slice %17 {offsets = [3, 0], sizes = [8, 8], strides = [1, 1]} : vector<16x8xbf16> to vector<8x8xbf16>
    %22 = vector.extract_strided_slice %17 {offsets = [4, 0], sizes = [8, 8], strides = [1, 1]} : vector<16x8xbf16> to vector<8x8xbf16>
    %23 = vector.extract_strided_slice %17 {offsets = [5, 0], sizes = [8, 8], strides = [1, 1]} : vector<16x8xbf16> to vector<8x8xbf16>
    %24 = vector.extract_strided_slice %17 {offsets = [6, 0], sizes = [8, 8], strides = [1, 1]} : vector<16x8xbf16> to vector<8x8xbf16>
    %25 = vector.extract_strided_slice %17 {offsets = [7, 0], sizes = [8, 8], strides = [1, 1]} : vector<16x8xbf16> to vector<8x8xbf16>
    %26 = tpu.concatenate %18, %19, %20, %21, %22, %23, %24, %25 in 1 : vector<8x8xbf16>, vector<8x8xbf16>, vector<8x8xbf16>, vector<8x8xbf16>, vector<8x8xbf16>, vector<8x8xbf16>, vector<8x8xbf16>, vector<8x8xbf16> -> vector<8x64xbf16>
    %c1 = arith.constant 1 : index
    %c0_7 = arith.constant 0 : index
    %c0_8 = arith.constant 0 : index
    %27 = vector.load %arg2[%c1, %c0_7, %c0_8] : memref<4x64x8xbf16, #tpu.memory_space<vmem>>, vector<1x64x8xbf16>
    %28 = vector.shape_cast %27 : vector<1x64x8xbf16> to vector<64x8xbf16>
    %cst_9 = arith.constant dense<0.000000e+00> : vector<8x8xf32>
    %29 = tpu.matmul %26, %28, %cst_9 {dimension_numbers = #tpu.dot_dimension_numbers<[1], [0], [0], [1], [0, 0, 1, 1], [], []>} : vector<8x64xbf16>, vector<64x8xbf16>, vector<8x8xf32> -> vector<8x8xf32>
    %c0_10 = arith.constant 0 : index
    %c0_11 = arith.constant 0 : index
    %c16 = arith.constant 16 : index
    %30 = vector.load %arg1[%c0_10, %c0_11, %c16] : memref<1x16x32xf32, #tpu.memory_space<vmem>>, vector<1x16x8xf32>
    %31 = vector.shape_cast %30 : vector<1x16x8xf32> to vector<16x8xf32>
    %32 = arith.truncf %31 : vector<16x8xf32> to vector<16x8xbf16>
    %33 = vector.extract_strided_slice %32 {offsets = [0, 0], sizes = [8, 8], strides = [1, 1]} : vector<16x8xbf16> to vector<8x8xbf16>
    %34 = vector.extract_strided_slice %32 {offsets = [1, 0], sizes = [8, 8], strides = [1, 1]} : vector<16x8xbf16> to vector<8x8xbf16>
    %35 = vector.extract_strided_slice %32 {offsets = [2, 0], sizes = [8, 8], strides = [1, 1]} : vector<16x8xbf16> to vector<8x8xbf16>
    %36 = vector.extract_strided_slice %32 {offsets = [3, 0], sizes = [8, 8], strides = [1, 1]} : vector<16x8xbf16> to vector<8x8xbf16>
    %37 = vector.extract_strided_slice %32 {offsets = [4, 0], sizes = [8, 8], strides = [1, 1]} : vector<16x8xbf16> to vector<8x8xbf16>
    %38 = vector.extract_strided_slice %32 {offsets = [5, 0], sizes = [8, 8], strides = [1, 1]} : vector<16x8xbf16> to vector<8x8xbf16>
    %39 = vector.extract_strided_slice %32 {offsets = [6, 0], sizes = [8, 8], strides = [1, 1]} : vector<16x8xbf16> to vector<8x8xbf16>
    %40 = vector.extract_strided_slice %32 {offsets = [7, 0], sizes = [8, 8], strides = [1, 1]} : vector<16x8xbf16> to vector<8x8xbf16>
    %41 = tpu.concatenate %33, %34, %35, %36, %37, %38, %39, %40 in 1 : vector<8x8xbf16>, vector<8x8xbf16>, vector<8x8xbf16>, vector<8x8xbf16>, vector<8x8xbf16>, vector<8x8xbf16>, vector<8x8xbf16>, vector<8x8xbf16> -> vector<8x64xbf16>
    %c2 = arith.constant 2 : index
    %c0_12 = arith.constant 0 : index
    %c0_13 = arith.constant 0 : index
    %42 = vector.load %arg2[%c2, %c0_12, %c0_13] : memref<4x64x8xbf16, #tpu.memory_space<vmem>>, vector<1x64x8xbf16>
    %43 = vector.shape_cast %42 : vector<1x64x8xbf16> to vector<64x8xbf16>
    %cst_14 = arith.constant dense<0.000000e+00> : vector<8x8xf32>
    %44 = tpu.matmul %41, %43, %cst_14 {dimension_numbers = #tpu.dot_dimension_numbers<[1], [0], [0], [1], [0, 0, 1, 1], [], []>} : vector<8x64xbf16>, vector<64x8xbf16>, vector<8x8xf32> -> vector<8x8xf32>
    %c0_15 = arith.constant 0 : index
    %c0_16 = arith.constant 0 : index
    %c24 = arith.constant 24 : index
    %45 = vector.load %arg1[%c0_15, %c0_16, %c24] : memref<1x16x32xf32, #tpu.memory_space<vmem>>, vector<1x16x8xf32>
    %46 = vector.shape_cast %45 : vector<1x16x8xf32> to vector<16x8xf32>
    %47 = arith.truncf %46 : vector<16x8xf32> to vector<16x8xbf16>
    %48 = vector.extract_strided_slice %47 {offsets = [0, 0], sizes = [8, 8], strides = [1, 1]} : vector<16x8xbf16> to vector<8x8xbf16>
    %49 = vector.extract_strided_slice %47 {offsets = [1, 0], sizes = [8, 8], strides = [1, 1]} : vector<16x8xbf16> to vector<8x8xbf16>
    %50 = vector.extract_strided_slice %47 {offsets = [2, 0], sizes = [8, 8], strides = [1, 1]} : vector<16x8xbf16> to vector<8x8xbf16>
    %51 = vector.extract_strided_slice %47 {offsets = [3, 0], sizes = [8, 8], strides = [1, 1]} : vector<16x8xbf16> to vector<8x8xbf16>
    %52 = vector.extract_strided_slice %47 {offsets = [4, 0], sizes = [8, 8], strides = [1, 1]} : vector<16x8xbf16> to vector<8x8xbf16>
    %53 = vector.extract_strided_slice %47 {offsets = [5, 0], sizes = [8, 8], strides = [1, 1]} : vector<16x8xbf16> to vector<8x8xbf16>
    %54 = vector.extract_strided_slice %47 {offsets = [6, 0], sizes = [8, 8], strides = [1, 1]} : vector<16x8xbf16> to vector<8x8xbf16>
    %55 = vector.extract_strided_slice %47 {offsets = [7, 0], sizes = [8, 8], strides = [1, 1]} : vector<16x8xbf16> to vector<8x8xbf16>
    %56 = tpu.concatenate %48, %49, %50, %51, %52, %53, %54, %55 in 1 : vector<8x8xbf16>, vector<8x8xbf16>, vector<8x8xbf16>, vector<8x8xbf16>, vector<8x8xbf16>, vector<8x8xbf16>, vector<8x8xbf16>, vector<8x8xbf16> -> vector<8x64xbf16>
    %c3 = arith.constant 3 : index
    %c0_17 = arith.constant 0 : index
    %c0_18 = arith.constant 0 : index
    %57 = vector.load %arg2[%c3, %c0_17, %c0_18] : memref<4x64x8xbf16, #tpu.memory_space<vmem>>, vector<1x64x8xbf16>
    %58 = vector.shape_cast %57 : vector<1x64x8xbf16> to vector<64x8xbf16>
    %cst_19 = arith.constant dense<0.000000e+00> : vector<8x8xf32>
    %59 = tpu.matmul %56, %58, %cst_19 {dimension_numbers = #tpu.dot_dimension_numbers<[1], [0], [0], [1], [0, 0, 1, 1], [], []>} : vector<8x64xbf16>, vector<64x8xbf16>, vector<8x8xf32> -> vector<8x8xf32>
    %60 = tpu.concatenate %14, %29, %44, %59 in 1 : vector<8x8xf32>, vector<8x8xf32>, vector<8x8xf32>, vector<8x8xf32> -> vector<8x32xf32>
    %c0_20 = arith.constant 0 : index
    %c0_21 = arith.constant 0 : index
    %61 = vector.load %arg3[%c0_20, %c0_21] : memref<1x32xf32, #tpu.memory_space<vmem>>, vector<1x32xf32>
    %62 = vector.broadcast %61 : vector<1x32xf32> to vector<8x32xf32>
    %63 = arith.addf %60, %62 : vector<8x32xf32>
    %cst_22 = arith.constant 0.707106769 : f32
    %64 = vector.broadcast %cst_22 : f32 to vector<8x32xf32>
    %65 = arith.mulf %63, %64 : vector<8x32xf32>
    %cst_23 = arith.constant 0.000000e+00 : f32
    %66 = vector.broadcast %cst_23 : f32 to vector<8x32xf32>
    %67 = arith.cmpf oge, %65, %66 : vector<8x32xf32>
    %cst_24 = arith.constant 1.000000e+00 : f32
    %cst_25 = arith.constant -1.000000e+00 : f32
    %68 = vector.broadcast %cst_24 : f32 to vector<8x32xf32>
    %69 = vector.broadcast %cst_25 : f32 to vector<8x32xf32>
    %70 = arith.select %67, %68, %69 : vector<8x32xi1>, vector<8x32xf32>
    %71 = math.absf %65 : vector<8x32xf32>
    %cst_26 = arith.constant 0.327591091 : f32
    %72 = vector.broadcast %cst_26 : f32 to vector<8x32xf32>
    %73 = arith.mulf %72, %71 : vector<8x32xf32>
    %cst_27 = arith.constant 1.000000e+00 : f32
    %74 = vector.broadcast %cst_27 : f32 to vector<8x32xf32>
    %75 = arith.addf %74, %73 : vector<8x32xf32>
    %cst_28 = arith.constant 1.000000e+00 : f32
    %76 = vector.broadcast %cst_28 : f32 to vector<8x32xf32>
    %77 = arith.divf %76, %75 : vector<8x32xf32>
    %cst_29 = arith.constant 1.06140542 : f32
    %78 = vector.broadcast %cst_29 : f32 to vector<8x32xf32>
    %79 = arith.mulf %78, %77 : vector<8x32xf32>
    %cst_30 = arith.constant 1.45315206 : f32
    %80 = vector.broadcast %cst_30 : f32 to vector<8x32xf32>
    %81 = arith.subf %79, %80 : vector<8x32xf32>
    %82 = arith.mulf %81, %77 : vector<8x32xf32>
    %cst_31 = arith.constant 1.42141378 : f32
    %83 = vector.broadcast %cst_31 : f32 to vector<8x32xf32>
    %84 = arith.addf %82, %83 : vector<8x32xf32>
    %85 = arith.mulf %84, %77 : vector<8x32xf32>
    %cst_32 = arith.constant 0.284496725 : f32
    %86 = vector.broadcast %cst_32 : f32 to vector<8x32xf32>
    %87 = arith.subf %85, %86 : vector<8x32xf32>
    %88 = arith.mulf %87, %77 : vector<8x32xf32>
    %cst_33 = arith.constant 0.254829586 : f32
    %89 = vector.broadcast %cst_33 : f32 to vector<8x32xf32>
    %90 = arith.addf %88, %89 : vector<8x32xf32>
    %91 = arith.mulf %90, %77 : vector<8x32xf32>
    %cst_34 = arith.constant 0.000000e+00 : f32
    %92 = vector.broadcast %cst_34 : f32 to vector<8x32xf32>
    %93 = arith.subf %92, %71 : vector<8x32xf32>
    %94 = arith.mulf %93, %71 : vector<8x32xf32>
    %95 = math.exp %94 : vector<8x32xf32>
    %96 = arith.mulf %91, %95 : vector<8x32xf32>
    %cst_35 = arith.constant 1.000000e+00 : f32
    %97 = vector.broadcast %cst_35 : f32 to vector<8x32xf32>
    %98 = arith.subf %97, %96 : vector<8x32xf32>
    %99 = arith.mulf %70, %98 : vector<8x32xf32>
    %cst_36 = arith.constant 5.000000e-01 : f32
    %100 = vector.broadcast %cst_36 : f32 to vector<8x32xf32>
    %101 = arith.mulf %100, %63 : vector<8x32xf32>
    %cst_37 = arith.constant 1.000000e+00 : f32
    %102 = vector.broadcast %cst_37 : f32 to vector<8x32xf32>
    %103 = arith.addf %102, %99 : vector<8x32xf32>
    %104 = arith.mulf %101, %103 : vector<8x32xf32>
    %c0_38 = arith.constant 0 : index
    %c0_39 = arith.constant 0 : index
    %c0_40 = arith.constant 0 : index
    %105 = vector.load %arg4[%c0_38, %c0_39, %c0_40] : memref<1x8x32xf32, #tpu.memory_space<vmem>>, vector<1x8x32xf32>
    %106 = vector.shape_cast %105 : vector<1x8x32xf32> to vector<8x32xf32>
    %107 = vector.shape_cast %104 : vector<8x32xf32> to vector<1x8x32xf32>
    tpu.vector_store %arg4[%c0_38, %c0_39, %c0_40], %107 {strides = array<i32>} : memref<1x8x32xf32, #tpu.memory_space<vmem>>, vector<1x8x32xf32>,
    return
  }
  func.func @transform_0(%arg0: i32) -> (i32, i32, i32) {
    %c0_i32 = arith.constant 0 : i32
    %c0_i32_0 = arith.constant 0 : i32
    %c0_i32_1 = arith.constant 0 : i32
    return %arg0, %c0_i32, %c0_i32_0 : i32, i32, i32
  }
  func.func @transform_1(%arg0: i32) -> (i32, i32, i32) {
    %c0_i32 = arith.constant 0 : i32
    %c0_i32_0 = arith.constant 0 : i32
    %c0_i32_1 = arith.constant 0 : i32
    %c0_i32_2 = arith.constant 0 : i32
    return %c0_i32, %c0_i32_0, %c0_i32_1 : i32, i32, i32
  }
  func.func @transform_2(%arg0: i32) -> (i32, i32) {
    %c0_i32 = arith.constant 0 : i32
    %c0_i32_0 = arith.constant 0 : i32
    %c0_i32_1 = arith.constant 0 : i32
    return %c0_i32, %c0_i32_0 : i32, i32
  }
  func.func @transform_3(%arg0: i32) -> (i32, i32, i32) {
    %c0_i32 = arith.constant 0 : i32
    %c0_i32_0 = arith.constant 0 : i32
    %c0_i32_1 = arith.constant 0 : i32
    return %arg0, %c0_i32, %c0_i32_0 : i32, i32, i32
  }
}

module attributes {stable_mosaic.version = 11 : i64} {
  func.func @_qkv_proj_kernel(%arg0: i32, %arg1: memref<16x32xf32, #tpu.memory_space<vmem>>, %arg2: memref<32x96xbf16, #tpu.memory_space<vmem>>, %arg3: memref<1x96xf32, #tpu.memory_space<vmem>>, %arg4: memref<16x32xbf16, #tpu.memory_space<vmem>>, %arg5: memref<16x64xbf16, #tpu.memory_space<vmem>>) attributes {dimension_semantics = [#tpu.dimension_semantics<parallel>], iteration_bounds = array<i64: 1>, scalar_prefetch = 0 : i64, scratch_operands = 0 : i64, tpu.core_type = #tpu.core_type<tc>, window_params = [{transform_indices = @transform_0, window_bounds = array<i64: 16, 32>}, {pipeline_mode = #tpu.pipeline_mode<synchronous>, transform_indices = @transform_1, window_bounds = array<i64: 32, 96>}, {pipeline_mode = #tpu.pipeline_mode<synchronous>, transform_indices = @transform_2, window_bounds = array<i64: 1, 96>}, {transform_indices = @transform_3, window_bounds = array<i64: 16, 32>}, {transform_indices = @transform_4, window_bounds = array<i64: 16, 64>}]} {
    %c0 = arith.constant 0 : index
    %c0_0 = arith.constant 0 : index
    %0 = vector.load %arg1[%c0, %c0_0] : memref<16x32xf32, #tpu.memory_space<vmem>>, vector<16x32xf32>
    %1 = arith.truncf %0 : vector<16x32xf32> to vector<16x32xbf16>
    %c0_1 = arith.constant 0 : index
    %c0_2 = arith.constant 0 : index
    %2 = vector.load %arg2[%c0_1, %c0_2] : memref<32x96xbf16, #tpu.memory_space<vmem>>, vector<32x96xbf16>
    %cst = arith.constant dense<0.000000e+00> : vector<16x96xf32>
    %3 = tpu.matmul %1, %2, %cst {dimension_numbers = #tpu.dot_dimension_numbers<[1], [0], [0], [1], [0, 0, 1, 1], [], []>} : vector<16x32xbf16>, vector<32x96xbf16>, vector<16x96xf32> -> vector<16x96xf32>
    %c0_3 = arith.constant 0 : index
    %c0_4 = arith.constant 0 : index
    %4 = vector.load %arg3[%c0_3, %c0_4] : memref<1x96xf32, #tpu.memory_space<vmem>>, vector<1x96xf32>
    %5 = vector.broadcast %4 : vector<1x96xf32> to vector<16x96xf32>
    %6 = arith.addf %3, %5 : vector<16x96xf32>
    %7 = vector.extract_strided_slice %6 {offsets = [0, 0], sizes = [16, 32], strides = [1, 1]} : vector<16x96xf32> to vector<16x32xf32>
    %8 = arith.truncf %7 : vector<16x32xf32> to vector<16x32xbf16>
    %c0_5 = arith.constant 0 : index
    %c0_6 = arith.constant 0 : index
    %9 = vector.load %arg4[%c0_5, %c0_6] : memref<16x32xbf16, #tpu.memory_space<vmem>>, vector<16x32xbf16>
    tpu.vector_store %arg4[%c0_5, %c0_6], %8 {strides = array<i32>} : memref<16x32xbf16, #tpu.memory_space<vmem>>, vector<16x32xbf16>,
    %10 = vector.extract_strided_slice %6 {offsets = [0, 32], sizes = [16, 64], strides = [1, 1]} : vector<16x96xf32> to vector<16x64xf32>
    %11 = arith.truncf %10 : vector<16x64xf32> to vector<16x64xbf16>
    %c0_7 = arith.constant 0 : index
    %c0_8 = arith.constant 0 : index
    %12 = vector.load %arg5[%c0_7, %c0_8] : memref<16x64xbf16, #tpu.memory_space<vmem>>, vector<16x64xbf16>
    tpu.vector_store %arg5[%c0_7, %c0_8], %11 {strides = array<i32>} : memref<16x64xbf16, #tpu.memory_space<vmem>>, vector<16x64xbf16>,
    return
  }
  func.func @transform_0(%arg0: i32) -> (i32, i32) {
    %c0_i32 = arith.constant 0 : i32
    %c0_i32_0 = arith.constant 0 : i32
    return %arg0, %c0_i32 : i32, i32
  }
  func.func @transform_1(%arg0: i32) -> (i32, i32) {
    %c0_i32 = arith.constant 0 : i32
    %c0_i32_0 = arith.constant 0 : i32
    %c0_i32_1 = arith.constant 0 : i32
    return %c0_i32, %c0_i32_0 : i32, i32
  }
  func.func @transform_2(%arg0: i32) -> (i32, i32) {
    %c0_i32 = arith.constant 0 : i32
    %c0_i32_0 = arith.constant 0 : i32
    %c0_i32_1 = arith.constant 0 : i32
    return %c0_i32, %c0_i32_0 : i32, i32
  }
  func.func @transform_3(%arg0: i32) -> (i32, i32) {
    %c0_i32 = arith.constant 0 : i32
    %c0_i32_0 = arith.constant 0 : i32
    return %arg0, %c0_i32 : i32, i32
  }
  func.func @transform_4(%arg0: i32) -> (i32, i32) {
    %c0_i32 = arith.constant 0 : i32
    %c0_i32_0 = arith.constant 0 : i32
    return %arg0, %c0_i32 : i32, i32
  }
}

module attributes {stable_mosaic.version = 11 : i64} {
  func.func @_flash_attn_kernel(%arg0: i32, %arg1: i32, %arg2: i32, %arg3: memref<1x8x32xbf16, #tpu.memory_space<vmem>>, %arg4: memref<1x8x64xbf16, #tpu.memory_space<vmem>>, %arg5: memref<1x8x4xf32, #tpu.memory_space<vmem>>, %arg6: memref<4x8x8xbf16, #tpu.memory_space<vmem>>, %arg7: memref<1x1x8xf32, #tpu.memory_space<vmem>>, %arg8: memref<1x8x32xbf16, #tpu.memory_space<vmem>>, %arg9: memref<4x8x1xf32, #tpu.memory_space<vmem>>, %arg10: memref<4x8x1xf32, #tpu.memory_space<vmem>>, %arg11: memref<8x32xf32, #tpu.memory_space<vmem>>) attributes {dimension_semantics = [#tpu.dimension_semantics<parallel>, #tpu.dimension_semantics<parallel>, #tpu.dimension_semantics<arbitrary>], iteration_bounds = array<i64: 2, 1, 1>, scalar_prefetch = 0 : i64, scratch_operands = 3 : i64, tpu.core_type = #tpu.core_type<tc>, window_params = [{transform_indices = @transform_0, window_bounds = array<i64: 1, 8, 32>}, {transform_indices = @transform_1, window_bounds = array<i64: 1, 8, 64>}, {transform_indices = @transform_2, window_bounds = array<i64: 1, 8, 4>}, {transform_indices = @transform_3, window_bounds = array<i64: 4, 8, 8>}, {transform_indices = @transform_4, window_bounds = array<i64: 1, 1, 8>}, {transform_indices = @transform_5, window_bounds = array<i64: 1, 8, 32>}]} {
    %c0_i32 = arith.constant 0 : i32
    %0 = arith.cmpi eq, %arg2, %c0_i32 : i32
    %1 = arith.extui %0 : i1 to i32
    %c0_i32_0 = arith.constant 0 : i32
    %2 = arith.cmpi ne, %1, %c0_i32_0 : i32
    scf.if %2 {
      %cst_134 = arith.constant -1.000000e+30 : f32
      %192 = vector.broadcast %cst_134 : f32 to vector<4x8x1xf32>
      %c0_135 = arith.constant 0 : index
      %c0_136 = arith.constant 0 : index
      %c0_137 = arith.constant 0 : index
      %193 = vector.load %arg9[%c0_135, %c0_136, %c0_137] : memref<4x8x1xf32, #tpu.memory_space<vmem>>, vector<4x8x1xf32>
      tpu.vector_store %arg9[%c0_135, %c0_136, %c0_137], %192 {strides = array<i32>} : memref<4x8x1xf32, #tpu.memory_space<vmem>>, vector<4x8x1xf32>,
      %cst_138 = arith.constant 0.000000e+00 : f32
      %194 = vector.broadcast %cst_138 : f32 to vector<4x8x1xf32>
      %c0_139 = arith.constant 0 : index
      %c0_140 = arith.constant 0 : index
      %c0_141 = arith.constant 0 : index
      %195 = vector.load %arg10[%c0_139, %c0_140, %c0_141] : memref<4x8x1xf32, #tpu.memory_space<vmem>>, vector<4x8x1xf32>
      tpu.vector_store %arg10[%c0_139, %c0_140, %c0_141], %194 {strides = array<i32>} : memref<4x8x1xf32, #tpu.memory_space<vmem>>, vector<4x8x1xf32>,
      %cst_142 = arith.constant 0.000000e+00 : f32
      %196 = vector.broadcast %cst_142 : f32 to vector<8x32xf32>
      %c0_143 = arith.constant 0 : index
      %c0_144 = arith.constant 0 : index
      %197 = vector.load %arg11[%c0_143, %c0_144] : memref<8x32xf32, #tpu.memory_space<vmem>>, vector<8x32xf32>
      tpu.vector_store %arg11[%c0_143, %c0_144], %196 {strides = array<i32>} : memref<8x32xf32, #tpu.memory_space<vmem>>, vector<8x32xf32>,
    } else {
    }
    %c0 = arith.constant 0 : index
    %c0_1 = arith.constant 0 : index
    %c0_2 = arith.constant 0 : index
    %3 = vector.load %arg7[%c0, %c0_1, %c0_2] : memref<1x1x8xf32, #tpu.memory_space<vmem>>, vector<1x1x8xf32>
    %4 = vector.shape_cast %3 : vector<1x1x8xf32> to vector<1x8xf32>
    %c0_3 = arith.constant 0 : index
    %c0_4 = arith.constant 0 : index
    %c0_5 = arith.constant 0 : index
    %5 = vector.load %arg3[%c0_3, %c0_4, %c0_5] : memref<1x8x32xbf16, #tpu.memory_space<vmem>>, vector<1x8x8xbf16>
    %6 = vector.shape_cast %5 : vector<1x8x8xbf16> to vector<8x8xbf16>
    %c0_6 = arith.constant 0 : index
    %c0_7 = arith.constant 0 : index
    %c0_8 = arith.constant 0 : index
    %7 = vector.load %arg4[%c0_6, %c0_7, %c0_8] : memref<1x8x64xbf16, #tpu.memory_space<vmem>>, vector<1x8x8xbf16>
    %8 = vector.shape_cast %7 : vector<1x8x8xbf16> to vector<8x8xbf16>
    %c0_9 = arith.constant 0 : index
    %c0_10 = arith.constant 0 : index
    %c32 = arith.constant 32 : index
    %9 = vector.load %arg4[%c0_9, %c0_10, %c32] : memref<1x8x64xbf16, #tpu.memory_space<vmem>>, vector<1x8x8xbf16>
    %10 = vector.shape_cast %9 : vector<1x8x8xbf16> to vector<8x8xbf16>
    %cst = arith.constant dense<0.000000e+00> : vector<8x8xf32>
    %11 = tpu.matmul %6, %8, %cst {dimension_numbers = #tpu.dot_dimension_numbers<[1], [1], [0], [0], [0, 0, 1, 0], [], []>} : vector<8x8xbf16>, vector<8x8xbf16>, vector<8x8xf32> -> vector<8x8xf32>
    %c0_11 = arith.constant 0 : index
    %c0_12 = arith.constant 0 : index
    %c0_13 = arith.constant 0 : index
    %12 = vector.load %arg5[%c0_11, %c0_12, %c0_13] : memref<1x8x4xf32, #tpu.memory_space<vmem>>, vector<1x8x1xf32>
    %13 = vector.shape_cast %12 : vector<1x8x1xf32> to vector<8x1xf32>
    %c0_14 = arith.constant 0 : index
    %c0_15 = arith.constant 0 : index
    %c0_16 = arith.constant 0 : index
    %14 = vector.load %arg6[%c0_14, %c0_15, %c0_16] : memref<4x8x8xbf16, #tpu.memory_space<vmem>>, vector<1x8x8xbf16>
    %15 = vector.shape_cast %14 : vector<1x8x8xbf16> to vector<8x8xbf16>
    %16 = arith.extf %15 : vector<8x8xbf16> to vector<8x8xf32>
    %17 = vector.broadcast %13 : vector<8x1xf32> to vector<8x8xf32>
    %18 = arith.mulf %17, %16 : vector<8x8xf32>
    %19 = arith.addf %11, %18 : vector<8x8xf32>
    %20 = vector.broadcast %4 : vector<1x8xf32> to vector<8x8xf32>
    %21 = arith.addf %19, %20 : vector<8x8xf32>
    %c0_17 = arith.constant 0 : index
    %c0_18 = arith.constant 0 : index
    %c0_19 = arith.constant 0 : index
    %22 = vector.load %arg9[%c0_17, %c0_18, %c0_19] : memref<4x8x1xf32, #tpu.memory_space<vmem>>, vector<1x8x1xf32>
    %23 = vector.shape_cast %22 : vector<1x8x1xf32> to vector<8x1xf32>
    %cst_20 = arith.constant dense<0xFF800000> : vector<8xf32>
    %24 = vector.multi_reduction <maximumf>, %21, %cst_20 [1] : vector<8x8xf32> to vector<8xf32>
    %25 = vector.shape_cast %24 : vector<8xf32> to vector<8x1xf32>
    %26 = arith.maximumf %23, %25 : vector<8x1xf32>
    %27 = arith.subf %23, %26 : vector<8x1xf32>
    %28 = math.exp %27 : vector<8x1xf32>
    %29 = vector.broadcast %26 : vector<8x1xf32> to vector<8x8xf32>
    %30 = arith.subf %21, %29 : vector<8x8xf32>
    %31 = math.exp %30 : vector<8x8xf32>
    %c0_21 = arith.constant 0 : index
    %c0_22 = arith.constant 0 : index
    %c0_23 = arith.constant 0 : index
    %32 = vector.load %arg10[%c0_21, %c0_22, %c0_23] : memref<4x8x1xf32, #tpu.memory_space<vmem>>, vector<1x8x1xf32>
    %33 = vector.shape_cast %32 : vector<1x8x1xf32> to vector<8x1xf32>
    %34 = arith.mulf %28, %33 : vector<8x1xf32>
    %cst_24 = arith.constant dense<0.000000e+00> : vector<8xf32>
    %35 = vector.multi_reduction <add>, %31, %cst_24 [1] : vector<8x8xf32> to vector<8xf32>
    %36 = vector.shape_cast %35 : vector<8xf32> to vector<8x1xf32>
    %37 = arith.addf %34, %36 : vector<8x1xf32>
    %c0_25 = arith.constant 0 : index
    %c0_26 = arith.constant 0 : index
    %c0_27 = arith.constant 0 : index
    %38 = vector.load %arg10[%c0_25, %c0_26, %c0_27] : memref<4x8x1xf32, #tpu.memory_space<vmem>>, vector<1x8x1xf32>
    %39 = vector.shape_cast %38 : vector<1x8x1xf32> to vector<8x1xf32>
    %40 = vector.shape_cast %37 : vector<8x1xf32> to vector<1x8x1xf32>
    tpu.vector_store %arg10[%c0_25, %c0_26, %c0_27], %40 {strides = array<i32>} : memref<4x8x1xf32, #tpu.memory_space<vmem>>, vector<1x8x1xf32>,
    %41 = arith.truncf %31 : vector<8x8xf32> to vector<8x8xbf16>
    %cst_28 = arith.constant dense<0.000000e+00> : vector<8x8xf32>
    %42 = tpu.matmul %41, %10, %cst_28 {dimension_numbers = #tpu.dot_dimension_numbers<[1], [0], [0], [1], [0, 0, 1, 1], [], []>} : vector<8x8xbf16>, vector<8x8xbf16>, vector<8x8xf32> -> vector<8x8xf32>
    %c0_29 = arith.constant 0 : index
    %c0_30 = arith.constant 0 : index
    %43 = vector.load %arg11[%c0_29, %c0_30] : memref<8x32xf32, #tpu.memory_space<vmem>>, vector<8x8xf32>
    %44 = vector.broadcast %28 : vector<8x1xf32> to vector<8x8xf32>
    %45 = arith.mulf %44, %43 : vector<8x8xf32>
    %46 = arith.addf %45, %42 : vector<8x8xf32>
    %c0_31 = arith.constant 0 : index
    %c0_32 = arith.constant 0 : index
    %47 = vector.load %arg11[%c0_31, %c0_32] : memref<8x32xf32, #tpu.memory_space<vmem>>, vector<8x8xf32>
    tpu.vector_store %arg11[%c0_31, %c0_32], %46 {strides = array<i32>} : memref<8x32xf32, #tpu.memory_space<vmem>>, vector<8x8xf32>,
    %c0_33 = arith.constant 0 : index
    %c0_34 = arith.constant 0 : index
    %c0_35 = arith.constant 0 : index
    %48 = vector.load %arg9[%c0_33, %c0_34, %c0_35] : memref<4x8x1xf32, #tpu.memory_space<vmem>>, vector<1x8x1xf32>
    %49 = vector.shape_cast %48 : vector<1x8x1xf32> to vector<8x1xf32>
    %50 = vector.shape_cast %26 : vector<8x1xf32> to vector<1x8x1xf32>
    tpu.vector_store %arg9[%c0_33, %c0_34, %c0_35], %50 {strides = array<i32>} : memref<4x8x1xf32, #tpu.memory_space<vmem>>, vector<1x8x1xf32>,
    %c0_36 = arith.constant 0 : index
    %c0_37 = arith.constant 0 : index
    %c8 = arith.constant 8 : index
    %51 = vector.load %arg3[%c0_36, %c0_37, %c8] : memref<1x8x32xbf16, #tpu.memory_space<vmem>>, vector<1x8x8xbf16>
    %52 = vector.shape_cast %51 : vector<1x8x8xbf16> to vector<8x8xbf16>
    %c0_38 = arith.constant 0 : index
    %c0_39 = arith.constant 0 : index
    %c8_40 = arith.constant 8 : index
    %53 = vector.load %arg4[%c0_38, %c0_39, %c8_40] : memref<1x8x64xbf16, #tpu.memory_space<vmem>>, vector<1x8x8xbf16>
    %54 = vector.shape_cast %53 : vector<1x8x8xbf16> to vector<8x8xbf16>
    %c0_41 = arith.constant 0 : index
    %c0_42 = arith.constant 0 : index
    %c40 = arith.constant 40 : index
    %55 = vector.load %arg4[%c0_41, %c0_42, %c40] : memref<1x8x64xbf16, #tpu.memory_space<vmem>>, vector<1x8x8xbf16>
    %56 = vector.shape_cast %55 : vector<1x8x8xbf16> to vector<8x8xbf16>
    %cst_43 = arith.constant dense<0.000000e+00> : vector<8x8xf32>
    %57 = tpu.matmul %52, %54, %cst_43 {dimension_numbers = #tpu.dot_dimension_numbers<[1], [1], [0], [0], [0, 0, 1, 0], [], []>} : vector<8x8xbf16>, vector<8x8xbf16>, vector<8x8xf32> -> vector<8x8xf32>
    %c0_44 = arith.constant 0 : index
    %c0_45 = arith.constant 0 : index
    %c1 = arith.constant 1 : index
    %58 = vector.load %arg5[%c0_44, %c0_45, %c1] : memref<1x8x4xf32, #tpu.memory_space<vmem>>, vector<1x8x1xf32>
    %59 = vector.shape_cast %58 : vector<1x8x1xf32> to vector<8x1xf32>
    %c1_46 = arith.constant 1 : index
    %c0_47 = arith.constant 0 : index
    %c0_48 = arith.constant 0 : index
    %60 = vector.load %arg6[%c1_46, %c0_47, %c0_48] : memref<4x8x8xbf16, #tpu.memory_space<vmem>>, vector<1x8x8xbf16>
    %61 = vector.shape_cast %60 : vector<1x8x8xbf16> to vector<8x8xbf16>
    %62 = arith.extf %61 : vector<8x8xbf16> to vector<8x8xf32>
    %63 = vector.broadcast %59 : vector<8x1xf32> to vector<8x8xf32>
    %64 = arith.mulf %63, %62 : vector<8x8xf32>
    %65 = arith.addf %57, %64 : vector<8x8xf32>
    %66 = vector.broadcast %4 : vector<1x8xf32> to vector<8x8xf32>
    %67 = arith.addf %65, %66 : vector<8x8xf32>
    %c1_49 = arith.constant 1 : index
    %c0_50 = arith.constant 0 : index
    %c0_51 = arith.constant 0 : index
    %68 = vector.load %arg9[%c1_49, %c0_50, %c0_51] : memref<4x8x1xf32, #tpu.memory_space<vmem>>, vector<1x8x1xf32>
    %69 = vector.shape_cast %68 : vector<1x8x1xf32> to vector<8x1xf32>
    %cst_52 = arith.constant dense<0xFF800000> : vector<8xf32>
    %70 = vector.multi_reduction <maximumf>, %67, %cst_52 [1] : vector<8x8xf32> to vector<8xf32>
    %71 = vector.shape_cast %70 : vector<8xf32> to vector<8x1xf32>
    %72 = arith.maximumf %69, %71 : vector<8x1xf32>
    %73 = arith.subf %69, %72 : vector<8x1xf32>
    %74 = math.exp %73 : vector<8x1xf32>
    %75 = vector.broadcast %72 : vector<8x1xf32> to vector<8x8xf32>
    %76 = arith.subf %67, %75 : vector<8x8xf32>
    %77 = math.exp %76 : vector<8x8xf32>
    %c1_53 = arith.constant 1 : index
    %c0_54 = arith.constant 0 : index
    %c0_55 = arith.constant 0 : index
    %78 = vector.load %arg10[%c1_53, %c0_54, %c0_55] : memref<4x8x1xf32, #tpu.memory_space<vmem>>, vector<1x8x1xf32>
    %79 = vector.shape_cast %78 : vector<1x8x1xf32> to vector<8x1xf32>
    %80 = arith.mulf %74, %79 : vector<8x1xf32>
    %cst_56 = arith.constant dense<0.000000e+00> : vector<8xf32>
    %81 = vector.multi_reduction <add>, %77, %cst_56 [1] : vector<8x8xf32> to vector<8xf32>
    %82 = vector.shape_cast %81 : vector<8xf32> to vector<8x1xf32>
    %83 = arith.addf %80, %82 : vector<8x1xf32>
    %c1_57 = arith.constant 1 : index
    %c0_58 = arith.constant 0 : index
    %c0_59 = arith.constant 0 : index
    %84 = vector.load %arg10[%c1_57, %c0_58, %c0_59] : memref<4x8x1xf32, #tpu.memory_space<vmem>>, vector<1x8x1xf32>
    %85 = vector.shape_cast %84 : vector<1x8x1xf32> to vector<8x1xf32>
    %86 = vector.shape_cast %83 : vector<8x1xf32> to vector<1x8x1xf32>
    tpu.vector_store %arg10[%c1_57, %c0_58, %c0_59], %86 {strides = array<i32>} : memref<4x8x1xf32, #tpu.memory_space<vmem>>, vector<1x8x1xf32>,
    %87 = arith.truncf %77 : vector<8x8xf32> to vector<8x8xbf16>
    %cst_60 = arith.constant dense<0.000000e+00> : vector<8x8xf32>
    %88 = tpu.matmul %87, %56, %cst_60 {dimension_numbers = #tpu.dot_dimension_numbers<[1], [0], [0], [1], [0, 0, 1, 1], [], []>} : vector<8x8xbf16>, vector<8x8xbf16>, vector<8x8xf32> -> vector<8x8xf32>
    %c0_61 = arith.constant 0 : index
    %c8_62 = arith.constant 8 : index
    %89 = vector.load %arg11[%c0_61, %c8_62] : memref<8x32xf32, #tpu.memory_space<vmem>>, vector<8x8xf32>
    %90 = vector.broadcast %74 : vector<8x1xf32> to vector<8x8xf32>
    %91 = arith.mulf %90, %89 : vector<8x8xf32>
    %92 = arith.addf %91, %88 : vector<8x8xf32>
    %c0_63 = arith.constant 0 : index
    %c8_64 = arith.constant 8 : index
    %93 = vector.load %arg11[%c0_63, %c8_64] : memref<8x32xf32, #tpu.memory_space<vmem>>, vector<8x8xf32>
    tpu.vector_store %arg11[%c0_63, %c8_64], %92 {strides = array<i32>} : memref<8x32xf32, #tpu.memory_space<vmem>>, vector<8x8xf32>,
    %c1_65 = arith.constant 1 : index
    %c0_66 = arith.constant 0 : index
    %c0_67 = arith.constant 0 : index
    %94 = vector.load %arg9[%c1_65, %c0_66, %c0_67] : memref<4x8x1xf32, #tpu.memory_space<vmem>>, vector<1x8x1xf32>
    %95 = vector.shape_cast %94 : vector<1x8x1xf32> to vector<8x1xf32>
    %96 = vector.shape_cast %72 : vector<8x1xf32> to vector<1x8x1xf32>
    tpu.vector_store %arg9[%c1_65, %c0_66, %c0_67], %96 {strides = array<i32>} : memref<4x8x1xf32, #tpu.memory_space<vmem>>, vector<1x8x1xf32>,
    %c0_68 = arith.constant 0 : index
    %c0_69 = arith.constant 0 : index
    %c16 = arith.constant 16 : index
    %97 = vector.load %arg3[%c0_68, %c0_69, %c16] : memref<1x8x32xbf16, #tpu.memory_space<vmem>>, vector<1x8x8xbf16>
    %98 = vector.shape_cast %97 : vector<1x8x8xbf16> to vector<8x8xbf16>
    %c0_70 = arith.constant 0 : index
    %c0_71 = arith.constant 0 : index
    %c16_72 = arith.constant 16 : index
    %99 = vector.load %arg4[%c0_70, %c0_71, %c16_72] : memref<1x8x64xbf16, #tpu.memory_space<vmem>>, vector<1x8x8xbf16>
    %100 = vector.shape_cast %99 : vector<1x8x8xbf16> to vector<8x8xbf16>
    %c0_73 = arith.constant 0 : index
    %c0_74 = arith.constant 0 : index
    %c48 = arith.constant 48 : index
    %101 = vector.load %arg4[%c0_73, %c0_74, %c48] : memref<1x8x64xbf16, #tpu.memory_space<vmem>>, vector<1x8x8xbf16>
    %102 = vector.shape_cast %101 : vector<1x8x8xbf16> to vector<8x8xbf16>
    %cst_75 = arith.constant dense<0.000000e+00> : vector<8x8xf32>
    %103 = tpu.matmul %98, %100, %cst_75 {dimension_numbers = #tpu.dot_dimension_numbers<[1], [1], [0], [0], [0, 0, 1, 0], [], []>} : vector<8x8xbf16>, vector<8x8xbf16>, vector<8x8xf32> -> vector<8x8xf32>
    %c0_76 = arith.constant 0 : index
    %c0_77 = arith.constant 0 : index
    %c2 = arith.constant 2 : index
    %104 = vector.load %arg5[%c0_76, %c0_77, %c2] : memref<1x8x4xf32, #tpu.memory_space<vmem>>, vector<1x8x1xf32>
    %105 = vector.shape_cast %104 : vector<1x8x1xf32> to vector<8x1xf32>
    %c2_78 = arith.constant 2 : index
    %c0_79 = arith.constant 0 : index
    %c0_80 = arith.constant 0 : index
    %106 = vector.load %arg6[%c2_78, %c0_79, %c0_80] : memref<4x8x8xbf16, #tpu.memory_space<vmem>>, vector<1x8x8xbf16>
    %107 = vector.shape_cast %106 : vector<1x8x8xbf16> to vector<8x8xbf16>
    %108 = arith.extf %107 : vector<8x8xbf16> to vector<8x8xf32>
    %109 = vector.broadcast %105 : vector<8x1xf32> to vector<8x8xf32>
    %110 = arith.mulf %109, %108 : vector<8x8xf32>
    %111 = arith.addf %103, %110 : vector<8x8xf32>
    %112 = vector.broadcast %4 : vector<1x8xf32> to vector<8x8xf32>
    %113 = arith.addf %111, %112 : vector<8x8xf32>
    %c2_81 = arith.constant 2 : index
    %c0_82 = arith.constant 0 : index
    %c0_83 = arith.constant 0 : index
    %114 = vector.load %arg9[%c2_81, %c0_82, %c0_83] : memref<4x8x1xf32, #tpu.memory_space<vmem>>, vector<1x8x1xf32>
    %115 = vector.shape_cast %114 : vector<1x8x1xf32> to vector<8x1xf32>
    %cst_84 = arith.constant dense<0xFF800000> : vector<8xf32>
    %116 = vector.multi_reduction <maximumf>, %113, %cst_84 [1] : vector<8x8xf32> to vector<8xf32>
    %117 = vector.shape_cast %116 : vector<8xf32> to vector<8x1xf32>
    %118 = arith.maximumf %115, %117 : vector<8x1xf32>
    %119 = arith.subf %115, %118 : vector<8x1xf32>
    %120 = math.exp %119 : vector<8x1xf32>
    %121 = vector.broadcast %118 : vector<8x1xf32> to vector<8x8xf32>
    %122 = arith.subf %113, %121 : vector<8x8xf32>
    %123 = math.exp %122 : vector<8x8xf32>
    %c2_85 = arith.constant 2 : index
    %c0_86 = arith.constant 0 : index
    %c0_87 = arith.constant 0 : index
    %124 = vector.load %arg10[%c2_85, %c0_86, %c0_87] : memref<4x8x1xf32, #tpu.memory_space<vmem>>, vector<1x8x1xf32>
    %125 = vector.shape_cast %124 : vector<1x8x1xf32> to vector<8x1xf32>
    %126 = arith.mulf %120, %125 : vector<8x1xf32>
    %cst_88 = arith.constant dense<0.000000e+00> : vector<8xf32>
    %127 = vector.multi_reduction <add>, %123, %cst_88 [1] : vector<8x8xf32> to vector<8xf32>
    %128 = vector.shape_cast %127 : vector<8xf32> to vector<8x1xf32>
    %129 = arith.addf %126, %128 : vector<8x1xf32>
    %c2_89 = arith.constant 2 : index
    %c0_90 = arith.constant 0 : index
    %c0_91 = arith.constant 0 : index
    %130 = vector.load %arg10[%c2_89, %c0_90, %c0_91] : memref<4x8x1xf32, #tpu.memory_space<vmem>>, vector<1x8x1xf32>
    %131 = vector.shape_cast %130 : vector<1x8x1xf32> to vector<8x1xf32>
    %132 = vector.shape_cast %129 : vector<8x1xf32> to vector<1x8x1xf32>
    tpu.vector_store %arg10[%c2_89, %c0_90, %c0_91], %132 {strides = array<i32>} : memref<4x8x1xf32, #tpu.memory_space<vmem>>, vector<1x8x1xf32>,
    %133 = arith.truncf %123 : vector<8x8xf32> to vector<8x8xbf16>
    %cst_92 = arith.constant dense<0.000000e+00> : vector<8x8xf32>
    %134 = tpu.matmul %133, %102, %cst_92 {dimension_numbers = #tpu.dot_dimension_numbers<[1], [0], [0], [1], [0, 0, 1, 1], [], []>} : vector<8x8xbf16>, vector<8x8xbf16>, vector<8x8xf32> -> vector<8x8xf32>
    %c0_93 = arith.constant 0 : index
    %c16_94 = arith.constant 16 : index
    %135 = vector.load %arg11[%c0_93, %c16_94] : memref<8x32xf32, #tpu.memory_space<vmem>>, vector<8x8xf32>
    %136 = vector.broadcast %120 : vector<8x1xf32> to vector<8x8xf32>
    %137 = arith.mulf %136, %135 : vector<8x8xf32>
    %138 = arith.addf %137, %134 : vector<8x8xf32>
    %c0_95 = arith.constant 0 : index
    %c16_96 = arith.constant 16 : index
    %139 = vector.load %arg11[%c0_95, %c16_96] : memref<8x32xf32, #tpu.memory_space<vmem>>, vector<8x8xf32>
    tpu.vector_store %arg11[%c0_95, %c16_96], %138 {strides = array<i32>} : memref<8x32xf32, #tpu.memory_space<vmem>>, vector<8x8xf32>,
    %c2_97 = arith.constant 2 : index
    %c0_98 = arith.constant 0 : index
    %c0_99 = arith.constant 0 : index
    %140 = vector.load %arg9[%c2_97, %c0_98, %c0_99] : memref<4x8x1xf32, #tpu.memory_space<vmem>>, vector<1x8x1xf32>
    %141 = vector.shape_cast %140 : vector<1x8x1xf32> to vector<8x1xf32>
    %142 = vector.shape_cast %118 : vector<8x1xf32> to vector<1x8x1xf32>
    tpu.vector_store %arg9[%c2_97, %c0_98, %c0_99], %142 {strides = array<i32>} : memref<4x8x1xf32, #tpu.memory_space<vmem>>, vector<1x8x1xf32>,
    %c0_100 = arith.constant 0 : index
    %c0_101 = arith.constant 0 : index
    %c24 = arith.constant 24 : index
    %143 = vector.load %arg3[%c0_100, %c0_101, %c24] : memref<1x8x32xbf16, #tpu.memory_space<vmem>>, vector<1x8x8xbf16>
    %144 = vector.shape_cast %143 : vector<1x8x8xbf16> to vector<8x8xbf16>
    %c0_102 = arith.constant 0 : index
    %c0_103 = arith.constant 0 : index
    %c24_104 = arith.constant 24 : index
    %145 = vector.load %arg4[%c0_102, %c0_103, %c24_104] : memref<1x8x64xbf16, #tpu.memory_space<vmem>>, vector<1x8x8xbf16>
    %146 = vector.shape_cast %145 : vector<1x8x8xbf16> to vector<8x8xbf16>
    %c0_105 = arith.constant 0 : index
    %c0_106 = arith.constant 0 : index
    %c56 = arith.constant 56 : index
    %147 = vector.load %arg4[%c0_105, %c0_106, %c56] : memref<1x8x64xbf16, #tpu.memory_space<vmem>>, vector<1x8x8xbf16>
    %148 = vector.shape_cast %147 : vector<1x8x8xbf16> to vector<8x8xbf16>
    %cst_107 = arith.constant dense<0.000000e+00> : vector<8x8xf32>
    %149 = tpu.matmul %144, %146, %cst_107 {dimension_numbers = #tpu.dot_dimension_numbers<[1], [1], [0], [0], [0, 0, 1, 0], [], []>} : vector<8x8xbf16>, vector<8x8xbf16>, vector<8x8xf32> -> vector<8x8xf32>
    %c0_108 = arith.constant 0 : index
    %c0_109 = arith.constant 0 : index
    %c3 = arith.constant 3 : index
    %150 = vector.load %arg5[%c0_108, %c0_109, %c3] : memref<1x8x4xf32, #tpu.memory_space<vmem>>, vector<1x8x1xf32>
    %151 = vector.shape_cast %150 : vector<1x8x1xf32> to vector<8x1xf32>
    %c3_110 = arith.constant 3 : index
    %c0_111 = arith.constant 0 : index
    %c0_112 = arith.constant 0 : index
    %152 = vector.load %arg6[%c3_110, %c0_111, %c0_112] : memref<4x8x8xbf16, #tpu.memory_space<vmem>>, vector<1x8x8xbf16>
    %153 = vector.shape_cast %152 : vector<1x8x8xbf16> to vector<8x8xbf16>
    %154 = arith.extf %153 : vector<8x8xbf16> to vector<8x8xf32>
    %155 = vector.broadcast %151 : vector<8x1xf32> to vector<8x8xf32>
    %156 = arith.mulf %155, %154 : vector<8x8xf32>
    %157 = arith.addf %149, %156 : vector<8x8xf32>
    %158 = vector.broadcast %4 : vector<1x8xf32> to vector<8x8xf32>
    %159 = arith.addf %157, %158 : vector<8x8xf32>
    %c3_113 = arith.constant 3 : index
    %c0_114 = arith.constant 0 : index
    %c0_115 = arith.constant 0 : index
    %160 = vector.load %arg9[%c3_113, %c0_114, %c0_115] : memref<4x8x1xf32, #tpu.memory_space<vmem>>, vector<1x8x1xf32>
    %161 = vector.shape_cast %160 : vector<1x8x1xf32> to vector<8x1xf32>
    %cst_116 = arith.constant dense<0xFF800000> : vector<8xf32>
    %162 = vector.multi_reduction <maximumf>, %159, %cst_116 [1] : vector<8x8xf32> to vector<8xf32>
    %163 = vector.shape_cast %162 : vector<8xf32> to vector<8x1xf32>
    %164 = arith.maximumf %161, %163 : vector<8x1xf32>
    %165 = arith.subf %161, %164 : vector<8x1xf32>
    %166 = math.exp %165 : vector<8x1xf32>
    %167 = vector.broadcast %164 : vector<8x1xf32> to vector<8x8xf32>
    %168 = arith.subf %159, %167 : vector<8x8xf32>
    %169 = math.exp %168 : vector<8x8xf32>
    %c3_117 = arith.constant 3 : index
    %c0_118 = arith.constant 0 : index
    %c0_119 = arith.constant 0 : index
    %170 = vector.load %arg10[%c3_117, %c0_118, %c0_119] : memref<4x8x1xf32, #tpu.memory_space<vmem>>, vector<1x8x1xf32>
    %171 = vector.shape_cast %170 : vector<1x8x1xf32> to vector<8x1xf32>
    %172 = arith.mulf %166, %171 : vector<8x1xf32>
    %cst_120 = arith.constant dense<0.000000e+00> : vector<8xf32>
    %173 = vector.multi_reduction <add>, %169, %cst_120 [1] : vector<8x8xf32> to vector<8xf32>
    %174 = vector.shape_cast %173 : vector<8xf32> to vector<8x1xf32>
    %175 = arith.addf %172, %174 : vector<8x1xf32>
    %c3_121 = arith.constant 3 : index
    %c0_122 = arith.constant 0 : index
    %c0_123 = arith.constant 0 : index
    %176 = vector.load %arg10[%c3_121, %c0_122, %c0_123] : memref<4x8x1xf32, #tpu.memory_space<vmem>>, vector<1x8x1xf32>
    %177 = vector.shape_cast %176 : vector<1x8x1xf32> to vector<8x1xf32>
    %178 = vector.shape_cast %175 : vector<8x1xf32> to vector<1x8x1xf32>
    tpu.vector_store %arg10[%c3_121, %c0_122, %c0_123], %178 {strides = array<i32>} : memref<4x8x1xf32, #tpu.memory_space<vmem>>, vector<1x8x1xf32>,
    %179 = arith.truncf %169 : vector<8x8xf32> to vector<8x8xbf16>
    %cst_124 = arith.constant dense<0.000000e+00> : vector<8x8xf32>
    %180 = tpu.matmul %179, %148, %cst_124 {dimension_numbers = #tpu.dot_dimension_numbers<[1], [0], [0], [1], [0, 0, 1, 1], [], []>} : vector<8x8xbf16>, vector<8x8xbf16>, vector<8x8xf32> -> vector<8x8xf32>
    %c0_125 = arith.constant 0 : index
    %c24_126 = arith.constant 24 : index
    %181 = vector.load %arg11[%c0_125, %c24_126] : memref<8x32xf32, #tpu.memory_space<vmem>>, vector<8x8xf32>
    %182 = vector.broadcast %166 : vector<8x1xf32> to vector<8x8xf32>
    %183 = arith.mulf %182, %181 : vector<8x8xf32>
    %184 = arith.addf %183, %180 : vector<8x8xf32>
    %c0_127 = arith.constant 0 : index
    %c24_128 = arith.constant 24 : index
    %185 = vector.load %arg11[%c0_127, %c24_128] : memref<8x32xf32, #tpu.memory_space<vmem>>, vector<8x8xf32>
    tpu.vector_store %arg11[%c0_127, %c24_128], %184 {strides = array<i32>} : memref<8x32xf32, #tpu.memory_space<vmem>>, vector<8x8xf32>,
    %c3_129 = arith.constant 3 : index
    %c0_130 = arith.constant 0 : index
    %c0_131 = arith.constant 0 : index
    %186 = vector.load %arg9[%c3_129, %c0_130, %c0_131] : memref<4x8x1xf32, #tpu.memory_space<vmem>>, vector<1x8x1xf32>
    %187 = vector.shape_cast %186 : vector<1x8x1xf32> to vector<8x1xf32>
    %188 = vector.shape_cast %164 : vector<8x1xf32> to vector<1x8x1xf32>
    tpu.vector_store %arg9[%c3_129, %c0_130, %c0_131], %188 {strides = array<i32>} : memref<4x8x1xf32, #tpu.memory_space<vmem>>, vector<1x8x1xf32>,
    %c0_i32_132 = arith.constant 0 : i32
    %189 = arith.cmpi eq, %arg2, %c0_i32_132 : i32
    %190 = arith.extui %189 : i1 to i32
    %c0_i32_133 = arith.constant 0 : i32
    %191 = arith.cmpi ne, %190, %c0_i32_133 : i32
    scf.if %191 {
      %c0_134 = arith.constant 0 : index
      %c0_135 = arith.constant 0 : index
      %c0_136 = arith.constant 0 : index
      %192 = vector.load %arg10[%c0_134, %c0_135, %c0_136] : memref<4x8x1xf32, #tpu.memory_space<vmem>>, vector<1x8x1xf32>
      %193 = vector.shape_cast %192 : vector<1x8x1xf32> to vector<8x1xf32>
      %194 = tpu.reciprocal %193 {approx = true} : vector<8x1xf32> -> vector<8x1xf32>
      %c0_137 = arith.constant 0 : index
      %c0_138 = arith.constant 0 : index
      %195 = vector.load %arg11[%c0_137, %c0_138] : memref<8x32xf32, #tpu.memory_space<vmem>>, vector<8x8xf32>
      %196 = vector.broadcast %194 : vector<8x1xf32> to vector<8x8xf32>
      %197 = arith.mulf %195, %196 : vector<8x8xf32>
      %c1_139 = arith.constant 1 : index
      %c0_140 = arith.constant 0 : index
      %c0_141 = arith.constant 0 : index
      %198 = vector.load %arg10[%c1_139, %c0_140, %c0_141] : memref<4x8x1xf32, #tpu.memory_space<vmem>>, vector<1x8x1xf32>
      %199 = vector.shape_cast %198 : vector<1x8x1xf32> to vector<8x1xf32>
      %200 = tpu.reciprocal %199 {approx = true} : vector<8x1xf32> -> vector<8x1xf32>
      %c0_142 = arith.constant 0 : index
      %c8_143 = arith.constant 8 : index
      %201 = vector.load %arg11[%c0_142, %c8_143] : memref<8x32xf32, #tpu.memory_space<vmem>>, vector<8x8xf32>
      %202 = vector.broadcast %200 : vector<8x1xf32> to vector<8x8xf32>
      %203 = arith.mulf %201, %202 : vector<8x8xf32>
      %c2_144 = arith.constant 2 : index
      %c0_145 = arith.constant 0 : index
      %c0_146 = arith.constant 0 : index
      %204 = vector.load %arg10[%c2_144, %c0_145, %c0_146] : memref<4x8x1xf32, #tpu.memory_space<vmem>>, vector<1x8x1xf32>
      %205 = vector.shape_cast %204 : vector<1x8x1xf32> to vector<8x1xf32>
      %206 = tpu.reciprocal %205 {approx = true} : vector<8x1xf32> -> vector<8x1xf32>
      %c0_147 = arith.constant 0 : index
      %c16_148 = arith.constant 16 : index
      %207 = vector.load %arg11[%c0_147, %c16_148] : memref<8x32xf32, #tpu.memory_space<vmem>>, vector<8x8xf32>
      %208 = vector.broadcast %206 : vector<8x1xf32> to vector<8x8xf32>
      %209 = arith.mulf %207, %208 : vector<8x8xf32>
      %c3_149 = arith.constant 3 : index
      %c0_150 = arith.constant 0 : index
      %c0_151 = arith.constant 0 : index
      %210 = vector.load %arg10[%c3_149, %c0_150, %c0_151] : memref<4x8x1xf32, #tpu.memory_space<vmem>>, vector<1x8x1xf32>
      %211 = vector.shape_cast %210 : vector<1x8x1xf32> to vector<8x1xf32>
      %212 = tpu.reciprocal %211 {approx = true} : vector<8x1xf32> -> vector<8x1xf32>
      %c0_152 = arith.constant 0 : index
      %c24_153 = arith.constant 24 : index
      %213 = vector.load %arg11[%c0_152, %c24_153] : memref<8x32xf32, #tpu.memory_space<vmem>>, vector<8x8xf32>
      %214 = vector.broadcast %212 : vector<8x1xf32> to vector<8x8xf32>
      %215 = arith.mulf %213, %214 : vector<8x8xf32>
      %216 = tpu.concatenate %197, %203, %209, %215 in 1 : vector<8x8xf32>, vector<8x8xf32>, vector<8x8xf32>, vector<8x8xf32> -> vector<8x32xf32>
      %217 = arith.truncf %216 : vector<8x32xf32> to vector<8x32xbf16>
      %c0_154 = arith.constant 0 : index
      %c0_155 = arith.constant 0 : index
      %c0_156 = arith.constant 0 : index
      %218 = vector.load %arg8[%c0_154, %c0_155, %c0_156] : memref<1x8x32xbf16, #tpu.memory_space<vmem>>, vector<1x8x32xbf16>
      %219 = vector.shape_cast %218 : vector<1x8x32xbf16> to vector<8x32xbf16>
      %220 = vector.shape_cast %217 : vector<8x32xbf16> to vector<1x8x32xbf16>
      tpu.vector_store %arg8[%c0_154, %c0_155, %c0_156], %220 {strides = array<i32>} : memref<1x8x32xbf16, #tpu.memory_space<vmem>>, vector<1x8x32xbf16>,
    } else {
    }
    return
  }
  func.func @transform_0(%arg0: i32, %arg1: i32, %arg2: i32) -> (i32, i32, i32) {
    %c0_i32 = arith.constant 0 : i32
    %c0_i32_0 = arith.constant 0 : i32
    return %arg0, %arg1, %c0_i32 : i32, i32, i32
  }
  func.func @transform_1(%arg0: i32, %arg1: i32, %arg2: i32) -> (i32, i32, i32) {
    %c0_i32 = arith.constant 0 : i32
    %c0_i32_0 = arith.constant 0 : i32
    return %arg0, %arg2, %c0_i32 : i32, i32, i32
  }
  func.func @transform_2(%arg0: i32, %arg1: i32, %arg2: i32) -> (i32, i32, i32) {
    %c0_i32 = arith.constant 0 : i32
    %c0_i32_0 = arith.constant 0 : i32
    return %arg0, %arg1, %c0_i32 : i32, i32, i32
  }
  func.func @transform_3(%arg0: i32, %arg1: i32, %arg2: i32) -> (i32, i32, i32) {
    %c0_i32 = arith.constant 0 : i32
    %c0_i32_0 = arith.constant 0 : i32
    return %c0_i32, %arg1, %arg2 : i32, i32, i32
  }
  func.func @transform_4(%arg0: i32, %arg1: i32, %arg2: i32) -> (i32, i32, i32) {
    %c0_i32 = arith.constant 0 : i32
    %c0_i32_0 = arith.constant 0 : i32
    return %arg0, %c0_i32, %arg2 : i32, i32, i32
  }
  func.func @transform_5(%arg0: i32, %arg1: i32, %arg2: i32) -> (i32, i32, i32) {
    %c0_i32 = arith.constant 0 : i32
    %c0_i32_0 = arith.constant 0 : i32
    return %arg0, %arg1, %c0_i32 : i32, i32, i32
  }
}

module attributes {stable_mosaic.version = 11 : i64} {
  func.func @_matmul_bias_res_ln_kernel(%arg0: i32, %arg1: memref<16x64xbf16, #tpu.memory_space<vmem>>, %arg2: memref<64x32xbf16, #tpu.memory_space<vmem>>, %arg3: memref<1x32xf32, #tpu.memory_space<vmem>>, %arg4: memref<16x32xf32, #tpu.memory_space<vmem>>, %arg5: memref<1x32xf32, #tpu.memory_space<vmem>>, %arg6: memref<1x32xf32, #tpu.memory_space<vmem>>, %arg7: memref<16x32xf32, #tpu.memory_space<vmem>>) attributes {dimension_semantics = [#tpu.dimension_semantics<parallel>], iteration_bounds = array<i64: 1>, scalar_prefetch = 0 : i64, scratch_operands = 0 : i64, tpu.core_type = #tpu.core_type<tc>, window_params = [{transform_indices = @transform_0, window_bounds = array<i64: 16, 64>}, {pipeline_mode = #tpu.pipeline_mode<synchronous>, transform_indices = @transform_1, window_bounds = array<i64: 64, 32>}, {pipeline_mode = #tpu.pipeline_mode<synchronous>, transform_indices = @transform_2, window_bounds = array<i64: 1, 32>}, {transform_indices = @transform_3, window_bounds = array<i64: 16, 32>}, {pipeline_mode = #tpu.pipeline_mode<synchronous>, transform_indices = @transform_4, window_bounds = array<i64: 1, 32>}, {pipeline_mode = #tpu.pipeline_mode<synchronous>, transform_indices = @transform_5, window_bounds = array<i64: 1, 32>}, {transform_indices = @transform_6, window_bounds = array<i64: 16, 32>}]} {
    %c0 = arith.constant 0 : index
    %c0_0 = arith.constant 0 : index
    %0 = vector.load %arg1[%c0, %c0_0] : memref<16x64xbf16, #tpu.memory_space<vmem>>, vector<16x64xbf16>
    %c0_1 = arith.constant 0 : index
    %c0_2 = arith.constant 0 : index
    %1 = vector.load %arg2[%c0_1, %c0_2] : memref<64x32xbf16, #tpu.memory_space<vmem>>, vector<64x32xbf16>
    %cst = arith.constant dense<0.000000e+00> : vector<16x32xf32>
    %2 = tpu.matmul %0, %1, %cst {dimension_numbers = #tpu.dot_dimension_numbers<[1], [0], [0], [1], [0, 0, 1, 1], [], []>} : vector<16x64xbf16>, vector<64x32xbf16>, vector<16x32xf32> -> vector<16x32xf32>
    %c0_3 = arith.constant 0 : index
    %c0_4 = arith.constant 0 : index
    %3 = vector.load %arg3[%c0_3, %c0_4] : memref<1x32xf32, #tpu.memory_space<vmem>>, vector<1x32xf32>
    %4 = vector.broadcast %3 : vector<1x32xf32> to vector<16x32xf32>
    %5 = arith.addf %2, %4 : vector<16x32xf32>
    %c0_5 = arith.constant 0 : index
    %c0_6 = arith.constant 0 : index
    %6 = vector.load %arg4[%c0_5, %c0_6] : memref<16x32xf32, #tpu.memory_space<vmem>>, vector<16x32xf32>
    %7 = arith.addf %5, %6 : vector<16x32xf32>
    %cst_7 = arith.constant dense<0.000000e+00> : vector<16xf32>
    %8 = vector.multi_reduction <add>, %7, %cst_7 [1] : vector<16x32xf32> to vector<16xf32>
    %9 = vector.shape_cast %8 : vector<16xf32> to vector<16x1xf32>
    %cst_8 = arith.constant 3.200000e+01 : f32
    %10 = vector.broadcast %cst_8 : f32 to vector<16x1xf32>
    %11 = arith.divf %9, %10 : vector<16x1xf32>
    %12 = vector.broadcast %11 : vector<16x1xf32> to vector<16x32xf32>
    %13 = arith.subf %7, %12 : vector<16x32xf32>
    %14 = arith.mulf %13, %13 : vector<16x32xf32>
    %cst_9 = arith.constant dense<0.000000e+00> : vector<16xf32>
    %15 = vector.multi_reduction <add>, %14, %cst_9 [1] : vector<16x32xf32> to vector<16xf32>
    %16 = vector.shape_cast %15 : vector<16xf32> to vector<16x1xf32>
    %cst_10 = arith.constant 3.200000e+01 : f32
    %17 = vector.broadcast %cst_10 : f32 to vector<16x1xf32>
    %18 = arith.divf %16, %17 : vector<16x1xf32>
    %19 = vector.broadcast %11 : vector<16x1xf32> to vector<16x32xf32>
    %20 = arith.subf %7, %19 : vector<16x32xf32>
    %cst_11 = arith.constant 9.99999974E-6 : f32
    %21 = vector.broadcast %cst_11 : f32 to vector<16x1xf32>
    %22 = arith.addf %18, %21 : vector<16x1xf32>
    %23 = math.rsqrt %22 : vector<16x1xf32>
    %24 = vector.broadcast %23 : vector<16x1xf32> to vector<16x32xf32>
    %25 = arith.mulf %20, %24 : vector<16x32xf32>
    %c0_12 = arith.constant 0 : index
    %c0_13 = arith.constant 0 : index
    %26 = vector.load %arg5[%c0_12, %c0_13] : memref<1x32xf32, #tpu.memory_space<vmem>>, vector<1x32xf32>
    %27 = vector.broadcast %26 : vector<1x32xf32> to vector<16x32xf32>
    %28 = arith.mulf %25, %27 : vector<16x32xf32>
    %c0_14 = arith.constant 0 : index
    %c0_15 = arith.constant 0 : index
    %29 = vector.load %arg6[%c0_14, %c0_15] : memref<1x32xf32, #tpu.memory_space<vmem>>, vector<1x32xf32>
    %30 = vector.broadcast %29 : vector<1x32xf32> to vector<16x32xf32>
    %31 = arith.addf %28, %30 : vector<16x32xf32>
    %c0_16 = arith.constant 0 : index
    %c0_17 = arith.constant 0 : index
    %32 = vector.load %arg7[%c0_16, %c0_17] : memref<16x32xf32, #tpu.memory_space<vmem>>, vector<16x32xf32>
    tpu.vector_store %arg7[%c0_16, %c0_17], %31 {strides = array<i32>} : memref<16x32xf32, #tpu.memory_space<vmem>>, vector<16x32xf32>,
    return
  }
  func.func @transform_0(%arg0: i32) -> (i32, i32) {
    %c0_i32 = arith.constant 0 : i32
    %c0_i32_0 = arith.constant 0 : i32
    return %arg0, %c0_i32 : i32, i32
  }
  func.func @transform_1(%arg0: i32) -> (i32, i32) {
    %c0_i32 = arith.constant 0 : i32
    %c0_i32_0 = arith.constant 0 : i32
    %c0_i32_1 = arith.constant 0 : i32
    return %c0_i32, %c0_i32_0 : i32, i32
  }
  func.func @transform_2(%arg0: i32) -> (i32, i32) {
    %c0_i32 = arith.constant 0 : i32
    %c0_i32_0 = arith.constant 0 : i32
    %c0_i32_1 = arith.constant 0 : i32
    return %c0_i32, %c0_i32_0 : i32, i32
  }
  func.func @transform_3(%arg0: i32) -> (i32, i32) {
    %c0_i32 = arith.constant 0 : i32
    %c0_i32_0 = arith.constant 0 : i32
    return %arg0, %c0_i32 : i32, i32
  }
  func.func @transform_4(%arg0: i32) -> (i32, i32) {
    %c0_i32 = arith.constant 0 : i32
    %c0_i32_0 = arith.constant 0 : i32
    %c0_i32_1 = arith.constant 0 : i32
    return %c0_i32, %c0_i32_0 : i32, i32
  }
  func.func @transform_5(%arg0: i32) -> (i32, i32) {
    %c0_i32 = arith.constant 0 : i32
    %c0_i32_0 = arith.constant 0 : i32
    %c0_i32_1 = arith.constant 0 : i32
    return %c0_i32, %c0_i32_0 : i32, i32
  }
  func.func @transform_6(%arg0: i32) -> (i32, i32) {
    %c0_i32 = arith.constant 0 : i32
    %c0_i32_0 = arith.constant 0 : i32
    return %arg0, %c0_i32 : i32, i32
  }
}

module attributes {stable_mosaic.version = 11 : i64} {
  func.func @_matmul_bias_res_ln_kernel(%arg0: i32, %arg1: memref<16x32xbf16, #tpu.memory_space<vmem>>, %arg2: memref<32x32xbf16, #tpu.memory_space<vmem>>, %arg3: memref<1x32xf32, #tpu.memory_space<vmem>>, %arg4: memref<16x32xf32, #tpu.memory_space<vmem>>, %arg5: memref<1x32xf32, #tpu.memory_space<vmem>>, %arg6: memref<1x32xf32, #tpu.memory_space<vmem>>, %arg7: memref<16x32xf32, #tpu.memory_space<vmem>>) attributes {dimension_semantics = [#tpu.dimension_semantics<parallel>], iteration_bounds = array<i64: 1>, scalar_prefetch = 0 : i64, scratch_operands = 0 : i64, tpu.core_type = #tpu.core_type<tc>, window_params = [{transform_indices = @transform_0, window_bounds = array<i64: 16, 32>}, {pipeline_mode = #tpu.pipeline_mode<synchronous>, transform_indices = @transform_1, window_bounds = array<i64: 32, 32>}, {pipeline_mode = #tpu.pipeline_mode<synchronous>, transform_indices = @transform_2, window_bounds = array<i64: 1, 32>}, {transform_indices = @transform_3, window_bounds = array<i64: 16, 32>}, {pipeline_mode = #tpu.pipeline_mode<synchronous>, transform_indices = @transform_4, window_bounds = array<i64: 1, 32>}, {pipeline_mode = #tpu.pipeline_mode<synchronous>, transform_indices = @transform_5, window_bounds = array<i64: 1, 32>}, {transform_indices = @transform_6, window_bounds = array<i64: 16, 32>}]} {
    %c0 = arith.constant 0 : index
    %c0_0 = arith.constant 0 : index
    %0 = vector.load %arg1[%c0, %c0_0] : memref<16x32xbf16, #tpu.memory_space<vmem>>, vector<16x32xbf16>
    %c0_1 = arith.constant 0 : index
    %c0_2 = arith.constant 0 : index
    %1 = vector.load %arg2[%c0_1, %c0_2] : memref<32x32xbf16, #tpu.memory_space<vmem>>, vector<32x32xbf16>
    %cst = arith.constant dense<0.000000e+00> : vector<16x32xf32>
    %2 = tpu.matmul %0, %1, %cst {dimension_numbers = #tpu.dot_dimension_numbers<[1], [0], [0], [1], [0, 0, 1, 1], [], []>} : vector<16x32xbf16>, vector<32x32xbf16>, vector<16x32xf32> -> vector<16x32xf32>
    %c0_3 = arith.constant 0 : index
    %c0_4 = arith.constant 0 : index
    %3 = vector.load %arg3[%c0_3, %c0_4] : memref<1x32xf32, #tpu.memory_space<vmem>>, vector<1x32xf32>
    %4 = vector.broadcast %3 : vector<1x32xf32> to vector<16x32xf32>
    %5 = arith.addf %2, %4 : vector<16x32xf32>
    %c0_5 = arith.constant 0 : index
    %c0_6 = arith.constant 0 : index
    %6 = vector.load %arg4[%c0_5, %c0_6] : memref<16x32xf32, #tpu.memory_space<vmem>>, vector<16x32xf32>
    %7 = arith.addf %5, %6 : vector<16x32xf32>
    %cst_7 = arith.constant dense<0.000000e+00> : vector<16xf32>
    %8 = vector.multi_reduction <add>, %7, %cst_7 [1] : vector<16x32xf32> to vector<16xf32>
    %9 = vector.shape_cast %8 : vector<16xf32> to vector<16x1xf32>
    %cst_8 = arith.constant 3.200000e+01 : f32
    %10 = vector.broadcast %cst_8 : f32 to vector<16x1xf32>
    %11 = arith.divf %9, %10 : vector<16x1xf32>
    %12 = vector.broadcast %11 : vector<16x1xf32> to vector<16x32xf32>
    %13 = arith.subf %7, %12 : vector<16x32xf32>
    %14 = arith.mulf %13, %13 : vector<16x32xf32>
    %cst_9 = arith.constant dense<0.000000e+00> : vector<16xf32>
    %15 = vector.multi_reduction <add>, %14, %cst_9 [1] : vector<16x32xf32> to vector<16xf32>
    %16 = vector.shape_cast %15 : vector<16xf32> to vector<16x1xf32>
    %cst_10 = arith.constant 3.200000e+01 : f32
    %17 = vector.broadcast %cst_10 : f32 to vector<16x1xf32>
    %18 = arith.divf %16, %17 : vector<16x1xf32>
    %19 = vector.broadcast %11 : vector<16x1xf32> to vector<16x32xf32>
    %20 = arith.subf %7, %19 : vector<16x32xf32>
    %cst_11 = arith.constant 9.99999974E-6 : f32
    %21 = vector.broadcast %cst_11 : f32 to vector<16x1xf32>
    %22 = arith.addf %18, %21 : vector<16x1xf32>
    %23 = math.rsqrt %22 : vector<16x1xf32>
    %24 = vector.broadcast %23 : vector<16x1xf32> to vector<16x32xf32>
    %25 = arith.mulf %20, %24 : vector<16x32xf32>
    %c0_12 = arith.constant 0 : index
    %c0_13 = arith.constant 0 : index
    %26 = vector.load %arg5[%c0_12, %c0_13] : memref<1x32xf32, #tpu.memory_space<vmem>>, vector<1x32xf32>
    %27 = vector.broadcast %26 : vector<1x32xf32> to vector<16x32xf32>
    %28 = arith.mulf %25, %27 : vector<16x32xf32>
    %c0_14 = arith.constant 0 : index
    %c0_15 = arith.constant 0 : index
    %29 = vector.load %arg6[%c0_14, %c0_15] : memref<1x32xf32, #tpu.memory_space<vmem>>, vector<1x32xf32>
    %30 = vector.broadcast %29 : vector<1x32xf32> to vector<16x32xf32>
    %31 = arith.addf %28, %30 : vector<16x32xf32>
    %c0_16 = arith.constant 0 : index
    %c0_17 = arith.constant 0 : index
    %32 = vector.load %arg7[%c0_16, %c0_17] : memref<16x32xf32, #tpu.memory_space<vmem>>, vector<16x32xf32>
    tpu.vector_store %arg7[%c0_16, %c0_17], %31 {strides = array<i32>} : memref<16x32xf32, #tpu.memory_space<vmem>>, vector<16x32xf32>,
    return
  }
  func.func @transform_0(%arg0: i32) -> (i32, i32) {
    %c0_i32 = arith.constant 0 : i32
    %c0_i32_0 = arith.constant 0 : i32
    return %arg0, %c0_i32 : i32, i32
  }
  func.func @transform_1(%arg0: i32) -> (i32, i32) {
    %c0_i32 = arith.constant 0 : i32
    %c0_i32_0 = arith.constant 0 : i32
    %c0_i32_1 = arith.constant 0 : i32
    return %c0_i32, %c0_i32_0 : i32, i32
  }
  func.func @transform_2(%arg0: i32) -> (i32, i32) {
    %c0_i32 = arith.constant 0 : i32
    %c0_i32_0 = arith.constant 0 : i32
    %c0_i32_1 = arith.constant 0 : i32
    return %c0_i32, %c0_i32_0 : i32, i32
  }
  func.func @transform_3(%arg0: i32) -> (i32, i32) {
    %c0_i32 = arith.constant 0 : i32
    %c0_i32_0 = arith.constant 0 : i32
    return %arg0, %c0_i32 : i32, i32
  }
  func.func @transform_4(%arg0: i32) -> (i32, i32) {
    %c0_i32 = arith.constant 0 : i32
    %c0_i32_0 = arith.constant 0 : i32
    %c0_i32_1 = arith.constant 0 : i32
    return %c0_i32, %c0_i32_0 : i32, i32
  }
  func.func @transform_5(%arg0: i32) -> (i32, i32) {
    %c0_i32 = arith.constant 0 : i32
    %c0_i32_0 = arith.constant 0 : i32
    %c0_i32_1 = arith.constant 0 : i32
    return %c0_i32, %c0_i32_0 : i32, i32
  }
  func.func @transform_6(%arg0: i32) -> (i32, i32) {
    %c0_i32 = arith.constant 0 : i32
    %c0_i32_0 = arith.constant 0 : i32
    return %arg0, %c0_i32 : i32, i32
  }
}

module attributes {stable_mosaic.version = 11 : i64} {
  func.func @_matmul_bias_act_kernel(%arg0: i32, %arg1: memref<16x32xf32, #tpu.memory_space<vmem>>, %arg2: memref<32x64xbf16, #tpu.memory_space<vmem>>, %arg3: memref<1x64xf32, #tpu.memory_space<vmem>>, %arg4: memref<16x64xbf16, #tpu.memory_space<vmem>>) attributes {dimension_semantics = [#tpu.dimension_semantics<parallel>], iteration_bounds = array<i64: 1>, scalar_prefetch = 0 : i64, scratch_operands = 0 : i64, tpu.core_type = #tpu.core_type<tc>, window_params = [{transform_indices = @transform_0, window_bounds = array<i64: 16, 32>}, {pipeline_mode = #tpu.pipeline_mode<synchronous>, transform_indices = @transform_1, window_bounds = array<i64: 32, 64>}, {pipeline_mode = #tpu.pipeline_mode<synchronous>, transform_indices = @transform_2, window_bounds = array<i64: 1, 64>}, {transform_indices = @transform_3, window_bounds = array<i64: 16, 64>}]} {
    %c0 = arith.constant 0 : index
    %c0_0 = arith.constant 0 : index
    %0 = vector.load %arg1[%c0, %c0_0] : memref<16x32xf32, #tpu.memory_space<vmem>>, vector<16x32xf32>
    %1 = arith.truncf %0 : vector<16x32xf32> to vector<16x32xbf16>
    %c0_1 = arith.constant 0 : index
    %c0_2 = arith.constant 0 : index
    %2 = vector.load %arg2[%c0_1, %c0_2] : memref<32x64xbf16, #tpu.memory_space<vmem>>, vector<32x64xbf16>
    %cst = arith.constant dense<0.000000e+00> : vector<16x64xf32>
    %3 = tpu.matmul %1, %2, %cst {dimension_numbers = #tpu.dot_dimension_numbers<[1], [0], [0], [1], [0, 0, 1, 1], [], []>} : vector<16x32xbf16>, vector<32x64xbf16>, vector<16x64xf32> -> vector<16x64xf32>
    %c0_3 = arith.constant 0 : index
    %c0_4 = arith.constant 0 : index
    %4 = vector.load %arg3[%c0_3, %c0_4] : memref<1x64xf32, #tpu.memory_space<vmem>>, vector<1x64xf32>
    %5 = vector.broadcast %4 : vector<1x64xf32> to vector<16x64xf32>
    %6 = arith.addf %3, %5 : vector<16x64xf32>
    %cst_5 = arith.constant 0.707106769 : f32
    %7 = vector.broadcast %cst_5 : f32 to vector<16x64xf32>
    %8 = arith.mulf %6, %7 : vector<16x64xf32>
    %cst_6 = arith.constant 0.000000e+00 : f32
    %9 = vector.broadcast %cst_6 : f32 to vector<16x64xf32>
    %10 = arith.cmpf oge, %8, %9 : vector<16x64xf32>
    %cst_7 = arith.constant 1.000000e+00 : f32
    %cst_8 = arith.constant -1.000000e+00 : f32
    %11 = vector.broadcast %cst_7 : f32 to vector<16x64xf32>
    %12 = vector.broadcast %cst_8 : f32 to vector<16x64xf32>
    %13 = arith.select %10, %11, %12 : vector<16x64xi1>, vector<16x64xf32>
    %14 = math.absf %8 : vector<16x64xf32>
    %cst_9 = arith.constant 0.327591091 : f32
    %15 = vector.broadcast %cst_9 : f32 to vector<16x64xf32>
    %16 = arith.mulf %15, %14 : vector<16x64xf32>
    %cst_10 = arith.constant 1.000000e+00 : f32
    %17 = vector.broadcast %cst_10 : f32 to vector<16x64xf32>
    %18 = arith.addf %17, %16 : vector<16x64xf32>
    %cst_11 = arith.constant 1.000000e+00 : f32
    %19 = vector.broadcast %cst_11 : f32 to vector<16x64xf32>
    %20 = arith.divf %19, %18 : vector<16x64xf32>
    %cst_12 = arith.constant 1.06140542 : f32
    %21 = vector.broadcast %cst_12 : f32 to vector<16x64xf32>
    %22 = arith.mulf %21, %20 : vector<16x64xf32>
    %cst_13 = arith.constant 1.45315206 : f32
    %23 = vector.broadcast %cst_13 : f32 to vector<16x64xf32>
    %24 = arith.subf %22, %23 : vector<16x64xf32>
    %25 = arith.mulf %24, %20 : vector<16x64xf32>
    %cst_14 = arith.constant 1.42141378 : f32
    %26 = vector.broadcast %cst_14 : f32 to vector<16x64xf32>
    %27 = arith.addf %25, %26 : vector<16x64xf32>
    %28 = arith.mulf %27, %20 : vector<16x64xf32>
    %cst_15 = arith.constant 0.284496725 : f32
    %29 = vector.broadcast %cst_15 : f32 to vector<16x64xf32>
    %30 = arith.subf %28, %29 : vector<16x64xf32>
    %31 = arith.mulf %30, %20 : vector<16x64xf32>
    %cst_16 = arith.constant 0.254829586 : f32
    %32 = vector.broadcast %cst_16 : f32 to vector<16x64xf32>
    %33 = arith.addf %31, %32 : vector<16x64xf32>
    %34 = arith.mulf %33, %20 : vector<16x64xf32>
    %cst_17 = arith.constant 0.000000e+00 : f32
    %35 = vector.broadcast %cst_17 : f32 to vector<16x64xf32>
    %36 = arith.subf %35, %14 : vector<16x64xf32>
    %37 = arith.mulf %36, %14 : vector<16x64xf32>
    %38 = math.exp %37 : vector<16x64xf32>
    %39 = arith.mulf %34, %38 : vector<16x64xf32>
    %cst_18 = arith.constant 1.000000e+00 : f32
    %40 = vector.broadcast %cst_18 : f32 to vector<16x64xf32>
    %41 = arith.subf %40, %39 : vector<16x64xf32>
    %42 = arith.mulf %13, %41 : vector<16x64xf32>
    %cst_19 = arith.constant 5.000000e-01 : f32
    %43 = vector.broadcast %cst_19 : f32 to vector<16x64xf32>
    %44 = arith.mulf %43, %6 : vector<16x64xf32>
    %cst_20 = arith.constant 1.000000e+00 : f32
    %45 = vector.broadcast %cst_20 : f32 to vector<16x64xf32>
    %46 = arith.addf %45, %42 : vector<16x64xf32>
    %47 = arith.mulf %44, %46 : vector<16x64xf32>
    %48 = arith.truncf %47 : vector<16x64xf32> to vector<16x64xbf16>
    %c0_21 = arith.constant 0 : index
    %c0_22 = arith.constant 0 : index
    %49 = vector.load %arg4[%c0_21, %c0_22] : memref<16x64xbf16, #tpu.memory_space<vmem>>, vector<16x64xbf16>
    tpu.vector_store %arg4[%c0_21, %c0_22], %48 {strides = array<i32>} : memref<16x64xbf16, #tpu.memory_space<vmem>>, vector<16x64xbf16>,
    return
  }
  func.func @transform_0(%arg0: i32) -> (i32, i32) {
    %c0_i32 = arith.constant 0 : i32
    %c0_i32_0 = arith.constant 0 : i32
    return %arg0, %c0_i32 : i32, i32
  }
  func.func @transform_1(%arg0: i32) -> (i32, i32) {
    %c0_i32 = arith.constant 0 : i32
    %c0_i32_0 = arith.constant 0 : i32
    %c0_i32_1 = arith.constant 0 : i32
    return %c0_i32, %c0_i32_0 : i32, i32
  }
  func.func @transform_2(%arg0: i32) -> (i32, i32) {
    %c0_i32 = arith.constant 0 : i32
    %c0_i32_0 = arith.constant 0 : i32
    %c0_i32_1 = arith.constant 0 : i32
    return %c0_i32, %c0_i32_0 : i32, i32
  }
  func.func @transform_3(%arg0: i32) -> (i32, i32) {
    %c0_i32 = arith.constant 0 : i32
    %c0_i32_0 = arith.constant 0 : i32
    return %arg0, %c0_i32 : i32, i32
  }
}

module attributes {stable_mosaic.version = 11 : i64} {
  func.func @_matmul_bias_res_ln_kernel(%arg0: i32, %arg1: memref<16x64xbf16, #tpu.memory_space<vmem>>, %arg2: memref<64x32xbf16, #tpu.memory_space<vmem>>, %arg3: memref<1x32xf32, #tpu.memory_space<vmem>>, %arg4: memref<16x32xf32, #tpu.memory_space<vmem>>, %arg5: memref<1x32xf32, #tpu.memory_space<vmem>>, %arg6: memref<1x32xf32, #tpu.memory_space<vmem>>, %arg7: memref<16x32xf32, #tpu.memory_space<vmem>>) attributes {dimension_semantics = [#tpu.dimension_semantics<parallel>], iteration_bounds = array<i64: 1>, scalar_prefetch = 0 : i64, scratch_operands = 0 : i64, tpu.core_type = #tpu.core_type<tc>, window_params = [{transform_indices = @transform_0, window_bounds = array<i64: 16, 64>}, {pipeline_mode = #tpu.pipeline_mode<synchronous>, transform_indices = @transform_1, window_bounds = array<i64: 64, 32>}, {pipeline_mode = #tpu.pipeline_mode<synchronous>, transform_indices = @transform_2, window_bounds = array<i64: 1, 32>}, {transform_indices = @transform_3, window_bounds = array<i64: 16, 32>}, {pipeline_mode = #tpu.pipeline_mode<synchronous>, transform_indices = @transform_4, window_bounds = array<i64: 1, 32>}, {pipeline_mode = #tpu.pipeline_mode<synchronous>, transform_indices = @transform_5, window_bounds = array<i64: 1, 32>}, {transform_indices = @transform_6, window_bounds = array<i64: 16, 32>}]} {
    %c0 = arith.constant 0 : index
    %c0_0 = arith.constant 0 : index
    %0 = vector.load %arg1[%c0, %c0_0] : memref<16x64xbf16, #tpu.memory_space<vmem>>, vector<16x64xbf16>
    %c0_1 = arith.constant 0 : index
    %c0_2 = arith.constant 0 : index
    %1 = vector.load %arg2[%c0_1, %c0_2] : memref<64x32xbf16, #tpu.memory_space<vmem>>, vector<64x32xbf16>
    %cst = arith.constant dense<0.000000e+00> : vector<16x32xf32>
    %2 = tpu.matmul %0, %1, %cst {dimension_numbers = #tpu.dot_dimension_numbers<[1], [0], [0], [1], [0, 0, 1, 1], [], []>} : vector<16x64xbf16>, vector<64x32xbf16>, vector<16x32xf32> -> vector<16x32xf32>
    %c0_3 = arith.constant 0 : index
    %c0_4 = arith.constant 0 : index
    %3 = vector.load %arg3[%c0_3, %c0_4] : memref<1x32xf32, #tpu.memory_space<vmem>>, vector<1x32xf32>
    %4 = vector.broadcast %3 : vector<1x32xf32> to vector<16x32xf32>
    %5 = arith.addf %2, %4 : vector<16x32xf32>
    %c0_5 = arith.constant 0 : index
    %c0_6 = arith.constant 0 : index
    %6 = vector.load %arg4[%c0_5, %c0_6] : memref<16x32xf32, #tpu.memory_space<vmem>>, vector<16x32xf32>
    %7 = arith.addf %5, %6 : vector<16x32xf32>
    %cst_7 = arith.constant dense<0.000000e+00> : vector<16xf32>
    %8 = vector.multi_reduction <add>, %7, %cst_7 [1] : vector<16x32xf32> to vector<16xf32>
    %9 = vector.shape_cast %8 : vector<16xf32> to vector<16x1xf32>
    %cst_8 = arith.constant 3.200000e+01 : f32
    %10 = vector.broadcast %cst_8 : f32 to vector<16x1xf32>
    %11 = arith.divf %9, %10 : vector<16x1xf32>
    %12 = vector.broadcast %11 : vector<16x1xf32> to vector<16x32xf32>
    %13 = arith.subf %7, %12 : vector<16x32xf32>
    %14 = arith.mulf %13, %13 : vector<16x32xf32>
    %cst_9 = arith.constant dense<0.000000e+00> : vector<16xf32>
    %15 = vector.multi_reduction <add>, %14, %cst_9 [1] : vector<16x32xf32> to vector<16xf32>
    %16 = vector.shape_cast %15 : vector<16xf32> to vector<16x1xf32>
    %cst_10 = arith.constant 3.200000e+01 : f32
    %17 = vector.broadcast %cst_10 : f32 to vector<16x1xf32>
    %18 = arith.divf %16, %17 : vector<16x1xf32>
    %19 = vector.broadcast %11 : vector<16x1xf32> to vector<16x32xf32>
    %20 = arith.subf %7, %19 : vector<16x32xf32>
    %cst_11 = arith.constant 9.99999974E-6 : f32
    %21 = vector.broadcast %cst_11 : f32 to vector<16x1xf32>
    %22 = arith.addf %18, %21 : vector<16x1xf32>
    %23 = math.rsqrt %22 : vector<16x1xf32>
    %24 = vector.broadcast %23 : vector<16x1xf32> to vector<16x32xf32>
    %25 = arith.mulf %20, %24 : vector<16x32xf32>
    %c0_12 = arith.constant 0 : index
    %c0_13 = arith.constant 0 : index
    %26 = vector.load %arg5[%c0_12, %c0_13] : memref<1x32xf32, #tpu.memory_space<vmem>>, vector<1x32xf32>
    %27 = vector.broadcast %26 : vector<1x32xf32> to vector<16x32xf32>
    %28 = arith.mulf %25, %27 : vector<16x32xf32>
    %c0_14 = arith.constant 0 : index
    %c0_15 = arith.constant 0 : index
    %29 = vector.load %arg6[%c0_14, %c0_15] : memref<1x32xf32, #tpu.memory_space<vmem>>, vector<1x32xf32>
    %30 = vector.broadcast %29 : vector<1x32xf32> to vector<16x32xf32>
    %31 = arith.addf %28, %30 : vector<16x32xf32>
    %c0_16 = arith.constant 0 : index
    %c0_17 = arith.constant 0 : index
    %32 = vector.load %arg7[%c0_16, %c0_17] : memref<16x32xf32, #tpu.memory_space<vmem>>, vector<16x32xf32>
    tpu.vector_store %arg7[%c0_16, %c0_17], %31 {strides = array<i32>} : memref<16x32xf32, #tpu.memory_space<vmem>>, vector<16x32xf32>,
    return
  }
  func.func @transform_0(%arg0: i32) -> (i32, i32) {
    %c0_i32 = arith.constant 0 : i32
    %c0_i32_0 = arith.constant 0 : i32
    return %arg0, %c0_i32 : i32, i32
  }
  func.func @transform_1(%arg0: i32) -> (i32, i32) {
    %c0_i32 = arith.constant 0 : i32
    %c0_i32_0 = arith.constant 0 : i32
    %c0_i32_1 = arith.constant 0 : i32
    return %c0_i32, %c0_i32_0 : i32, i32
  }
  func.func @transform_2(%arg0: i32) -> (i32, i32) {
    %c0_i32 = arith.constant 0 : i32
    %c0_i32_0 = arith.constant 0 : i32
    %c0_i32_1 = arith.constant 0 : i32
    return %c0_i32, %c0_i32_0 : i32, i32
  }
  func.func @transform_3(%arg0: i32) -> (i32, i32) {
    %c0_i32 = arith.constant 0 : i32
    %c0_i32_0 = arith.constant 0 : i32
    return %arg0, %c0_i32 : i32, i32
  }
  func.func @transform_4(%arg0: i32) -> (i32, i32) {
    %c0_i32 = arith.constant 0 : i32
    %c0_i32_0 = arith.constant 0 : i32
    %c0_i32_1 = arith.constant 0 : i32
    return %c0_i32, %c0_i32_0 : i32, i32
  }
  func.func @transform_5(%arg0: i32) -> (i32, i32) {
    %c0_i32 = arith.constant 0 : i32
    %c0_i32_0 = arith.constant 0 : i32
    %c0_i32_1 = arith.constant 0 : i32
    return %c0_i32, %c0_i32_0 : i32, i32
  }
  func.func @transform_6(%arg0: i32) -> (i32, i32) {
    %c0_i32 = arith.constant 0 : i32
    %c0_i32_0 = arith.constant 0 : i32
    return %arg0, %c0_i32 : i32, i32
  }
}

</mosaic_0001>

<llo_original>
// kernel: _lambda_.13
$region0: #{_lambda_.13}
  #allocation0 [shape = 'u32[]', space=smem, size = 0x4, offset = 0x4, fixed_abs, tag = 'smem constant byte address 0x4 - core index']
  #allocation1 [shape = 'u32[144,128]{1,0:T(1,128)}', space=vmem, size = 0x12000, scoped, tag = 'internal scratch']
  %s0 = inlined_call_operand.vmem [shape: f32[16,32], index: 0, kind: input, shape index: {}]
  %s1 = inlined_call_operand.vmem [shape: f32[16,32], index: 1, kind: input, shape index: {}]
  %s2 = inlined_call_operand.vmem [shape: f32[1,32], index: 2, kind: input, shape index: {}]
  %s3 = inlined_call_operand.vmem [shape: f32[1,32], index: 3, kind: input, shape index: {}]
  %s4 = inlined_call_operand.vmem [shape: f32[16,32], index: 4, kind: output, shape index: {}]
  %s5 = sld [smem:[#allocation0]]
  $region26: #{_lambda_.13} parent=0
    _
  %s7 = ssub.s32 1, %s5
  %s8 = scalar_select 0, %s7, %s5
  // Predicated region
  $region2: #{_lambda_.13} parent=0 // pred_check
    _
  $region3: #{_lambda_.13} parent=0 // pred_check_branch
    %10 = sbr.rel (0) target = $region5
  $region4: #{_lambda_.13} parent=0 // pred_region
    _
  $region5: #{_lambda_.13} parent=0 // pred_fallthru
    _
  // Predicated region
  $region6: #{_lambda_.13} parent=0 // pred_check
    _
  $region7: #{_lambda_.13} parent=0 // pred_check_branch
    %12 = sbr.rel (0) target = $region9
  $region8: #{_lambda_.13} parent=0 // pred_region
    _
  $region9: #{_lambda_.13} parent=0 // pred_fallthru
    _
  // Predicated region
  $region10: #{_lambda_.13} parent=0 // pred_check
    _
  $region11: #{_lambda_.13} parent=0 // pred_check_branch
    %14 = sbr.rel (0) target = $region13
  $region12: #{_lambda_.13} parent=0 // pred_region
    _
  $region13: #{_lambda_.13} parent=0 // pred_fallthru
    _
  // Predicated region
  $region14: #{_lambda_.13} parent=0 // pred_check
    _
  $region15: #{_lambda_.13} parent=0 // pred_check_branch
    %16 = sbr.rel (0) target = $region17
  $region16: #{_lambda_.13} parent=0 // pred_region
    _
  $region17: #{_lambda_.13} parent=0 // pred_fallthru
    _
  %v17 = vld [vmem:[%s0] sm:$0xff]
  %v18 = vld [vmem:[%s0 + $0x8] sm:$0xff]
  %v19 = vld [vmem:[%s1] sm:$0xff]
  %v20 = vld [vmem:[%s1 + $0x8] sm:$0xff]
  %v21 = vadd.f32 %v17, %v19
  %v22 = vadd.f32 %v18, %v20
  %vm23 = vcmask 261120
  %v24 = vsel %vm23, %v21, 0.0
  %25 = vadd.xlane.f32.xlu0 %v24
  %v26 = vpop.xlane.xlu0 %25
  %v27 = vsel %vm23, %v22, 0.0
  %28 = vadd.xlane.f32.xlu0 %v27
  %v29 = vpop.xlane.xlu0 %28
  %v30 = vrcp.pop 32.0
  %v31 = vmul.f32 %v26, %v30
  %v32 = vmul.f32 %v29, %v30
  %v33 = vsub.f32 %v21, %v31
  %v34 = vsub.f32 %v22, %v32
  %v35 = vmul.f32 %v33, %v33
  %v36 = vmul.f32 %v34, %v34
  %v37 = vsel %vm23, %v35, 0.0
  %38 = vadd.xlane.f32.xlu0 %v37
  %v39 = vpop.xlane.xlu0 %38
  %v40 = vsel %vm23, %v36, 0.0
  %41 = vadd.xlane.f32.xlu0 %v40
  %v42 = vpop.xlane.xlu0 %41
  %v43 = vmul.f32 %v39, %v30
  %v44 = vmul.f32 %v42, %v30
  %v45 = vadd.f32 %v43, 1e-05
  %v46 = vadd.f32 %v44, 1e-05
  %v47 = vrsqrt.pop %v45
  %v48 = vrsqrt.pop %v46
  %v49 = vmul.f32 %v33, %v47
  %v50 = vmul.f32 %v34, %v48
  %v51 = vld [vmem:[%s2] sm:$0x1]
  %v53 = vlaneseq
  %v54 = vshrl.u32 %v53, 7
  %v55 = vsub.s32 0, %v54
  %v56 = vrot.slane %v51, %v55
  %v58 = vmul.f32 %v49, %v56
  %v59 = vmul.f32 %v50, %v56
  %v60 = vld [vmem:[%s3] sm:$0x1]
  %v62 = vlaneseq
  %v63 = vshrl.u32 %v62, 7
  %v64 = vsub.s32 0, %v63
  %v65 = vrot.slane %v60, %v64
  %v67 = vadd.f32 %v58, %v65
  %v68 = vadd.f32 %v59, %v65
  %69 = vst.msk [vmem:[%s4] sm:$0xff] %vm23, %v67
  %70 = vst.msk [vmem:[%s4 + $0x8] sm:$0xff] %vm23, %v68
  // Predicated region
  $region18: #{_lambda_.13} parent=0 // pred_check
    _
  $region19: #{_lambda_.13} parent=0 // pred_check_branch
    %72 = sbr.rel (0) target = $region21
  $region20: #{_lambda_.13} parent=0 // pred_region
    _
  $region21: #{_lambda_.13} parent=0 // pred_fallthru
    _
  // Predicated region
  $region22: #{_lambda_.13} parent=0 // pred_check
    _
  $region23: #{_lambda_.13} parent=0 // pred_check_branch
    %74 = sbr.rel (0) target = $region25
  $region24: #{_lambda_.13} parent=0 // pred_region
    _
  $region25: #{_lambda_.13} parent=0 // pred_fallthru
    _

// kernel: _lambda_.14
$region0: #{_lambda_.14}
  #allocation0 [shape = 'u32[]', space=smem, size = 0x4, offset = 0x4, fixed_abs, tag = 'smem constant byte address 0x4 - core index']
  #allocation1 [shape = 'u32[144,128]{1,0:T(1,128)}', space=vmem, size = 0x12000, scoped, tag = 'internal scratch']
  %s0 = inlined_call_operand.vmem [shape: f32[16,32], index: 0, kind: input, shape index: {}]
  %s1 = inlined_call_operand.vmem [shape: bf16[32,96], index: 1, kind: input, shape index: {}]
  %s2 = inlined_call_operand.vmem [shape: f32[1,96], index: 2, kind: input, shape index: {}]
  %s3 = inlined_call_operand.vmem [shape: bf16[16,32], index: 3, kind: output, shape index: {0}]
  %s4 = inlined_call_operand.vmem [shape: bf16[16,64], index: 4, kind: output, shape index: {1}]
  %5 = xla_tuple %s3, %s4
  %s6 = sld [smem:[#allocation0]]
  $region30: #{_lambda_.14} parent=0
    _
  %s8 = ssub.s32 1, %s6
  %s9 = scalar_select 0, %s8, %s6
  // Predicated region
  $region2: #{_lambda_.14} parent=0 // pred_check
    _
  $region3: #{_lambda_.14} parent=0 // pred_check_branch
    %11 = sbr.rel (0) target = $region5
  $region4: #{_lambda_.14} parent=0 // pred_region
    _
  $region5: #{_lambda_.14} parent=0 // pred_fallthru
    _
  // Predicated region
  $region6: #{_lambda_.14} parent=0 // pred_check
    _
  $region7: #{_lambda_.14} parent=0 // pred_check_branch
    %13 = sbr.rel (0) target = $region9
  $region8: #{_lambda_.14} parent=0 // pred_region
    _
  $region9: #{_lambda_.14} parent=0 // pred_fallthru
    _
  // Predicated region
  $region10: #{_lambda_.14} parent=0 // pred_check
    _
  $region11: #{_lambda_.14} parent=0 // pred_check_branch
    %15 = sbr.rel (0) target = $region13
  $region12: #{_lambda_.14} parent=0 // pred_region
    _
  $region13: #{_lambda_.14} parent=0 // pred_fallthru
    _
  %v17 = vld [vmem:[%s0] sm:$0xff]
  %v18 = vld [vmem:[%s0 + $0x8] sm:$0xff]
  %v19 = vpack.c.bf16 %v18, %v17
  %v20 = vld [vmem:[%s1] sm:$0xf]
  %v21 = vld [vmem:[%s1 + $0x4] sm:$0xf]
  %v22 = vld [vmem:[%s1 + $0x8] sm:$0xf]
  %v23 = vld [vmem:[%s1 + $0xc] sm:$0xf]
  %v24 = vld [vmem:[%s2] sm:$0x1]
  %v26 = vlaneseq
  %v27 = vshrl.u32 %v26, 7
  %v28 = vsub.s32 0, %v27
  %v29 = vrot.slane %v24, %v28
  %v35 = vunpack.c.l.b16 %v20
  %v36 = vunpack.c.l.b16 %v21
  %v37 = vunpack.c.l.b16 %v22
  %v38 = vunpack.c.l.b16 %v23
  %v39 = vpack.c.b16 %v36, %v35
  %v40 = vpack.c.b16 %v38, %v37
  %vm43 = vcmask 261120
  %v45 = vsel %vm43, %v19, 0
  %47 = vmatprep.subr.bf16.mxu0 0
  %48 = vmatpush1.bf16.msra.mxu0 %v39
  %49 = vmatprep.subr.bf16.mxu0 0
  %50 = vmatpush1.bf16.msra.mxu0 %v40
  %51 = vmatprep.subr.bf16.mxu0 0
  %52 = vmatpush1.bf16.msra.mxu0 0
  %53 = vmatprep.subr.bf16.mxu0 0
  %54 = vmatpush1.bf16.msra.mxu0 0
  %55 = vmatprep.subr.bf16.mxu0 0
  %56 = vmatpush1.bf16.msra.mxu0 0
  %57 = vmatprep.subr.bf16.mxu0 0
  %58 = vmatpush1.bf16.msra.mxu0 0
  %59 = vmatprep.subr.bf16.mxu0 0
  %60 = vmatpush1.bf16.msra.mxu0 0
  %61 = vmatprep.subr.bf16.mxu0 0
  %62 = vmatpush1.bf16.msra.mxu0 0
  %63 = vmatprep.subr.bf16.mxu0 0
  %64 = vmatpush1.bf16.msra.mxu0 0
  %65 = vmatprep.subr.bf16.mxu0 0
  %66 = vmatpush1.bf16.msra.mxu0 0
  %67 = vmatprep.subr.bf16.mxu0 0
  %68 = vmatpush1.bf16.msra.mxu0 0
  %69 = vmatprep.subr.bf16.mxu0 0
  %70 = vmatpush1.bf16.msra.mxu0 0
  %71 = vmatprep.subr.bf16.mxu0 0
  %72 = vmatpush1.bf16.msra.mxu0 0
  %73 = vmatprep.subr.bf16.mxu0 0
  %74 = vmatpush1.bf16.msra.mxu0 0
  %75 = vmatprep.subr.bf16.mxu0 0
  %76 = vmatpush1.bf16.msra.mxu0 0
  %77 = vmatprep.subr.bf16.mxu0 0
  %78 = vmatpush1.bf16.msra.mxu0 0
  %79 = vmatprep.mubr.bf16.mxu0 0
  %80 = vmatmul.mubr.bf16.gmra.mrb[0].mxu0 %v45
  %v81 = vpop.f32.mrb[0].mxu0
  %v82 = vadd.f32 %v29, %v81
  %v83 = vpop.f32.mrb[0].mxu0
  %v84 = vpop.f32.mrb[0].mxu0
  %v85 = vadd.f32 %v29, %v84
  %v86 = vpop.f32.mrb[0].mxu0
  %87 = vdwg.mxu0
  %v88 = vpack.c.bf16 %v85, %v82
  %v90 = vunpack.c.l.b16 %v88
  %v91 = vunpack.c.h.b16 %v88
  %v92 = vpack.c.b16 %v90, %v90
  %v93 = vpack.c.b16 %v91, %v91
  %vm96 = vcmask 257024
  %97 = vst.msk [vmem:[%s3] sm:$0xf] %vm96, %v92
  %98 = vst.msk [vmem:[%s3 + $0x4] sm:$0xf] %vm96, %v93
  %99 = vrot.lane.b32.xlu0 %v92, 96
  %v100 = vpop.permute.xlu0 %99
  %101 = vrot.lane.b32.xlu0 %v93, 96
  %v102 = vpop.permute.xlu0 %101
  %vm105 = vcmask 519168
  %106 = vst.msk [vmem:[%s4] sm:$0xf] %vm105, %v100
  %107 = vst.msk [vmem:[%s4 + $0x4] sm:$0xf] %vm105, %v102
  // Predicated region
  $region14: #{_lambda_.14} parent=0 // pred_check
    _
  $region15: #{_lambda_.14} parent=0 // pred_check_branch
    %109 = sbr.rel (0) target = $region17
  $region16: #{_lambda_.14} parent=0 // pred_region
    _
  $region17: #{_lambda_.14} parent=0 // pred_fallthru
    _
  // Predicated region
  $region18: #{_lambda_.14} parent=0 // pred_check
    _
  $region19: #{_lambda_.14} parent=0 // pred_check_branch
    %111 = sbr.rel (0) target = $region21
  $region20: #{_lambda_.14} parent=0 // pred_region
    _
  $region21: #{_lambda_.14} parent=0 // pred_fallthru
    _
  // Predicated region
  $region22: #{_lambda_.14} parent=0 // pred_check
    _
  $region23: #{_lambda_.14} parent=0 // pred_check_branch
    %113 = sbr.rel (0) target = $region25
  $region24: #{_lambda_.14} parent=0 // pred_region
    _
  $region25: #{_lambda_.14} parent=0 // pred_fallthru
    _
  // Predicated region
  $region26: #{_lambda_.14} parent=0 // pred_check
    _
  $region27: #{_lambda_.14} parent=0 // pred_check_branch
    %115 = sbr.rel (0) target = $region29
  $region28: #{_lambda_.14} parent=0 // pred_region
    _
  $region29: #{_lambda_.14} parent=0 // pred_fallthru
    _

// kernel: _lambda_.12
$region0: #{_lambda_.12}
  #allocation0 [shape = 'u32[]', space=smem, size = 0x4, offset = 0x4, fixed_abs, tag = 'smem constant byte address 0x4 - core index']
  #allocation1 [shape = 'u32[144,128]{1,0:T(1,128)}', space=vmem, size = 0x12000, scoped, tag = 'internal scratch']
  %s0 = inlined_call_operand.vmem [shape: f32[2,16,32], index: 0, kind: input, shape index: {}]
  %s1 = inlined_call_operand.vmem [shape: bf16[4,64,8], index: 1, kind: input, shape index: {}]
  %s2 = inlined_call_operand.vmem [shape: f32[1,32], index: 2, kind: input, shape index: {}]
  %s3 = inlined_call_operand.vmem [shape: f32[2,8,32], index: 3, kind: output, shape index: {}]
  %s4 = sld [smem:[#allocation0]]
  $region45: #{_lambda_.12} parent=0
    _
  %s6 = ssub.s32 1, %s4
  %s7 = scalar_select 0, %s6, %s4
  loop: start=0, step=1, limit=4
  $region2: #{_lambda_.12} parent=0 // loop_pre_header
    _
  $region3: #{_lambda_.12} parent=0 // loop_header
    %s9 = sphi 0, %s13
    %p10 = scmp.ge.s32.totalorder %s9, 4
    %s19 = sphi 0, %s21
    %s22 = sphi 0, %s19
    %s23 = sphi 0, %s22
    %s39 = sphi 0, %s23
    %s43 = sphi 0, %s43
    %s45 = sphi 0, %s43
    %s46 = sphi 0, %s45
    %s60 = sphi 0, %s46
    %s64 = sphi 0, %s64
    %s66 = sphi 0, %s64
    %s67 = sphi 0, %s66
    %s81 = sphi 0, %s67
    %s87 = sphi 0, %s89
    %s90 = sphi 0, %s87
    %s91 = sphi 0, %s90
    %s107 = sphi 0, %s91
  $region4: #{_lambda_.12} parent=0 // loop_header_branch
    %12 = sbr.rel (%p10) target = $region8
  $region5: #{_lambda_.12} parent=0 // loop_body
    %s14 = ssub.s32 %s9, 1
    %s15 = ssub.s32 %s9, 2
    %s16 = sadd.s32 %s9, 1
    %s17 = ssub.s32 %s9, %s16
    %p18 = scmp.eq.s32.totalorder %s17, 0
    %s20 = sadd.s32 %s19, 1
    %s21 = scalar_select %p18, %s19, %s20
    %p24 = pneg %p18
    %p25 = scmp.eq.s32.totalorder %s9, 1
    %p26 = por %p24, %p25
    %p27 = scmp.ne.s32.totalorder %s19, %s22
    %p28 = scmp.eq.s32.totalorder %s9, 0
    %p29 = por %p27, %p28
    %p30 = scmp.ne.s32.totalorder %s19, %s22
    %p31 = scmp.eq.s32.totalorder %s14, 1
    %p32 = por %p30, %p31
    %p33 = scmp.ne.s32.totalorder %s22, %s23
    %p34 = scmp.eq.s32.totalorder %s14, 0
    %p35 = por %p33, %p34
    %p36 = scmp.ne.s32.totalorder %s22, %s23
    %p37 = scmp.eq.s32.totalorder %s15, 1
    %p38 = por %p36, %p37
    %p40 = scmp.ne.s32.totalorder %s23, %s39
    %p41 = scmp.eq.s32.totalorder %s15, 0
    %p42 = por %p40, %p41
    %s44 = sadd.s32 %s43, 1
    %p47 = scmp.eq.s32.totalorder %s9, 1
    %p48 = scmp.ne.s32.totalorder %s43, %s45
    %p49 = scmp.eq.s32.totalorder %s9, 0
    %p50 = por %p48, %p49
    %p51 = scmp.ne.s32.totalorder %s43, %s45
    %p52 = scmp.eq.s32.totalorder %s14, 1
    %p53 = por %p51, %p52
    %p54 = scmp.ne.s32.totalorder %s45, %s46
    %p55 = scmp.eq.s32.totalorder %s14, 0
    %p56 = por %p54, %p55
    %p57 = scmp.ne.s32.totalorder %s45, %s46
    %p58 = scmp.eq.s32.totalorder %s15, 1
    %p59 = por %p57, %p58
    %p61 = scmp.ne.s32.totalorder %s46, %s60
    %p62 = scmp.eq.s32.totalorder %s15, 0
    %p63 = por %p61, %p62
    %s65 = sadd.s32 %s64, 1
    %p68 = scmp.eq.s32.totalorder %s9, 1
    %p69 = scmp.ne.s32.totalorder %s64, %s66
    %p70 = scmp.eq.s32.totalorder %s9, 0
    %p71 = por %p69, %p70
    %p72 = scmp.ne.s32.totalorder %s64, %s66
    %p73 = scmp.eq.s32.totalorder %s14, 1
    %p74 = por %p72, %p73
    %p75 = scmp.ne.s32.totalorder %s66, %s67
    %p76 = scmp.eq.s32.totalorder %s14, 0
    %p77 = por %p75, %p76
    %p78 = scmp.ne.s32.totalorder %s66, %s67
    %p79 = scmp.eq.s32.totalorder %s15, 1
    %p80 = por %p78, %p79
    %p82 = scmp.ne.s32.totalorder %s67, %s81
    %p83 = scmp.eq.s32.totalorder %s15, 0
    %p84 = por %p82, %p83
    %s85 = ssub.s32 %s9, %s16
    %p86 = scmp.eq.s32.totalorder %s85, 0
    %s88 = sadd.s32 %s87, 1
    %s89 = scalar_select %p86, %s87, %s88
    %p92 = pneg %p86
    %p93 = scmp.eq.s32.totalorder %s9, 1
    %p94 = por %p92, %p93
    %p95 = scmp.ne.s32.totalorder %s87, %s90
    %p96 = scmp.eq.s32.totalorder %s9, 0
    %p97 = por %p95, %p96
    %p98 = scmp.ne.s32.totalorder %s87, %s90
    %p99 = scmp.eq.s32.totalorder %s14, 1
    %p100 = por %p98, %p99
    %p101 = scmp.ne.s32.totalorder %s90, %s91
    %p102 = scmp.eq.s32.totalorder %s14, 0
    %p103 = por %p101, %p102
    %p104 = scmp.ne.s32.totalorder %s90, %s91
    %p105 = scmp.eq.s32.totalorder %s15, 1
    %p106 = por %p104, %p105
    %p108 = scmp.ne.s32.totalorder %s91, %s107
    %p109 = scmp.eq.s32.totalorder %s15, 0
    %p110 = por %p108, %p109
    %p111 = scmp.le.s32.totalorder 1, %s9
    %p112 = scmp.lt.s32.totalorder %s9, 3
    %p113 = pnand %p111, %p112
    %p114 = pneg %p113
    // Predicated region
    $region9: #{_lambda_.12} parent=5 // pred_check
      _
    $region10: #{_lambda_.12} parent=5 // pred_check_branch
      %116 = sbr.rel (%p113) target = $region12
    $region11: #{_lambda_.12} parent=5 // pred_region
      %s117 = ssub.s32 %s9, 1
      // Predicated region
      $region13: #{_lambda_.12} parent=11 // pred_check
        %p118 = pneg %p56
      $region14: #{_lambda_.12} parent=11 // pred_check_branch
        %120 = sbr.rel (%p118) target = $region16
      $region15: #{_lambda_.12} parent=11 // pred_region
        _
      $region16: #{_lambda_.12} parent=11 // pred_fallthru
        _
      // Predicated region
      $region17: #{_lambda_.12} parent=11 // pred_check
        %p121 = pneg %p77
      $region18: #{_lambda_.12} parent=11 // pred_check_branch
        %123 = sbr.rel (%p121) target = $region20
      $region19: #{_lambda_.12} parent=11 // pred_region
        _
      $region20: #{_lambda_.12} parent=11 // pred_fallthru
        _
    $region12: #{_lambda_.12} parent=5 // pred_fallthru
      _
    %p124 = scmp.lt.s32.totalorder %s9, 2
    // Predicated region
    $region21: #{_lambda_.12} parent=5 // pred_check
      %p125 = pneg %p124
    $region22: #{_lambda_.12} parent=5 // pred_check_branch
      %127 = sbr.rel (%p125) target = $region24
    $region23: #{_lambda_.12} parent=5 // pred_region
      // Predicated region
      $region25: #{_lambda_.12} parent=23 // pred_check
        %p128 = pneg %p29
      $region26: #{_lambda_.12} parent=23 // pred_check_branch
        %130 = sbr.rel (%p128) target = $region28
      $region27: #{_lambda_.12} parent=23 // pred_region
        %p131 = scmp.lt.s32.totalorder %s9, 1
        %s132 = scalar_select %p131, %s9, 1
        %s133 = smul.addr %s132, 2
        %s134 = smul.addr %s133, 8
        %s135 = scalar_lea.vmem %s0, %s134
      $region28: #{_lambda_.12} parent=23 // pred_fallthru
        _
    $region24: #{_lambda_.12} parent=5 // pred_fallthru
      _
    %p136 = scmp.le.s32.totalorder 1, %s9
    %p137 = scmp.lt.s32.totalorder %s9, 3
    %p138 = pnand %p136, %p137
    %p139 = pneg %p138
    // Predicated region
    $region29: #{_lambda_.12} parent=5 // pred_check
      _
    $region30: #{_lambda_.12} parent=5 // pred_check_branch
      %141 = sbr.rel (%p138) target = $region32
    $region31: #{_lambda_.12} parent=5 // pred_region
      %s142 = ssub.s32 %s9, 1
      %p143 = scmp.lt.s32.totalorder %s14, 1
      %s144 = scalar_select %p143, %s14, 1
      %s145 = smul.addr %s144, 2
      %s146 = smul.addr %s145, 8
      %s147 = scalar_lea.vmem %s0, %s146
      %p148 = pneg %p35
      %p149 = pneg %p32
      %p150 = pneg %p56
      %p151 = pneg %p53
      %p152 = pneg %p77
      %p153 = pneg %p74
      %p154 = pneg %p103
      %p155 = pneg %p100
      %p156 = scmp.lt.s32.totalorder %s14, 1
      %s157 = scalar_select %p156, %s14, 1
      %s158 = smul.addr %s157, 8
      %s159 = scalar_lea.vmem %s3, %s158
      %p160 = scmp.lt.s32.totalorder %s14, 1
      %s161 = scalar_select %p160, %s14, 1
      %s162 = smul.addr %s161, 2
      %s163 = smul.addr %s162, 8
      %s164 = scalar_lea.vmem %s0, %s163
      %p165 = scmp.lt.s32.totalorder %s14, 1
      %s166 = scalar_select %p165, %s14, 1
      %s167 = smul.addr %s166, 8
      %s168 = scalar_lea.vmem %s3, %s167
      %v170 = vld [vmem:[%s164] sm:$0xff]
      %v171 = vld [vmem:[%s164 + $0x8] sm:$0xff]
      %v172 = vpack.c.bf16 %v171, %v170
      %v174 = vshrl.u32 %v172, 16
      %v176 = vshll.u32 %v172, 16
      %v178 = vrot.slane %v176, 1
      %v179 = vor.u32 %v174, %v178
      %180 = vrot.lane.b32.xlu0 %v179, 8
      %v181 = vpop.permute.xlu0 %180
      %v183 = vrot.slane %v172, 1
      %184 = vrot.lane.b32.xlu0 %v183, 16
      %v185 = vpop.permute.xlu0 %184
      %v186 = vrot.slane %v174, 1
      %v187 = vrot.slane %v176, 2
      %v188 = vor.u32 %v186, %v187
      %189 = vrot.lane.b32.xlu0 %v188, 24
      %v190 = vpop.permute.xlu0 %189
      %v191 = vrot.slane %v172, 2
      %192 = vrot.lane.b32.xlu0 %v191, 32
      %v193 = vpop.permute.xlu0 %192
      %v194 = vrot.slane %v174, 2
      %v195 = vrot.slane %v176, 3
      %v196 = vor.u32 %v194, %v195
      %197 = vrot.lane.b32.xlu0 %v196, 40
      %v198 = vpop.permute.xlu0 %197
      %v199 = vrot.slane %v172, 3
      %200 = vrot.lane.b32.xlu0 %v199, 48
      %v201 = vpop.permute.xlu0 %200
      %v202 = vrot.slane %v174, 3
      %v203 = vrot.slane %v176, 4
      %v204 = vor.u32 %v202, %v203
      %205 = vrot.lane.b32.xlu0 %v204, 56
      %v206 = vpop.permute.xlu0 %205
      %vm207 = vcmask 64512
      %v209 = vsel %vm207, %v172, %v181
      %vm210 = vcmask 130048
      %v212 = vsel %vm210, %v209, %v185
      %vm213 = vcmask 195584
      %v215 = vsel %vm213, %v212, %v190
      %vm216 = vcmask 261120
      %v218 = vsel %vm216, %v215, %v193
      %vm219 = vcmask 326656
      %v221 = vsel %vm219, %v218, %v198
      %vm222 = vcmask 392192
      %v224 = vsel %vm222, %v221, %v201
      %vm225 = vcmask 457728
      %v227 = vsel %vm225, %v224, %v206
      %v228 = vld [vmem:[%s1] sm:$0xf]
      %v229 = vld [vmem:[%s1 + $0x4] sm:$0xf]
      %v230 = vld [vmem:[%s1 + $0x8] sm:$0xf]
      %v231 = vld [vmem:[%s1 + $0xc] sm:$0xf]
      %v232 = vld [vmem:[%s1 + $0x10] sm:$0xf]
      %v233 = vld [vmem:[%s1 + $0x14] sm:$0xf]
      %v234 = vld [vmem:[%s1 + $0x18] sm:$0xf]
      %v235 = vld [vmem:[%s1 + $0x1c] sm:$0xf]
      %v244 = vunpack.c.l.b16 %v228
      %v245 = vunpack.c.l.b16 %v229
      %v246 = vunpack.c.l.b16 %v230
      %v247 = vunpack.c.l.b16 %v231
      %v248 = vunpack.c.l.b16 %v232
      %v249 = vunpack.c.l.b16 %v233
      %v250 = vunpack.c.l.b16 %v234
      %v251 = vunpack.c.l.b16 %v235
      %v252 = vpack.c.b16 %v245, %v244
      %v253 = vpack.c.b16 %v247, %v246
      %v254 = vpack.c.b16 %v249, %v248
      %v255 = vpack.c.b16 %v251, %v250
      %vm260 = vcmask 523264
      %v261 = vsel %vm260, %v227, 0
      %263 = vmatprep.subr.bf16.mxu0 0
      %264 = vmatpush1.bf16.msra.mxu0 %v252
      %265 = vmatprep.subr.bf16.mxu0 0
      %266 = vmatpush1.bf16.msra.mxu0 %v253
      %267 = vmatprep.subr.bf16.mxu0 0
      %268 = vmatpush1.bf16.msra.mxu0 %v254
      %269 = vmatprep.subr.bf16.mxu0 0
      %270 = vmatpush1.bf16.msra.mxu0 %v255
      %271 = vmatprep.subr.bf16.mxu0 0
      %272 = vmatpush1.bf16.msra.mxu0 0
      %273 = vmatprep.subr.bf16.mxu0 0
      %274 = vmatpush1.bf16.msra.mxu0 0
      %275 = vmatprep.subr.bf16.mxu0 0
      %276 = vmatpush1.bf16.msra.mxu0 0
      %277 = vmatprep.subr.bf16.mxu0 0
      %278 = vmatpush1.bf16.msra.mxu0 0
      %279 = vmatprep.subr.bf16.mxu0 0
      %280 = vmatpush1.bf16.msra.mxu0 0
      %281 = vmatprep.subr.bf16.mxu0 0
      %282 = vmatpush1.bf16.msra.mxu0 0
      %283 = vmatprep.subr.bf16.mxu0 0
      %284 = vmatpush1.bf16.msra.mxu0 0
      %285 = vmatprep.subr.bf16.mxu0 0
      %286 = vmatpush1.bf16.msra.mxu0 0
      %287 = vmatprep.subr.bf16.mxu0 0
      %288 = vmatpush1.bf16.msra.mxu0 0
      %289 = vmatprep.subr.bf16.mxu0 0
      %290 = vmatpush1.bf16.msra.mxu0 0
      %291 = vmatprep.subr.bf16.mxu0 0
      %292 = vmatpush1.bf16.msra.mxu0 0
      %293 = vmatprep.subr.bf16.mxu0 0
      %294 = vmatpush1.bf16.msra.mxu0 0
      %295 = vmatprep.mubr.bf16.mxu0 0
      %296 = vmatmul.mubr.bf16.gmra.mrb[0].mxu0 %v261
      %v297 = vpop.f32.mrb[0].mxu0
      %v298 = vadd.f32 0.0, %v297
      %v299 = vpop.f32.mrb[0].mxu0
      %v300 = vpop.f32.mrb[0].mxu0
      %v301 = vpop.f32.mrb[0].mxu0
      %302 = vdwg.mxu0
      %303 = vrot.lane.b32.xlu0 %v172, 120
      %v304 = vpop.permute.xlu0 %303
      %305 = vrot.lane.b32.xlu0 %v183, 8
      %v306 = vpop.permute.xlu0 %305
      %307 = vrot.lane.b32.xlu0 %v188, 16
      %v308 = vpop.permute.xlu0 %307
      %309 = vrot.lane.b32.xlu0 %v191, 24
      %v310 = vpop.permute.xlu0 %309
      %311 = vrot.lane.b32.xlu0 %v196, 32
      %v312 = vpop.permute.xlu0 %311
      %313 = vrot.lane.b32.xlu0 %v199, 40
      %v314 = vpop.permute.xlu0 %313
      %315 = vrot.lane.b32.xlu0 %v204, 48
      %v316 = vpop.permute.xlu0 %315
      %v319 = vsel %vm207, %v304, %v179
      %v321 = vsel %vm210, %v319, %v306
      %v323 = vsel %vm213, %v321, %v308
      %v325 = vsel %vm216, %v323, %v310
      %v327 = vsel %vm219, %v325, %v312
      %v329 = vsel %vm222, %v327, %v314
      %v331 = vsel %vm225, %v329, %v316
      %s332 = scalar_lea.vmem %s1, 32
      %v333 = vld [vmem:[%s332] sm:$0xf]
      %v334 = vld [vmem:[%s332 + $0x4] sm:$0xf]
      %v335 = vld [vmem:[%s332 + $0x8] sm:$0xf]
      %v336 = vld [vmem:[%s332 + $0xc] sm:$0xf]
      %v337 = vld [vmem:[%s332 + $0x10] sm:$0xf]
      %v338 = vld [vmem:[%s332 + $0x14] sm:$0xf]
      %v339 = vld [vmem:[%s332 + $0x18] sm:$0xf]
      %v340 = vld [vmem:[%s332 + $0x1c] sm:$0xf]
      %v349 = vunpack.c.l.b16 %v333
      %v350 = vunpack.c.l.b16 %v334
      %v351 = vunpack.c.l.b16 %v335
      %v352 = vunpack.c.l.b16 %v336
      %v353 = vunpack.c.l.b16 %v337
      %v354 = vunpack.c.l.b16 %v338
      %v355 = vunpack.c.l.b16 %v339
      %v356 = vunpack.c.l.b16 %v340
      %v357 = vpack.c.b16 %v350, %v349
      %v358 = vpack.c.b16 %v352, %v351
      %v359 = vpack.c.b16 %v354, %v353
      %v360 = vpack.c.b16 %v356, %v355
      %v365 = vsel %vm260, %v331, 0
      %367 = vmatprep.subr.bf16.mxu0 0
      %368 = vmatpush1.bf16.msra.mxu0 %v357
      %369 = vmatprep.subr.bf16.mxu0 0
      %370 = vmatpush1.bf16.msra.mxu0 %v358
      %371 = vmatprep.subr.bf16.mxu0 0
      %372 = vmatpush1.bf16.msra.mxu0 %v359
      %373 = vmatprep.subr.bf16.mxu0 0
      %374 = vmatpush1.bf16.msra.mxu0 %v360
      %375 = vmatprep.subr.bf16.mxu0 0
      %376 = vmatpush1.bf16.msra.mxu0 0
      %377 = vmatprep.subr.bf16.mxu0 0
      %378 = vmatpush1.bf16.msra.mxu0 0
      %379 = vmatprep.subr.bf16.mxu0 0
      %380 = vmatpush1.bf16.msra.mxu0 0
      %381 = vmatprep.subr.bf16.mxu0 0
      %382 = vmatpush1.bf16.msra.mxu0 0
      %383 = vmatprep.subr.bf16.mxu0 0
      %384 = vmatpush1.bf16.msra.mxu0 0
      %385 = vmatprep.subr.bf16.mxu0 0
      %386 = vmatpush1.bf16.msra.mxu0 0
      %387 = vmatprep.subr.bf16.mxu0 0
      %388 = vmatpush1.bf16.msra.mxu0 0
      %389 = vmatprep.subr.bf16.mxu0 0
      %390 = vmatpush1.bf16.msra.mxu0 0
      %391 = vmatprep.subr.bf16.mxu0 0
      %392 = vmatpush1.bf16.msra.mxu0 0
      %393 = vmatprep.subr.bf16.mxu0 0
      %394 = vmatpush1.bf16.msra.mxu0 0
      %395 = vmatprep.subr.bf16.mxu0 0
      %396 = vmatpush1.bf16.msra.mxu0 0
      %397 = vmatprep.subr.bf16.mxu0 0
      %398 = vmatpush1.bf16.msra.mxu0 0
      %399 = vmatprep.mubr.bf16.mxu0 0
      %400 = vmatmul.mubr.bf16.gmra.mrb[0].mxu0 %v365
      %v401 = vpop.f32.mrb[0].mxu0
      %v402 = vadd.f32 0.0, %v401
      %v403 = vpop.f32.mrb[0].mxu0
      %v404 = vpop.f32.mrb[0].mxu0
      %v405 = vpop.f32.mrb[0].mxu0
      %406 = vdwg.mxu0
      %407 = vrot.lane.b32.xlu0 %v172, 112
      %v408 = vpop.permute.xlu0 %407
      %409 = vrot.lane.b32.xlu0 %v179, 120
      %v410 = vpop.permute.xlu0 %409
      %411 = vrot.lane.b32.xlu0 %v188, 8
      %v412 = vpop.permute.xlu0 %411
      %413 = vrot.lane.b32.xlu0 %v191, 16
      %v414 = vpop.permute.xlu0 %413
      %415 = vrot.lane.b32.xlu0 %v196, 24
      %v416 = vpop.permute.xlu0 %415
      %417 = vrot.lane.b32.xlu0 %v199, 32
      %v418 = vpop.permute.xlu0 %417
      %419 = vrot.lane.b32.xlu0 %v204, 40
      %v420 = vpop.permute.xlu0 %419
      %v423 = vsel %vm207, %v408, %v410
      %v425 = vsel %vm210, %v423, %v183
      %v427 = vsel %vm213, %v425, %v412
      %v429 = vsel %vm216, %v427, %v414
      %v431 = vsel %vm219, %v429, %v416
      %v433 = vsel %vm222, %v431, %v418
      %v435 = vsel %vm225, %v433, %v420
      %s436 = scalar_lea.vmem %s1, 64
      %v437 = vld [vmem:[%s436] sm:$0xf]
      %v438 = vld [vmem:[%s436 + $0x4] sm:$0xf]
      %v439 = vld [vmem:[%s436 + $0x8] sm:$0xf]
      %v440 = vld [vmem:[%s436 + $0xc] sm:$0xf]
      %v441 = vld [vmem:[%s436 + $0x10] sm:$0xf]
      %v442 = vld [vmem:[%s436 + $0x14] sm:$0xf]
      %v443 = vld [vmem:[%s436 + $0x18] sm:$0xf]
      %v444 = vld [vmem:[%s436 + $0x1c] sm:$0xf]
      %v453 = vunpack.c.l.b16 %v437
      %v454 = vunpack.c.l.b16 %v438
      %v455 = vunpack.c.l.b16 %v439
      %v456 = vunpack.c.l.b16 %v440
      %v457 = vunpack.c.l.b16 %v441
      %v458 = vunpack.c.l.b16 %v442
      %v459 = vunpack.c.l.b16 %v443
      %v460 = vunpack.c.l.b16 %v444
      %v461 = vpack.c.b16 %v454, %v453
      %v462 = vpack.c.b16 %v456, %v455
      %v463 = vpack.c.b16 %v458, %v457
      %v464 = vpack.c.b16 %v460, %v459
      %v469 = vsel %vm260, %v435, 0
      %471 = vmatprep.subr.bf16.mxu0 0
      %472 = vmatpush1.bf16.msra.mxu0 %v461
      %473 = vmatprep.subr.bf16.mxu0 0
      %474 = vmatpush1.bf16.msra.mxu0 %v462
      %475 = vmatprep.subr.bf16.mxu0 0
      %476 = vmatpush1.bf16.msra.mxu0 %v463
      %477 = vmatprep.subr.bf16.mxu0 0
      %478 = vmatpush1.bf16.msra.mxu0 %v464
      %479 = vmatprep.subr.bf16.mxu0 0
      %480 = vmatpush1.bf16.msra.mxu0 0
      %481 = vmatprep.subr.bf16.mxu0 0
      %482 = vmatpush1.bf16.msra.mxu0 0
      %483 = vmatprep.subr.bf16.mxu0 0
      %484 = vmatpush1.bf16.msra.mxu0 0
      %485 = vmatprep.subr.bf16.mxu0 0
      %486 = vmatpush1.bf16.msra.mxu0 0
      %487 = vmatprep.subr.bf16.mxu0 0
      %488 = vmatpush1.bf16.msra.mxu0 0
      %489 = vmatprep.subr.bf16.mxu0 0
      %490 = vmatpush1.bf16.msra.mxu0 0
      %491 = vmatprep.subr.bf16.mxu0 0
      %492 = vmatpush1.bf16.msra.mxu0 0
      %493 = vmatprep.subr.bf16.mxu0 0
      %494 = vmatpush1.bf16.msra.mxu0 0
      %495 = vmatprep.subr.bf16.mxu0 0
      %496 = vmatpush1.bf16.msra.mxu0 0
      %497 = vmatprep.subr.bf16.mxu0 0
      %498 = vmatpush1.bf16.msra.mxu0 0
      %499 = vmatprep.subr.bf16.mxu0 0
      %500 = vmatpush1.bf16.msra.mxu0 0
      %501 = vmatprep.subr.bf16.mxu0 0
      %502 = vmatpush1.bf16.msra.mxu0 0
      %503 = vmatprep.mubr.bf16.mxu0 0
      %504 = vmatmul.mubr.bf16.gmra.mrb[0].mxu0 %v469
      %v505 = vpop.f32.mrb[0].mxu0
      %v506 = vadd.f32 0.0, %v505
      %v507 = vpop.f32.mrb[0].mxu0
      %v508 = vpop.f32.mrb[0].mxu0
      %v509 = vpop.f32.mrb[0].mxu0
      %510 = vdwg.mxu0
      %511 = vrot.lane.b32.xlu0 %v172, 104
      %v512 = vpop.permute.xlu0 %511
      %513 = vrot.lane.b32.xlu0 %v179, 112
      %v514 = vpop.permute.xlu0 %513
      %515 = vrot.lane.b32.xlu0 %v183, 120
      %v516 = vpop.permute.xlu0 %515
      %517 = vrot.lane.b32.xlu0 %v191, 8
      %v518 = vpop.permute.xlu0 %517
      %519 = vrot.lane.b32.xlu0 %v196, 16
      %v520 = vpop.permute.xlu0 %519
      %521 = vrot.lane.b32.xlu0 %v199, 24
      %v522 = vpop.permute.xlu0 %521
      %523 = vrot.lane.b32.xlu0 %v204, 32
      %v524 = vpop.permute.xlu0 %523
      %v527 = vsel %vm207, %v512, %v514
      %v529 = vsel %vm210, %v527, %v516
      %v531 = vsel %vm213, %v529, %v188
      %v533 = vsel %vm216, %v531, %v518
      %v535 = vsel %vm219, %v533, %v520
      %v537 = vsel %vm222, %v535, %v522
      %v539 = vsel %vm225, %v537, %v524
      %s540 = scalar_lea.vmem %s1, 96
      %v541 = vld [vmem:[%s540] sm:$0xf]
      %v542 = vld [vmem:[%s540 + $0x4] sm:$0xf]
      %v543 = vld [vmem:[%s540 + $0x8] sm:$0xf]
      %v544 = vld [vmem:[%s540 + $0xc] sm:$0xf]
      %v545 = vld [vmem:[%s540 + $0x10] sm:$0xf]
      %v546 = vld [vmem:[%s540 + $0x14] sm:$0xf]
      %v547 = vld [vmem:[%s540 + $0x18] sm:$0xf]
      %v548 = vld [vmem:[%s540 + $0x1c] sm:$0xf]
      %v557 = vunpack.c.l.b16 %v541
      %v558 = vunpack.c.l.b16 %v542
      %v559 = vunpack.c.l.b16 %v543
      %v560 = vunpack.c.l.b16 %v544
      %v561 = vunpack.c.l.b16 %v545
      %v562 = vunpack.c.l.b16 %v546
      %v563 = vunpack.c.l.b16 %v547
      %v564 = vunpack.c.l.b16 %v548
      %v565 = vpack.c.b16 %v558, %v557
      %v566 = vpack.c.b16 %v560, %v559
      %v567 = vpack.c.b16 %v562, %v561
      %v568 = vpack.c.b16 %v564, %v563
      %v573 = vsel %vm260, %v539, 0
      %575 = vmatprep.subr.bf16.mxu0 0
      %576 = vmatpush1.bf16.msra.mxu0 %v565
      %577 = vmatprep.subr.bf16.mxu0 0
      %578 = vmatpush1.bf16.msra.mxu0 %v566
      %579 = vmatprep.subr.bf16.mxu0 0
      %580 = vmatpush1.bf16.msra.mxu0 %v567
      %581 = vmatprep.subr.bf16.mxu0 0
      %582 = vmatpush1.bf16.msra.mxu0 %v568
      %583 = vmatprep.subr.bf16.mxu0 0
      %584 = vmatpush1.bf16.msra.mxu0 0
      %585 = vmatprep.subr.bf16.mxu0 0
      %586 = vmatpush1.bf16.msra.mxu0 0
      %587 = vmatprep.subr.bf16.mxu0 0
      %588 = vmatpush1.bf16.msra.mxu0 0
      %589 = vmatprep.subr.bf16.mxu0 0
      %590 = vmatpush1.bf16.msra.mxu0 0
      %591 = vmatprep.subr.bf16.mxu0 0
      %592 = vmatpush1.bf16.msra.mxu0 0
      %593 = vmatprep.subr.bf16.mxu0 0
      %594 = vmatpush1.bf16.msra.mxu0 0
      %595 = vmatprep.subr.bf16.mxu0 0
      %596 = vmatpush1.bf16.msra.mxu0 0
      %597 = vmatprep.subr.bf16.mxu0 0
      %598 = vmatpush1.bf16.msra.mxu0 0
      %599 = vmatprep.subr.bf16.mxu0 0
      %600 = vmatpush1.bf16.msra.mxu0 0
      %601 = vmatprep.subr.bf16.mxu0 0
      %602 = vmatpush1.bf16.msra.mxu0 0
      %603 = vmatprep.subr.bf16.mxu0 0
      %604 = vmatpush1.bf16.msra.mxu0 0
      %605 = vmatprep.subr.bf16.mxu0 0
      %606 = vmatpush1.bf16.msra.mxu0 0
      %607 = vmatprep.mubr.bf16.mxu0 0
      %608 = vmatmul.mubr.bf16.gmra.mrb[0].mxu0 %v573
      %v609 = vpop.f32.mrb[0].mxu0
      %v610 = vadd.f32 0.0, %v609
      %v611 = vpop.f32.mrb[0].mxu0
      %v612 = vpop.f32.mrb[0].mxu0
      %v613 = vpop.f32.mrb[0].mxu0
      %614 = vdwg.mxu0
      %616 = vrot.lane.b32.xlu0 %v402, 8
      %v617 = vpop.permute.xlu0 %616
      %620 = vrot.lane.b32.xlu0 %v506, 16
      %v621 = vpop.permute.xlu0 %620
      %624 = vrot.lane.b32.xlu0 %v610, 24
      %v625 = vpop.permute.xlu0 %624
      %v627 = vsel %vm207, %v298, %v617
      %v628 = vsel %vm210, %v627, %v621
      %v629 = vsel %vm213, %v628, %v625
      %v630 = vld [vmem:[%s2] sm:$0x1]
      %v632 = vlaneseq
      %v633 = vshrl.u32 %v632, 7
      %v634 = vsub.s32 0, %v633
      %v635 = vrot.slane %v630, %v634
      %v637 = vadd.f32 %v629, %v635
      %v638 = vmul.f32 %v637, 0.70710677
      %vm639 = vcmp.ge.f32.partialorder %v638, 0.0
      %v640 = vsel %vm639, 1.0, -1.0
      %v641 = vand.u32 2147483647, %v638
      %v642 = vmul.f32 %v641, 0.3275911
      %v643 = vadd.f32 %v642, 1.0
      %v644 = vrcp.pop %v643
      %v645 = vmul.f32 1.0, %v644
      %v646 = vmul.f32 %v645, 1.0614054
      %v647 = vsub.f32 %v646, 1.4531521
      %v648 = vmul.f32 %v647, %v645
      %v649 = vadd.f32 %v648, 1.4214138
      %v650 = vmul.f32 %v649, %v645
      %v651 = vsub.f32 %v650, 0.28449672
      %v652 = vmul.f32 %v651, %v645
      %v653 = vadd.f32 %v652, 0.2548296
      %v654 = vmul.f32 %v653, %v645
      %v655 = vsub.f32 0.0, %v641
      %v656 = vmul.f32 %v655, %v641
      %v657 = vmul.f32 %v656, 1.442695
      %v658 = vpow.pop %v657
      %v659 = vmul.f32 %v654, %v658
      %v660 = vsub.f32 1.0, %v659
      %v661 = vmul.f32 %v640, %v660
      %v662 = vmul.f32 %v637, 0.5
      %v663 = vadd.f32 %v661, 1.0
      %v664 = vmul.f32 %v662, %v663
      %665 = vst.msk [vmem:[%s168] sm:$0xff] %vm216, %v664
      %p666 = scmp.lt.s32.totalorder %s14, 1
      %s667 = scalar_select %p666, %s14, 1
      %s668 = smul.addr %s667, 8
      %s669 = scalar_lea.vmem %s3, %s668
      // Predicated region
      $region33: #{_lambda_.12} parent=31 // pred_check
        %p670 = pneg %p100
      $region34: #{_lambda_.12} parent=31 // pred_check_branch
        %672 = sbr.rel (%p670) target = $region36
      $region35: #{_lambda_.12} parent=31 // pred_region
        _
      $region36: #{_lambda_.12} parent=31 // pred_fallthru
        _
    $region32: #{_lambda_.12} parent=5 // pred_fallthru
      _
    %p673 = scmp.le.s32.totalorder 2, %s9
    // Predicated region
    $region37: #{_lambda_.12} parent=5 // pred_check
      %p674 = pneg %p673
    $region38: #{_lambda_.12} parent=5 // pred_check_branch
      %676 = sbr.rel (%p674) target = $region40
    $region39: #{_lambda_.12} parent=5 // pred_region
      %s677 = ssub.s32 %s9, 2
      // Predicated region
      $region41: #{_lambda_.12} parent=39 // pred_check
        %p678 = pneg %p106
      $region42: #{_lambda_.12} parent=39 // pred_check_branch
        %680 = sbr.rel (%p678) target = $region44
      $region43: #{_lambda_.12} parent=39 // pred_region
        %p681 = scmp.lt.s32.totalorder %s15, 1
        %s682 = scalar_select %p681, %s15, 1
        %s683 = smul.addr %s682, 8
        %s684 = scalar_lea.vmem %s3, %s683
      $region44: #{_lambda_.12} parent=39 // pred_fallthru
        _
    $region40: #{_lambda_.12} parent=5 // pred_fallthru
      _
  $region6: #{_lambda_.12} parent=0 // loop_footer
    %s13 = sadd.s32 1, %s9
  $region7: #{_lambda_.12} parent=0 // loop_footer_branch
    %8 = sbr.rel target = $region3
  $region8: #{_lambda_.12} parent=0 // loop_exit
    _

// kernel: _lambda_.18
$region0: #{_lambda_.18}
  #allocation0 [shape = 'u32[]', space=smem, size = 0x4, offset = 0x4, fixed_abs, tag = 'smem constant byte address 0x4 - core index']
  #allocation1 [shape = 'u32[144,128]{1,0:T(1,128)}', space=vmem, size = 0x12000, scoped, tag = 'internal scratch']
  %s0 = inlined_call_operand.vmem [shape: bf16[16,64], index: 0, kind: input, shape index: {}]
  %s1 = inlined_call_operand.vmem [shape: bf16[64,32], index: 1, kind: input, shape index: {}]
  %s2 = inlined_call_operand.vmem [shape: f32[1,32], index: 2, kind: input, shape index: {}]
  %s3 = inlined_call_operand.vmem [shape: f32[16,32], index: 3, kind: input, shape index: {}]
  %s4 = inlined_call_operand.vmem [shape: f32[1,32], index: 4, kind: input, shape index: {}]
  %s5 = inlined_call_operand.vmem [shape: f32[1,32], index: 5, kind: input, shape index: {}]
  %s6 = inlined_call_operand.vmem [shape: f32[16,32], index: 6, kind: output, shape index: {}]
  %s7 = sld [smem:[#allocation0]]
  $region34: #{_lambda_.18} parent=0
    _
  %s9 = ssub.s32 1, %s7
  %s10 = scalar_select 0, %s9, %s7
  // Predicated region
  $region2: #{_lambda_.18} parent=0 // pred_check
    _
  $region3: #{_lambda_.18} parent=0 // pred_check_branch
    %12 = sbr.rel (0) target = $region5
  $region4: #{_lambda_.18} parent=0 // pred_region
    _
  $region5: #{_lambda_.18} parent=0 // pred_fallthru
    _
  // Predicated region
  $region6: #{_lambda_.18} parent=0 // pred_check
    _
  $region7: #{_lambda_.18} parent=0 // pred_check_branch
    %14 = sbr.rel (0) target = $region9
  $region8: #{_lambda_.18} parent=0 // pred_region
    _
  $region9: #{_lambda_.18} parent=0 // pred_fallthru
    _
  // Predicated region
  $region10: #{_lambda_.18} parent=0 // pred_check
    _
  $region11: #{_lambda_.18} parent=0 // pred_check_branch
    %16 = sbr.rel (0) target = $region13
  $region12: #{_lambda_.18} parent=0 // pred_region
    _
  $region13: #{_lambda_.18} parent=0 // pred_fallthru
    _
  // Predicated region
  $region14: #{_lambda_.18} parent=0 // pred_check
    _
  $region15: #{_lambda_.18} parent=0 // pred_check_branch
    %18 = sbr.rel (0) target = $region17
  $region16: #{_lambda_.18} parent=0 // pred_region
    _
  $region17: #{_lambda_.18} parent=0 // pred_fallthru
    _
  // Predicated region
  $region18: #{_lambda_.18} parent=0 // pred_check
    _
  $region19: #{_lambda_.18} parent=0 // pred_check_branch
    %20 = sbr.rel (0) target = $region21
  $region20: #{_lambda_.18} parent=0 // pred_region
    _
  $region21: #{_lambda_.18} parent=0 // pred_fallthru
    _
  // Predicated region
  $region22: #{_lambda_.18} parent=0 // pred_check
    _
  $region23: #{_lambda_.18} parent=0 // pred_check_branch
    %22 = sbr.rel (0) target = $region25
  $region24: #{_lambda_.18} parent=0 // pred_region
    _
  $region25: #{_lambda_.18} parent=0 // pred_fallthru
    _
  %v24 = vld [vmem:[%s0] sm:$0xf]
  %v25 = vld [vmem:[%s0 + $0x4] sm:$0xf]
  %v26 = vld [vmem:[%s1] sm:$0xf]
  %v27 = vld [vmem:[%s1 + $0x4] sm:$0xf]
  %v28 = vld [vmem:[%s1 + $0x8] sm:$0xf]
  %v29 = vld [vmem:[%s1 + $0xc] sm:$0xf]
  %v30 = vld [vmem:[%s1 + $0x10] sm:$0xf]
  %v31 = vld [vmem:[%s1 + $0x14] sm:$0xf]
  %v32 = vld [vmem:[%s1 + $0x18] sm:$0xf]
  %v33 = vld [vmem:[%s1 + $0x1c] sm:$0xf]
  %v34 = vld [vmem:[%s2] sm:$0x1]
  %v36 = vlaneseq
  %v37 = vshrl.u32 %v36, 7
  %v38 = vsub.s32 0, %v37
  %v39 = vrot.slane %v34, %v38
  %v43 = vunpack.c.l.b16 %v24
  %v44 = vunpack.c.l.b16 %v25
  %v45 = vpack.c.b16 %v44, %v43
  %v54 = vunpack.c.l.b16 %v26
  %v55 = vunpack.c.l.b16 %v27
  %v56 = vunpack.c.l.b16 %v28
  %v57 = vunpack.c.l.b16 %v29
  %v58 = vunpack.c.l.b16 %v30
  %v59 = vunpack.c.l.b16 %v31
  %v60 = vunpack.c.l.b16 %v32
  %v61 = vunpack.c.l.b16 %v33
  %v62 = vpack.c.b16 %v55, %v54
  %v63 = vpack.c.b16 %v57, %v56
  %v64 = vpack.c.b16 %v59, %v58
  %v65 = vpack.c.b16 %v61, %v60
  %vm70 = vcmask 523264
  %v72 = vsel %vm70, %v45, 0
  %74 = vmatprep.subr.bf16.mxu0 0
  %75 = vmatpush1.bf16.msra.mxu0 %v62
  %76 = vmatprep.subr.bf16.mxu0 0
  %77 = vmatpush1.bf16.msra.mxu0 %v63
  %78 = vmatprep.subr.bf16.mxu0 0
  %79 = vmatpush1.bf16.msra.mxu0 %v64
  %80 = vmatprep.subr.bf16.mxu0 0
  %81 = vmatpush1.bf16.msra.mxu0 %v65
  %82 = vmatprep.subr.bf16.mxu0 0
  %83 = vmatpush1.bf16.msra.mxu0 0
  %84 = vmatprep.subr.bf16.mxu0 0
  %85 = vmatpush1.bf16.msra.mxu0 0
  %86 = vmatprep.subr.bf16.mxu0 0
  %87 = vmatpush1.bf16.msra.mxu0 0
  %88 = vmatprep.subr.bf16.mxu0 0
  %89 = vmatpush1.bf16.msra.mxu0 0
  %90 = vmatprep.subr.bf16.mxu0 0
  %91 = vmatpush1.bf16.msra.mxu0 0
  %92 = vmatprep.subr.bf16.mxu0 0
  %93 = vmatpush1.bf16.msra.mxu0 0
  %94 = vmatprep.subr.bf16.mxu0 0
  %95 = vmatpush1.bf16.msra.mxu0 0
  %96 = vmatprep.subr.bf16.mxu0 0
  %97 = vmatpush1.bf16.msra.mxu0 0
  %98 = vmatprep.subr.bf16.mxu0 0
  %99 = vmatpush1.bf16.msra.mxu0 0
  %100 = vmatprep.subr.bf16.mxu0 0
  %101 = vmatpush1.bf16.msra.mxu0 0
  %102 = vmatprep.subr.bf16.mxu0 0
  %103 = vmatpush1.bf16.msra.mxu0 0
  %104 = vmatprep.subr.bf16.mxu0 0
  %105 = vmatpush1.bf16.msra.mxu0 0
  %106 = vmatprep.mubr.bf16.mxu0 0
  %107 = vmatmul.mubr.bf16.gmra.mrb[0].mxu0 %v72
  %v108 = vpop.f32.mrb[0].mxu0
  %v109 = vadd.f32 %v39, %v108
  %v110 = vpop.f32.mrb[0].mxu0
  %v111 = vpop.f32.mrb[0].mxu0
  %v112 = vadd.f32 %v39, %v111
  %v113 = vpop.f32.mrb[0].mxu0
  %114 = vdwg.mxu0
  %v115 = vld [vmem:[%s3] sm:$0xff]
  %v116 = vld [vmem:[%s3 + $0x8] sm:$0xff]
  %v117 = vadd.f32 %v109, %v115
  %v118 = vadd.f32 %v112, %v116
  %vm119 = vcmask 261120
  %v120 = vsel %vm119, %v117, 0.0
  %121 = vadd.xlane.f32.xlu0 %v120
  %v122 = vpop.xlane.xlu0 %121
  %v123 = vsel %vm119, %v118, 0.0
  %124 = vadd.xlane.f32.xlu0 %v123
  %v125 = vpop.xlane.xlu0 %124
  %v126 = vrcp.pop 32.0
  %v127 = vmul.f32 %v122, %v126
  %v128 = vmul.f32 %v125, %v126
  %v129 = vsub.f32 %v117, %v127
  %v130 = vsub.f32 %v118, %v128
  %v131 = vmul.f32 %v129, %v129
  %v132 = vmul.f32 %v130, %v130
  %v133 = vsel %vm119, %v131, 0.0
  %134 = vadd.xlane.f32.xlu0 %v133
  %v135 = vpop.xlane.xlu0 %134
  %v136 = vsel %vm119, %v132, 0.0
  %137 = vadd.xlane.f32.xlu0 %v136
  %v138 = vpop.xlane.xlu0 %137
  %v139 = vmul.f32 %v135, %v126
  %v140 = vmul.f32 %v138, %v126
  %v141 = vadd.f32 %v139, 1e-05
  %v142 = vadd.f32 %v140, 1e-05
  %v143 = vrsqrt.pop %v141
  %v144 = vrsqrt.pop %v142
  %v145 = vmul.f32 %v129, %v143
  %v146 = vmul.f32 %v130, %v144
  %v147 = vld [vmem:[%s4] sm:$0x1]
  %v149 = vlaneseq
  %v150 = vshrl.u32 %v149, 7
  %v151 = vsub.s32 0, %v150
  %v152 = vrot.slane %v147, %v151
  %v154 = vmul.f32 %v145, %v152
  %v155 = vmul.f32 %v146, %v152
  %v156 = vld [vmem:[%s5] sm:$0x1]
  %v158 = vlaneseq
  %v159 = vshrl.u32 %v158, 7
  %v160 = vsub.s32 0, %v159
  %v161 = vrot.slane %v156, %v160
  %v163 = vadd.f32 %v154, %v161
  %v164 = vadd.f32 %v155, %v161
  %165 = vst.msk [vmem:[%s6] sm:$0xff] %vm119, %v163
  %166 = vst.msk [vmem:[%s6 + $0x8] sm:$0xff] %vm119, %v164
  // Predicated region
  $region26: #{_lambda_.18} parent=0 // pred_check
    _
  $region27: #{_lambda_.18} parent=0 // pred_check_branch
    %168 = sbr.rel (0) target = $region29
  $region28: #{_lambda_.18} parent=0 // pred_region
    _
  $region29: #{_lambda_.18} parent=0 // pred_fallthru
    _
  // Predicated region
  $region30: #{_lambda_.18} parent=0 // pred_check
    _
  $region31: #{_lambda_.18} parent=0 // pred_check_branch
    %170 = sbr.rel (0) target = $region33
  $region32: #{_lambda_.18} parent=0 // pred_region
    _
  $region33: #{_lambda_.18} parent=0 // pred_fallthru
    _

// kernel: _lambda_.15
$region0: #{_lambda_.15}
  #allocation0 [shape = 'u32[]', space=smem, size = 0x4, offset = 0x4, fixed_abs, tag = 'smem constant byte address 0x4 - core index']
  #allocation1 [shape = 'u32[144,128]{1,0:T(1,128)}', space=vmem, size = 0x12000, scoped, tag = 'internal scratch']
  #allocation2 [shape = 'f32[4,8,1]{2,1,0:T(8,128)}', space=vmem, size = 0x4000, scoped, tag = 'scratch operand']
  #allocation3 [shape = 'f32[4,8,1]{2,1,0:T(8,128)}', space=vmem, size = 0x4000, scoped, tag = 'scratch operand']
  #allocation4 [shape = 'f32[8,32]{1,0:T(8,128)}', space=vmem, size = 0x1000, scoped, tag = 'scratch operand']
  %s0 = inlined_call_operand.vmem [shape: bf16[2,8,32], index: 0, kind: input, shape index: {}]
  %s1 = inlined_call_operand.vmem [shape: bf16[2,8,64], index: 1, kind: input, shape index: {}]
  %s2 = inlined_call_operand.vmem [shape: f32[2,8,4], index: 2, kind: input, shape index: {}]
  %s3 = inlined_call_operand.vmem [shape: bf16[4,8,8], index: 3, kind: input, shape index: {}]
  %s4 = inlined_call_operand.vmem [shape: f32[2,1,8], index: 4, kind: input, shape index: {}]
  %s5 = inlined_call_operand.vmem [shape: bf16[2,8,32], index: 5, kind: output, shape index: {}]
  %s6 = sld [smem:[#allocation0]]
  $region61: #{_lambda_.15} parent=0
    _
  %s8 = ssub.s32 1, %s6
  %s9 = scalar_select 0, %s8, %s6
  loop: start=0, step=1, limit=4
  $region2: #{_lambda_.15} parent=0 // loop_pre_header
    _
  $region3: #{_lambda_.15} parent=0 // loop_header
    %s11 = sphi 0, %s15
    %p12 = scmp.ge.s32.totalorder %s11, 4
    %s18 = sphi 0, %s37
    %s19 = sphi 0, %s33
    %s20 = sphi 0, %s29
    %s21 = sphi 0, %s18
    %s22 = sphi 0, %s19
    %s23 = sphi 0, %s20
    %s24 = sphi 0, %s21
    %s25 = sphi 0, %s22
    %s26 = sphi 0, %s23
    %s42 = sphi 0, %s44
    %s45 = sphi 0, %s42
    %s46 = sphi 0, %s45
    %s62 = sphi 0, %s46
    %s70 = sphi 0, %s72
    %s73 = sphi 0, %s70
    %s74 = sphi 0, %s73
    %s90 = sphi 0, %s74
    %s98 = sphi 0, %s100
    %s101 = sphi 0, %s98
    %s102 = sphi 0, %s101
    %s118 = sphi 0, %s102
    %s126 = sphi 0, %s128
    %s129 = sphi 0, %s126
    %s130 = sphi 0, %s129
    %s146 = sphi 0, %s130
    %s154 = sphi 0, %s156
    %s157 = sphi 0, %s154
    %s158 = sphi 0, %s157
    %s174 = sphi 0, %s158
    %s182 = sphi 0, %s184
    %s185 = sphi 0, %s182
    %s186 = sphi 0, %s185
    %s202 = sphi 0, %s186
  $region4: #{_lambda_.15} parent=0 // loop_header_branch
    %14 = sbr.rel (%p12) target = $region8
  $region5: #{_lambda_.15} parent=0 // loop_body
    %s16 = ssub.s32 %s11, 1
    %s17 = ssub.s32 %s11, 2
    %s27 = sadd.s32 1, %s20
    %p28 = scmp.ge.s32.totalorder %s27, 1
    %s29 = scalar_select %p28, 0, %s27
    %s30 = sadd.s32 1, %s19
    %s31 = scalar_select %p28, %s30, %s19
    %p32 = scmp.ge.s32.totalorder %s31, 1
    %s33 = scalar_select %p32, 0, %s31
    %s34 = sadd.s32 1, %s18
    %s35 = scalar_select %p32, %s34, %s18
    %p36 = scmp.ge.s32.totalorder %s35, 2
    %s37 = scalar_select %p36, 0, %s35
    %s38 = ssub.s32 %s18, %s37
    %s39 = ssub.s32 %s19, %s33
    %s40 = sor.u32 %s38, %s39
    %p41 = scmp.eq.s32.totalorder %s40, 0
    %s43 = sadd.s32 %s42, 1
    %s44 = scalar_select %p41, %s42, %s43
    %p47 = pneg %p41
    %p48 = scmp.eq.s32.totalorder %s11, 1
    %p49 = por %p47, %p48
    %p50 = scmp.ne.s32.totalorder %s42, %s45
    %p51 = scmp.eq.s32.totalorder %s11, 0
    %p52 = por %p50, %p51
    %p53 = scmp.ne.s32.totalorder %s42, %s45
    %p54 = scmp.eq.s32.totalorder %s16, 1
    %p55 = por %p53, %p54
    %p56 = scmp.ne.s32.totalorder %s45, %s46
    %p57 = scmp.eq.s32.totalorder %s16, 0
    %p58 = por %p56, %p57
    %p59 = scmp.ne.s32.totalorder %s45, %s46
    %p60 = scmp.eq.s32.totalorder %s17, 1
    %p61 = por %p59, %p60
    %p63 = scmp.ne.s32.totalorder %s46, %s62
    %p64 = scmp.eq.s32.totalorder %s17, 0
    %p65 = por %p63, %p64
    %s66 = ssub.s32 %s18, %s37
    %s67 = ssub.s32 %s20, %s29
    %s68 = sor.u32 %s66, %s67
    %p69 = scmp.eq.s32.totalorder %s68, 0
    %s71 = sadd.s32 %s70, 1
    %s72 = scalar_select %p69, %s70, %s71
    %p75 = pneg %p69
    %p76 = scmp.eq.s32.totalorder %s11, 1
    %p77 = por %p75, %p76
    %p78 = scmp.ne.s32.totalorder %s70, %s73
    %p79 = scmp.eq.s32.totalorder %s11, 0
    %p80 = por %p78, %p79
    %p81 = scmp.ne.s32.totalorder %s70, %s73
    %p82 = scmp.eq.s32.totalorder %s16, 1
    %p83 = por %p81, %p82
    %p84 = scmp.ne.s32.totalorder %s73, %s74
    %p85 = scmp.eq.s32.totalorder %s16, 0
    %p86 = por %p84, %p85
    %p87 = scmp.ne.s32.totalorder %s73, %s74
    %p88 = scmp.eq.s32.totalorder %s17, 1
    %p89 = por %p87, %p88
    %p91 = scmp.ne.s32.totalorder %s74, %s90
    %p92 = scmp.eq.s32.totalorder %s17, 0
    %p93 = por %p91, %p92
    %s94 = ssub.s32 %s18, %s37
    %s95 = ssub.s32 %s19, %s33
    %s96 = sor.u32 %s94, %s95
    %p97 = scmp.eq.s32.totalorder %s96, 0
    %s99 = sadd.s32 %s98, 1
    %s100 = scalar_select %p97, %s98, %s99
    %p103 = pneg %p97
    %p104 = scmp.eq.s32.totalorder %s11, 1
    %p105 = por %p103, %p104
    %p106 = scmp.ne.s32.totalorder %s98, %s101
    %p107 = scmp.eq.s32.totalorder %s11, 0
    %p108 = por %p106, %p107
    %p109 = scmp.ne.s32.totalorder %s98, %s101
    %p110 = scmp.eq.s32.totalorder %s16, 1
    %p111 = por %p109, %p110
    %p112 = scmp.ne.s32.totalorder %s101, %s102
    %p113 = scmp.eq.s32.totalorder %s16, 0
    %p114 = por %p112, %p113
    %p115 = scmp.ne.s32.totalorder %s101, %s102
    %p116 = scmp.eq.s32.totalorder %s17, 1
    %p117 = por %p115, %p116
    %p119 = scmp.ne.s32.totalorder %s102, %s118
    %p120 = scmp.eq.s32.totalorder %s17, 0
    %p121 = por %p119, %p120
    %s122 = ssub.s32 %s19, %s33
    %s123 = ssub.s32 %s20, %s29
    %s124 = sor.u32 %s122, %s123
    %p125 = scmp.eq.s32.totalorder %s124, 0
    %s127 = sadd.s32 %s126, 1
    %s128 = scalar_select %p125, %s126, %s127
    %p131 = pneg %p125
    %p132 = scmp.eq.s32.totalorder %s11, 1
    %p133 = por %p131, %p132
    %p134 = scmp.ne.s32.totalorder %s126, %s129
    %p135 = scmp.eq.s32.totalorder %s11, 0
    %p136 = por %p134, %p135
    %p137 = scmp.ne.s32.totalorder %s126, %s129
    %p138 = scmp.eq.s32.totalorder %s16, 1
    %p139 = por %p137, %p138
    %p140 = scmp.ne.s32.totalorder %s129, %s130
    %p141 = scmp.eq.s32.totalorder %s16, 0
    %p142 = por %p140, %p141
    %p143 = scmp.ne.s32.totalorder %s129, %s130
    %p144 = scmp.eq.s32.totalorder %s17, 1
    %p145 = por %p143, %p144
    %p147 = scmp.ne.s32.totalorder %s130, %s146
    %p148 = scmp.eq.s32.totalorder %s17, 0
    %p149 = por %p147, %p148
    %s150 = ssub.s32 %s18, %s37
    %s151 = ssub.s32 %s20, %s29
    %s152 = sor.u32 %s150, %s151
    %p153 = scmp.eq.s32.totalorder %s152, 0
    %s155 = sadd.s32 %s154, 1
    %s156 = scalar_select %p153, %s154, %s155
    %p159 = pneg %p153
    %p160 = scmp.eq.s32.totalorder %s11, 1
    %p161 = por %p159, %p160
    %p162 = scmp.ne.s32.totalorder %s154, %s157
    %p163 = scmp.eq.s32.totalorder %s11, 0
    %p164 = por %p162, %p163
    %p165 = scmp.ne.s32.totalorder %s154, %s157
    %p166 = scmp.eq.s32.totalorder %s16, 1
    %p167 = por %p165, %p166
    %p168 = scmp.ne.s32.totalorder %s157, %s158
    %p169 = scmp.eq.s32.totalorder %s16, 0
    %p170 = por %p168, %p169
    %p171 = scmp.ne.s32.totalorder %s157, %s158
    %p172 = scmp.eq.s32.totalorder %s17, 1
    %p173 = por %p171, %p172
    %p175 = scmp.ne.s32.totalorder %s158, %s174
    %p176 = scmp.eq.s32.totalorder %s17, 0
    %p177 = por %p175, %p176
    %s178 = ssub.s32 %s18, %s37
    %s179 = ssub.s32 %s19, %s33
    %s180 = sor.u32 %s178, %s179
    %p181 = scmp.eq.s32.totalorder %s180, 0
    %s183 = sadd.s32 %s182, 1
    %s184 = scalar_select %p181, %s182, %s183
    %p187 = pneg %p181
    %p188 = scmp.eq.s32.totalorder %s11, 1
    %p189 = por %p187, %p188
    %p190 = scmp.ne.s32.totalorder %s182, %s185
    %p191 = scmp.eq.s32.totalorder %s11, 0
    %p192 = por %p190, %p191
    %p193 = scmp.ne.s32.totalorder %s182, %s185
    %p194 = scmp.eq.s32.totalorder %s16, 1
    %p195 = por %p193, %p194
    %p196 = scmp.ne.s32.totalorder %s185, %s186
    %p197 = scmp.eq.s32.totalorder %s16, 0
    %p198 = por %p196, %p197
    %p199 = scmp.ne.s32.totalorder %s185, %s186
    %p200 = scmp.eq.s32.totalorder %s17, 1
    %p201 = por %p199, %p200
    %p203 = scmp.ne.s32.totalorder %s186, %s202
    %p204 = scmp.eq.s32.totalorder %s17, 0
    %p205 = por %p203, %p204
    %p206 = scmp.le.s32.totalorder 1, %s11
    %p207 = scmp.lt.s32.totalorder %s11, 3
    %p208 = pnand %p206, %p207
    %p209 = pneg %p208
    // Predicated region
    $region9: #{_lambda_.15} parent=5 // pred_check
      _
    $region10: #{_lambda_.15} parent=5 // pred_check_branch
      %211 = sbr.rel (%p208) target = $region12
    $region11: #{_lambda_.15} parent=5 // pred_region
      %s212 = ssub.s32 %s11, 1
      // Predicated region
      $region13: #{_lambda_.15} parent=11 // pred_check
        %p213 = pneg %p142
      $region14: #{_lambda_.15} parent=11 // pred_check_branch
        %215 = sbr.rel (%p213) target = $region16
      $region15: #{_lambda_.15} parent=11 // pred_region
        %p216 = scmp.lt.s32.totalorder %s22, 0
        %s217 = scalar_select %p216, %s22, 0
        %p218 = scmp.lt.s32.totalorder %s23, 0
        %s219 = scalar_select %p218, %s23, 0
        %s220 = sadd.s32 %s219, %s217
        %s221 = smul.addr %s220, 4
        %s222 = scalar_lea.vmem %s3, %s221
      $region16: #{_lambda_.15} parent=11 // pred_fallthru
        _
    $region12: #{_lambda_.15} parent=5 // pred_fallthru
      _
    %p223 = scmp.lt.s32.totalorder %s11, 2
    // Predicated region
    $region17: #{_lambda_.15} parent=5 // pred_check
      %p224 = pneg %p223
    $region18: #{_lambda_.15} parent=5 // pred_check_branch
      %226 = sbr.rel (%p224) target = $region20
    $region19: #{_lambda_.15} parent=5 // pred_region
      // Predicated region
      $region21: #{_lambda_.15} parent=19 // pred_check
        %p227 = pneg %p52
      $region22: #{_lambda_.15} parent=19 // pred_check_branch
        %229 = sbr.rel (%p227) target = $region24
      $region23: #{_lambda_.15} parent=19 // pred_region
        %p230 = scmp.lt.s32.totalorder %s18, 1
        %s231 = scalar_select %p230, %s18, 1
        %p232 = scmp.lt.s32.totalorder %s19, 0
        %s233 = scalar_select %p232, %s19, 0
        %s234 = sadd.s32 %s233, %s231
        %s235 = smul.addr %s234, 4
        %s236 = scalar_lea.vmem %s0, %s235
      $region24: #{_lambda_.15} parent=19 // pred_fallthru
        _
      // Predicated region
      $region25: #{_lambda_.15} parent=19 // pred_check
        %p237 = pneg %p80
      $region26: #{_lambda_.15} parent=19 // pred_check_branch
        %239 = sbr.rel (%p237) target = $region28
      $region27: #{_lambda_.15} parent=19 // pred_region
        %p240 = scmp.lt.s32.totalorder %s18, 1
        %s241 = scalar_select %p240, %s18, 1
        %p242 = scmp.lt.s32.totalorder %s20, 0
        %s243 = scalar_select %p242, %s20, 0
        %s244 = sadd.s32 %s243, %s241
        %s245 = smul.addr %s244, 4
        %s246 = scalar_lea.vmem %s1, %s245
      $region28: #{_lambda_.15} parent=19 // pred_fallthru
        _
      // Predicated region
      $region29: #{_lambda_.15} parent=19 // pred_check
        %p247 = pneg %p108
      $region30: #{_lambda_.15} parent=19 // pred_check_branch
        %249 = sbr.rel (%p247) target = $region32
      $region31: #{_lambda_.15} parent=19 // pred_region
        %p250 = scmp.lt.s32.totalorder %s18, 1
        %s251 = scalar_select %p250, %s18, 1
        %p252 = scmp.lt.s32.totalorder %s19, 0
        %s253 = scalar_select %p252, %s19, 0
        %s254 = sadd.s32 %s253, %s251
        %s255 = smul.addr %s254, 8
        %s256 = scalar_lea.vmem %s2, %s255
      $region32: #{_lambda_.15} parent=19 // pred_fallthru
        _
      // Predicated region
      $region33: #{_lambda_.15} parent=19 // pred_check
        %p257 = pneg %p164
      $region34: #{_lambda_.15} parent=19 // pred_check_branch
        %259 = sbr.rel (%p257) target = $region36
      $region35: #{_lambda_.15} parent=19 // pred_region
        %p260 = scmp.lt.s32.totalorder %s18, 1
        %s261 = scalar_select %p260, %s18, 1
        %p262 = scmp.lt.s32.totalorder %s20, 0
        %s263 = scalar_select %p262, %s20, 0
        %s264 = sadd.s32 %s263, %s261
        %s265 = scalar_lea.vmem %s4, %s264
      $region36: #{_lambda_.15} parent=19 // pred_fallthru
        _
    $region20: #{_lambda_.15} parent=5 // pred_fallthru
      _
    %p266 = scmp.le.s32.totalorder 1, %s11
    %p267 = scmp.lt.s32.totalorder %s11, 3
    %p268 = pnand %p266, %p267
    %p269 = pneg %p268
    // Predicated region
    $region37: #{_lambda_.15} parent=5 // pred_check
      _
    $region38: #{_lambda_.15} parent=5 // pred_check_branch
      %271 = sbr.rel (%p268) target = $region40
    $region39: #{_lambda_.15} parent=5 // pred_region
      %s272 = ssub.s32 %s11, 1
      %p273 = scmp.lt.s32.totalorder %s21, 1
      %s274 = scalar_select %p273, %s21, 1
      %p275 = scmp.lt.s32.totalorder %s22, 0
      %s276 = scalar_select %p275, %s22, 0
      %s277 = sadd.s32 %s276, %s274
      %s278 = smul.addr %s277, 4
      %s279 = scalar_lea.vmem %s0, %s278
      %p280 = pneg %p58
      %p281 = pneg %p55
      %p282 = scmp.lt.s32.totalorder %s21, 1
      %s283 = scalar_select %p282, %s21, 1
      %p284 = scmp.lt.s32.totalorder %s23, 0
      %s285 = scalar_select %p284, %s23, 0
      %s286 = sadd.s32 %s285, %s283
      %s287 = smul.addr %s286, 4
      %s288 = scalar_lea.vmem %s1, %s287
      %p289 = pneg %p86
      %p290 = pneg %p83
      %p291 = scmp.lt.s32.totalorder %s21, 1
      %s292 = scalar_select %p291, %s21, 1
      %p293 = scmp.lt.s32.totalorder %s22, 0
      %s294 = scalar_select %p293, %s22, 0
      %s295 = sadd.s32 %s294, %s292
      %s296 = smul.addr %s295, 8
      %s297 = scalar_lea.vmem %s2, %s296
      %p298 = pneg %p114
      %p299 = pneg %p111
      %p300 = scmp.lt.s32.totalorder %s22, 0
      %s301 = scalar_select %p300, %s22, 0
      %p302 = scmp.lt.s32.totalorder %s23, 0
      %s303 = scalar_select %p302, %s23, 0
      %s304 = sadd.s32 %s303, %s301
      %s305 = smul.addr %s304, 4
      %s306 = scalar_lea.vmem %s3, %s305
      %p307 = pneg %p142
      %p308 = pneg %p139
      %p309 = scmp.lt.s32.totalorder %s21, 1
      %s310 = scalar_select %p309, %s21, 1
      %p311 = scmp.lt.s32.totalorder %s23, 0
      %s312 = scalar_select %p311, %s23, 0
      %s313 = sadd.s32 %s312, %s310
      %s314 = scalar_lea.vmem %s4, %s313
      %p315 = pneg %p170
      %p316 = pneg %p167
      %p317 = pneg %p198
      %p318 = pneg %p195
      %p319 = scmp.lt.s32.totalorder %s21, 1
      %s320 = scalar_select %p319, %s21, 1
      %p321 = scmp.lt.s32.totalorder %s22, 0
      %s322 = scalar_select %p321, %s22, 0
      %s323 = sadd.s32 %s322, %s320
      %s324 = smul.addr %s323, 4
      %s325 = scalar_lea.vmem %s5, %s324
      %p326 = scmp.lt.s32.totalorder %s21, 1
      %s327 = scalar_select %p326, %s21, 1
      %p328 = scmp.lt.s32.totalorder %s22, 0
      %s329 = scalar_select %p328, %s22, 0
      %s330 = sadd.s32 %s329, %s327
      %s331 = smul.addr %s330, 4
      %s332 = scalar_lea.vmem %s0, %s331
      %p333 = scmp.lt.s32.totalorder %s21, 1
      %s334 = scalar_select %p333, %s21, 1
      %p335 = scmp.lt.s32.totalorder %s23, 0
      %s336 = scalar_select %p335, %s23, 0
      %s337 = sadd.s32 %s336, %s334
      %s338 = smul.addr %s337, 4
      %s339 = scalar_lea.vmem %s1, %s338
      %p340 = scmp.lt.s32.totalorder %s21, 1
      %s341 = scalar_select %p340, %s21, 1
      %p342 = scmp.lt.s32.totalorder %s22, 0
      %s343 = scalar_select %p342, %s22, 0
      %s344 = sadd.s32 %s343, %s341
      %s345 = smul.addr %s344, 8
      %s346 = scalar_lea.vmem %s2, %s345
      %p347 = scmp.lt.s32.totalorder %s22, 0
      %s348 = scalar_select %p347, %s22, 0
      %p349 = scmp.lt.s32.totalorder %s23, 0
      %s350 = scalar_select %p349, %s23, 0
      %s351 = sadd.s32 %s350, %s348
      %s352 = smul.addr %s351, 4
      %s353 = scalar_lea.vmem %s3, %s352
      %p354 = scmp.lt.s32.totalorder %s21, 1
      %s355 = scalar_select %p354, %s21, 1
      %p356 = scmp.lt.s32.totalorder %s23, 0
      %s357 = scalar_select %p356, %s23, 0
      %s358 = sadd.s32 %s357, %s355
      %s359 = scalar_lea.vmem %s4, %s358
      %p360 = scmp.lt.s32.totalorder %s21, 1
      %s361 = scalar_select %p360, %s21, 1
      %p362 = scmp.lt.s32.totalorder %s22, 0
      %s363 = scalar_select %p362, %s22, 0
      %s364 = sadd.s32 %s363, %s361
      %s365 = smul.addr %s364, 4
      %s366 = scalar_lea.vmem %s5, %s365
      %p368 = scmp.eq.s32.totalorder %s23, 0
      // Predicated region
      $region41: #{_lambda_.15} parent=39 // pred_check
        %p369 = pneg %p368
      $region42: #{_lambda_.15} parent=39 // pred_check_branch
        %371 = sbr.rel (%p369) target = $region44
      $region43: #{_lambda_.15} parent=39 // pred_region
        %vm372 = vcmask 7168
        %373 = vst.msk [vmem:[#allocation2] sm:$0xff] %vm372, -1e+30
        %374 = vst.msk [vmem:[#allocation2 + $0x8] sm:$0xff] %vm372, -1e+30
        %375 = vst.msk [vmem:[#allocation2 + $0x10] sm:$0xff] %vm372, -1e+30
        %376 = vst.msk [vmem:[#allocation2 + $0x18] sm:$0xff] %vm372, -1e+30
        %377 = vst.msk [vmem:[#allocation3] sm:$0xff] %vm372, 0.0
        %378 = vst.msk [vmem:[#allocation3 + $0x8] sm:$0xff] %vm372, 0.0
        %379 = vst.msk [vmem:[#allocation3 + $0x10] sm:$0xff] %vm372, 0.0
        %380 = vst.msk [vmem:[#allocation3 + $0x18] sm:$0xff] %vm372, 0.0
        %vm381 = vcmask 261120
        %382 = vst.msk [vmem:[#allocation4] sm:$0xff] %vm381, 0.0
      $region44: #{_lambda_.15} parent=39 // pred_fallthru
        _
      %v383 = vld [vmem:[%s359] sm:$0x1]
      %v384 = vld [vmem:[%s332] sm:$0xf]
      %v385 = vld [vmem:[%s339] sm:$0xf]
      %v386 = vld [vmem:[%s346] sm:$0xff]
      %v387 = vld [vmem:[%s353] sm:$0xf]
      %v388 = vunpack.c.l.bf16 %v387
      %390 = vset.pattern.permute.xlu0 0
      %391 = vperm.xlu0 %390, %v386
      %v392 = vpop.permute.xlu0 %391
      %v394 = vmul.f32 %v392, %v388
      %vm395 = vcmask 64512
      %v397 = vsel %vm395, %v384, 0
      %v400 = vsel %vm395, %v385, 0
      %402 = vmatprep.subr.bf16.mxu0 0
      %403 = vmatpush1.bf16.xpose.msra.mxu0 %v400
      %404 = vmatprep.subr.bf16.mxu0 0
      %405 = vmatpush1.bf16.xpose.msra.mxu0 0
      %406 = vmatprep.subr.bf16.mxu0 0
      %407 = vmatpush1.bf16.xpose.msra.mxu0 0
      %408 = vmatprep.subr.bf16.mxu0 0
      %409 = vmatpush1.bf16.xpose.msra.mxu0 0
      %410 = vmatprep.subr.bf16.mxu0 0
      %411 = vmatpush1.bf16.xpose.msra.mxu0 0
      %412 = vmatprep.subr.bf16.mxu0 0
      %413 = vmatpush1.bf16.xpose.msra.mxu0 0
      %414 = vmatprep.subr.bf16.mxu0 0
      %415 = vmatpush1.bf16.xpose.msra.mxu0 0
      %416 = vmatprep.subr.bf16.mxu0 0
      %417 = vmatpush1.bf16.xpose.msra.mxu0 0
      %418 = vmatprep.subr.bf16.mxu0 0
      %419 = vmatpush1.bf16.xpose.msra.mxu0 0
      %420 = vmatprep.subr.bf16.mxu0 0
      %421 = vmatpush1.bf16.xpose.msra.mxu0 0
      %422 = vmatprep.subr.bf16.mxu0 0
      %423 = vmatpush1.bf16.xpose.msra.mxu0 0
      %424 = vmatprep.subr.bf16.mxu0 0
      %425 = vmatpush1.bf16.xpose.msra.mxu0 0
      %426 = vmatprep.subr.bf16.mxu0 0
      %427 = vmatpush1.bf16.xpose.msra.mxu0 0
      %428 = vmatprep.subr.bf16.mxu0 0
      %429 = vmatpush1.bf16.xpose.msra.mxu0 0
      %430 = vmatprep.subr.bf16.mxu0 0
      %431 = vmatpush1.bf16.xpose.msra.mxu0 0
      %432 = vmatprep.subr.bf16.mxu0 0
      %433 = vmatpush1.bf16.xpose.msra.mxu0 0
      %434 = vmatprep.mubr.bf16.mxu0 0
      %435 = vmatmul.mubr.bf16.gmra.mrb[0].mxu0 %v397
      %v436 = vpop.f32.mrb[0].mxu0
      %v437 = vadd.f32 %v394, %v436
      %v438 = vpop.f32.mrb[0].mxu0
      %v439 = vpop.f32.mrb[0].mxu0
      %v440 = vpop.f32.mrb[0].mxu0
      %441 = vdwg.mxu0
      %v443 = vlaneseq
      %v444 = vshrl.u32 %v443, 7
      %v445 = vsub.s32 0, %v444
      %v446 = vrot.slane %v383, %v445
      %v448 = vadd.f32 %v437, %v446
      %v449 = vld [vmem:[#allocation2] sm:$0xff]
      %v450 = vsel %vm395, %v448, -inf
      %451 = vmax.xlane.f32.xlu0 %v450
      %v452 = vpop.xlane.xlu0 %451
      %v453 = vmax.f32 %v449, %v452
      %v454 = vsub.f32 %v449, %v453
      %v455 = vmul.f32 %v454, 1.442695
      %v456 = vpow.pop %v455
      %458 = vset.pattern.permute.xlu0 0
      %459 = vperm.xlu0 %458, %v453
      %v460 = vpop.permute.xlu0 %459
      %v462 = vsub.f32 %v448, %v460
      %v463 = vmul.f32 %v462, 1.442695
      %v464 = vpow.pop %v463
      %v465 = vld [vmem:[#allocation3] sm:$0xff]
      %v466 = vmul.f32 %v456, %v465
      %v467 = vsel %vm395, %v464, 0.0
      %468 = vadd.xlane.f32.xlu0 %v467
      %v469 = vpop.xlane.xlu0 %468
      %v470 = vadd.f32 %v466, %v469
      %vm471 = vcmask 7168
      %472 = vst.msk [vmem:[#allocation3] sm:$0xff] %vm471, %v470
      %v473 = vpack.c.bf16 %v464, %v464
      %v475 = vunpack.c.l.b16 %v385
      %v476 = vpack.c.b16 %v475, %v475
      %477 = vrot.lane.b32.xlu0 %v476, 96
      %v478 = vpop.permute.xlu0 %477
      %v480 = vsel %vm395, %v473, 0
      %vm482 = vcmask 1043456
      %v484 = vsel %vm482, %v478, 0
      %486 = vmatprep.subr.bf16.mxu0 0
      %487 = vmatpush1.bf16.msra.mxu0 %v484
      %488 = vmatprep.subr.bf16.mxu0 0
      %489 = vmatpush1.bf16.msra.mxu0 0
      %490 = vmatprep.subr.bf16.mxu0 0
      %491 = vmatpush1.bf16.msra.mxu0 0
      %492 = vmatprep.subr.bf16.mxu0 0
      %493 = vmatpush1.bf16.msra.mxu0 0
      %494 = vmatprep.subr.bf16.mxu0 0
      %495 = vmatpush1.bf16.msra.mxu0 0
      %496 = vmatprep.subr.bf16.mxu0 0
      %497 = vmatpush1.bf16.msra.mxu0 0
      %498 = vmatprep.subr.bf16.mxu0 0
      %499 = vmatpush1.bf16.msra.mxu0 0
      %500 = vmatprep.subr.bf16.mxu0 0
      %501 = vmatpush1.bf16.msra.mxu0 0
      %502 = vmatprep.subr.bf16.mxu0 0
      %503 = vmatpush1.bf16.msra.mxu0 0
      %504 = vmatprep.subr.bf16.mxu0 0
      %505 = vmatpush1.bf16.msra.mxu0 0
      %506 = vmatprep.subr.bf16.mxu0 0
      %507 = vmatpush1.bf16.msra.mxu0 0
      %508 = vmatprep.subr.bf16.mxu0 0
      %509 = vmatpush1.bf16.msra.mxu0 0
      %510 = vmatprep.subr.bf16.mxu0 0
      %511 = vmatpush1.bf16.msra.mxu0 0
      %512 = vmatprep.subr.bf16.mxu0 0
      %513 = vmatpush1.bf16.msra.mxu0 0
      %514 = vmatprep.subr.bf16.mxu0 0
      %515 = vmatpush1.bf16.msra.mxu0 0
      %516 = vmatprep.subr.bf16.mxu0 0
      %517 = vmatpush1.bf16.msra.mxu0 0
      %518 = vmatprep.mubr.bf16.mxu0 0
      %519 = vmatmul.mubr.bf16.gmra.mrb[0].mxu0 %v480
      %v520 = vpop.f32.mrb[0].mxu0
      %v521 = vadd.f32 0.0, %v520
      %v522 = vpop.f32.mrb[0].mxu0
      %v523 = vpop.f32.mrb[0].mxu0
      %v524 = vpop.f32.mrb[0].mxu0
      %525 = vdwg.mxu0
      %v526 = vld [vmem:[#allocation4] sm:$0xff]
      %528 = vset.pattern.permute.xlu0 0
      %529 = vperm.xlu0 %528, %v456
      %v530 = vpop.permute.xlu0 %529
      %v532 = vmul.f32 %v530, %v526
      %v533 = vadd.f32 %v532, %v521
      %534 = vst.msk [vmem:[#allocation4] sm:$0xff] %vm395, %v533
      %535 = vst.msk [vmem:[#allocation2] sm:$0xff] %vm471, %v453
      %v536 = vld [vmem:[%s332] sm:$0xf]
      %v537 = vld [vmem:[%s339] sm:$0xf]
      %v538 = vld [vmem:[%s346] sm:$0xff]
      %s539 = scalar_lea.vmem %s353, 4
      %v540 = vld [vmem:[%s539] sm:$0xf]
      %v541 = vunpack.c.l.bf16 %v540
      %543 = vset.pattern.permute.xlu0 1
      %544 = vperm.xlu0 %543, %v538
      %v545 = vpop.permute.xlu0 %544
      %v547 = vmul.f32 %v545, %v541
      %v549 = vunpack.c.l.b16 %v536
      %v550 = vpack.c.b16 %v549, %v549
      %551 = vrot.lane.b32.xlu0 %v550, 120
      %v552 = vpop.permute.xlu0 %551
      %v554 = vunpack.c.l.b16 %v537
      %v555 = vpack.c.b16 %v554, %v554
      %556 = vrot.lane.b32.xlu0 %v555, 120
      %v557 = vpop.permute.xlu0 %556
      %v559 = vsel %vm395, %v552, 0
      %v562 = vsel %vm395, %v557, 0
      %564 = vmatprep.subr.bf16.mxu0 0
      %565 = vmatpush1.bf16.xpose.msra.mxu0 %v562
      %566 = vmatprep.subr.bf16.mxu0 0
      %567 = vmatpush1.bf16.xpose.msra.mxu0 0
      %568 = vmatprep.subr.bf16.mxu0 0
      %569 = vmatpush1.bf16.xpose.msra.mxu0 0
      %570 = vmatprep.subr.bf16.mxu0 0
      %571 = vmatpush1.bf16.xpose.msra.mxu0 0
      %572 = vmatprep.subr.bf16.mxu0 0
      %573 = vmatpush1.bf16.xpose.msra.mxu0 0
      %574 = vmatprep.subr.bf16.mxu0 0
      %575 = vmatpush1.bf16.xpose.msra.mxu0 0
      %576 = vmatprep.subr.bf16.mxu0 0
      %577 = vmatpush1.bf16.xpose.msra.mxu0 0
      %578 = vmatprep.subr.bf16.mxu0 0
      %579 = vmatpush1.bf16.xpose.msra.mxu0 0
      %580 = vmatprep.subr.bf16.mxu0 0
      %581 = vmatpush1.bf16.xpose.msra.mxu0 0
      %582 = vmatprep.subr.bf16.mxu0 0
      %583 = vmatpush1.bf16.xpose.msra.mxu0 0
      %584 = vmatprep.subr.bf16.mxu0 0
      %585 = vmatpush1.bf16.xpose.msra.mxu0 0
      %586 = vmatprep.subr.bf16.mxu0 0
      %587 = vmatpush1.bf16.xpose.msra.mxu0 0
      %588 = vmatprep.subr.bf16.mxu0 0
      %589 = vmatpush1.bf16.xpose.msra.mxu0 0
      %590 = vmatprep.subr.bf16.mxu0 0
      %591 = vmatpush1.bf16.xpose.msra.mxu0 0
      %592 = vmatprep.subr.bf16.mxu0 0
      %593 = vmatpush1.bf16.xpose.msra.mxu0 0
      %594 = vmatprep.subr.bf16.mxu0 0
      %595 = vmatpush1.bf16.xpose.msra.mxu0 0
      %596 = vmatprep.mubr.bf16.mxu0 0
      %597 = vmatmul.mubr.bf16.gmra.mrb[0].mxu0 %v559
      %v598 = vpop.f32.mrb[0].mxu0
      %v599 = vadd.f32 %v547, %v598
      %v600 = vpop.f32.mrb[0].mxu0
      %v601 = vpop.f32.mrb[0].mxu0
      %v602 = vpop.f32.mrb[0].mxu0
      %603 = vdwg.mxu0
      %v604 = vadd.f32 %v599, %v446
      %s605 = scalar_lea.vmem [#allocation2], 8
      %v606 = vld [vmem:[%s605] sm:$0xff]
      %v607 = vsel %vm395, %v604, -inf
      %608 = vmax.xlane.f32.xlu0 %v607
      %v609 = vpop.xlane.xlu0 %608
      %v610 = vmax.f32 %v606, %v609
      %v611 = vsub.f32 %v606, %v610
      %v612 = vmul.f32 %v611, 1.442695
      %v613 = vpow.pop %v612
      %615 = vset.pattern.permute.xlu0 0
      %616 = vperm.xlu0 %615, %v610
      %v617 = vpop.permute.xlu0 %616
      %v619 = vsub.f32 %v604, %v617
      %v620 = vmul.f32 %v619, 1.442695
      %v621 = vpow.pop %v620
      %s622 = scalar_lea.vmem [#allocation3], 8
      %v623 = vld [vmem:[%s622] sm:$0xff]
      %v624 = vmul.f32 %v613, %v623
      %v625 = vsel %vm395, %v621, 0.0
      %626 = vadd.xlane.f32.xlu0 %v625
      %v627 = vpop.xlane.xlu0 %626
      %v628 = vadd.f32 %v624, %v627
      %629 = vst.msk [vmem:[%s622] sm:$0xff] %vm471, %v628
      %v630 = vpack.c.bf16 %v621, %v621
      %631 = vrot.lane.b32.xlu0 %v555, 88
      %v632 = vpop.permute.xlu0 %631
      %v634 = vsel %vm395, %v630, 0
      %v637 = vsel %vm482, %v632, 0
      %639 = vmatprep.subr.bf16.mxu0 0
      %640 = vmatpush1.bf16.msra.mxu0 %v637
      %641 = vmatprep.subr.bf16.mxu0 0
      %642 = vmatpush1.bf16.msra.mxu0 0
      %643 = vmatprep.subr.bf16.mxu0 0
      %644 = vmatpush1.bf16.msra.mxu0 0
      %645 = vmatprep.subr.bf16.mxu0 0
      %646 = vmatpush1.bf16.msra.mxu0 0
      %647 = vmatprep.subr.bf16.mxu0 0
      %648 = vmatpush1.bf16.msra.mxu0 0
      %649 = vmatprep.subr.bf16.mxu0 0
      %650 = vmatpush1.bf16.msra.mxu0 0
      %651 = vmatprep.subr.bf16.mxu0 0
      %652 = vmatpush1.bf16.msra.mxu0 0
      %653 = vmatprep.subr.bf16.mxu0 0
      %654 = vmatpush1.bf16.msra.mxu0 0
      %655 = vmatprep.subr.bf16.mxu0 0
      %656 = vmatpush1.bf16.msra.mxu0 0
      %657 = vmatprep.subr.bf16.mxu0 0
      %658 = vmatpush1.bf16.msra.mxu0 0
      %659 = vmatprep.subr.bf16.mxu0 0
      %660 = vmatpush1.bf16.msra.mxu0 0
      %661 = vmatprep.subr.bf16.mxu0 0
      %662 = vmatpush1.bf16.msra.mxu0 0
      %663 = vmatprep.subr.bf16.mxu0 0
      %664 = vmatpush1.bf16.msra.mxu0 0
      %665 = vmatprep.subr.bf16.mxu0 0
      %666 = vmatpush1.bf16.msra.mxu0 0
      %667 = vmatprep.subr.bf16.mxu0 0
      %668 = vmatpush1.bf16.msra.mxu0 0
      %669 = vmatprep.subr.bf16.mxu0 0
      %670 = vmatpush1.bf16.msra.mxu0 0
      %671 = vmatprep.mubr.bf16.mxu0 0
      %672 = vmatmul.mubr.bf16.gmra.mrb[0].mxu0 %v634
      %v673 = vpop.f32.mrb[0].mxu0
      %v674 = vadd.f32 0.0, %v673
      %v675 = vpop.f32.mrb[0].mxu0
      %v676 = vpop.f32.mrb[0].mxu0
      %v677 = vpop.f32.mrb[0].mxu0
      %678 = vdwg.mxu0
      %v679 = vld [vmem:[#allocation4] sm:$0xff]
      %681 = vset.pattern.permute.xlu0 0
      %682 = vperm.xlu0 %681, %v613
      %v683 = vpop.permute.xlu0 %682
      %v685 = vmul.f32 %v683, %v679
      %687 = vrot.lane.b32.xlu0 %v674, 8
      %v688 = vpop.permute.xlu0 %687
      %v690 = vadd.f32 %v685, %v688
      %vm691 = vcmask 130112
      %692 = vst.msk [vmem:[#allocation4] sm:$0xff] %vm691, %v690
      %693 = vst.msk [vmem:[%s605] sm:$0xff] %vm471, %v610
      %v694 = vld [vmem:[%s332] sm:$0xf]
      %v695 = vld [vmem:[%s339] sm:$0xf]
      %v696 = vld [vmem:[%s346] sm:$0xff]
      %s697 = scalar_lea.vmem %s353, 8
      %v698 = vld [vmem:[%s697] sm:$0xf]
      %v699 = vunpack.c.l.bf16 %v698
      %701 = vset.pattern.permute.xlu0 2
      %702 = vperm.xlu0 %701, %v696
      %v703 = vpop.permute.xlu0 %702
      %v705 = vmul.f32 %v703, %v699
      %v707 = vunpack.c.l.b16 %v694
      %v708 = vpack.c.b16 %v707, %v707
      %709 = vrot.lane.b32.xlu0 %v708, 112
      %v710 = vpop.permute.xlu0 %709
      %v712 = vunpack.c.l.b16 %v695
      %v713 = vpack.c.b16 %v712, %v712
      %714 = vrot.lane.b32.xlu0 %v713, 112
      %v715 = vpop.permute.xlu0 %714
      %v717 = vsel %vm395, %v710, 0
      %v720 = vsel %vm395, %v715, 0
      %722 = vmatprep.subr.bf16.mxu0 0
      %723 = vmatpush1.bf16.xpose.msra.mxu0 %v720
      %724 = vmatprep.subr.bf16.mxu0 0
      %725 = vmatpush1.bf16.xpose.msra.mxu0 0
      %726 = vmatprep.subr.bf16.mxu0 0
      %727 = vmatpush1.bf16.xpose.msra.mxu0 0
      %728 = vmatprep.subr.bf16.mxu0 0
      %729 = vmatpush1.bf16.xpose.msra.mxu0 0
      %730 = vmatprep.subr.bf16.mxu0 0
      %731 = vmatpush1.bf16.xpose.msra.mxu0 0
      %732 = vmatprep.subr.bf16.mxu0 0
      %733 = vmatpush1.bf16.xpose.msra.mxu0 0
      %734 = vmatprep.subr.bf16.mxu0 0
      %735 = vmatpush1.bf16.xpose.msra.mxu0 0
      %736 = vmatprep.subr.bf16.mxu0 0
      %737 = vmatpush1.bf16.xpose.msra.mxu0 0
      %738 = vmatprep.subr.bf16.mxu0 0
      %739 = vmatpush1.bf16.xpose.msra.mxu0 0
      %740 = vmatprep.subr.bf16.mxu0 0
      %741 = vmatpush1.bf16.xpose.msra.mxu0 0
      %742 = vmatprep.subr.bf16.mxu0 0
      %743 = vmatpush1.bf16.xpose.msra.mxu0 0
      %744 = vmatprep.subr.bf16.mxu0 0
      %745 = vmatpush1.bf16.xpose.msra.mxu0 0
      %746 = vmatprep.subr.bf16.mxu0 0
      %747 = vmatpush1.bf16.xpose.msra.mxu0 0
      %748 = vmatprep.subr.bf16.mxu0 0
      %749 = vmatpush1.bf16.xpose.msra.mxu0 0
      %750 = vmatprep.subr.bf16.mxu0 0
      %751 = vmatpush1.bf16.xpose.msra.mxu0 0
      %752 = vmatprep.subr.bf16.mxu0 0
      %753 = vmatpush1.bf16.xpose.msra.mxu0 0
      %754 = vmatprep.mubr.bf16.mxu0 0
      %755 = vmatmul.mubr.bf16.gmra.mrb[0].mxu0 %v717
      %v756 = vpop.f32.mrb[0].mxu0
      %v757 = vadd.f32 %v705, %v756
      %v758 = vpop.f32.mrb[0].mxu0
      %v759 = vpop.f32.mrb[0].mxu0
      %v760 = vpop.f32.mrb[0].mxu0
      %761 = vdwg.mxu0
      %v762 = vadd.f32 %v757, %v446
      %s763 = scalar_lea.vmem [#allocation2], 16
      %v764 = vld [vmem:[%s763] sm:$0xff]
      %v765 = vsel %vm395, %v762, -inf
      %766 = vmax.xlane.f32.xlu0 %v765
      %v767 = vpop.xlane.xlu0 %766
      %v768 = vmax.f32 %v764, %v767
      %v769 = vsub.f32 %v764, %v768
      %v770 = vmul.f32 %v769, 1.442695
      %v771 = vpow.pop %v770
      %773 = vset.pattern.permute.xlu0 0
      %774 = vperm.xlu0 %773, %v768
      %v775 = vpop.permute.xlu0 %774
      %v777 = vsub.f32 %v762, %v775
      %v778 = vmul.f32 %v777, 1.442695
      %v779 = vpow.pop %v778
      %s780 = scalar_lea.vmem [#allocation3], 16
      %v781 = vld [vmem:[%s780] sm:$0xff]
      %v782 = vmul.f32 %v771, %v781
      %v783 = vsel %vm395, %v779, 0.0
      %784 = vadd.xlane.f32.xlu0 %v783
      %v785 = vpop.xlane.xlu0 %784
      %v786 = vadd.f32 %v782, %v785
      %787 = vst.msk [vmem:[%s780] sm:$0xff] %vm471, %v786
      %v788 = vpack.c.bf16 %v779, %v779
      %789 = vrot.lane.b32.xlu0 %v713, 80
      %v790 = vpop.permute.xlu0 %789
      %v792 = vsel %vm395, %v788, 0
      %v795 = vsel %vm482, %v790, 0
      %797 = vmatprep.subr.bf16.mxu0 0
      %798 = vmatpush1.bf16.msra.mxu0 %v795
      %799 = vmatprep.subr.bf16.mxu0 0
      %800 = vmatpush1.bf16.msra.mxu0 0
      %801 = vmatprep.subr.bf16.mxu0 0
      %802 = vmatpush1.bf16.msra.mxu0 0
      %803 = vmatprep.subr.bf16.mxu0 0
      %804 = vmatpush1.bf16.msra.mxu0 0
      %805 = vmatprep.subr.bf16.mxu0 0
      %806 = vmatpush1.bf16.msra.mxu0 0
      %807 = vmatprep.subr.bf16.mxu0 0
      %808 = vmatpush1.bf16.msra.mxu0 0
      %809 = vmatprep.subr.bf16.mxu0 0
      %810 = vmatpush1.bf16.msra.mxu0 0
      %811 = vmatprep.subr.bf16.mxu0 0
      %812 = vmatpush1.bf16.msra.mxu0 0
      %813 = vmatprep.subr.bf16.mxu0 0
      %814 = vmatpush1.bf16.msra.mxu0 0
      %815 = vmatprep.subr.bf16.mxu0 0
      %816 = vmatpush1.bf16.msra.mxu0 0
      %817 = vmatprep.subr.bf16.mxu0 0
      %818 = vmatpush1.bf16.msra.mxu0 0
      %819 = vmatprep.subr.bf16.mxu0 0
      %820 = vmatpush1.bf16.msra.mxu0 0
      %821 = vmatprep.subr.bf16.mxu0 0
      %822 = vmatpush1.bf16.msra.mxu0 0
      %823 = vmatprep.subr.bf16.mxu0 0
      %824 = vmatpush1.bf16.msra.mxu0 0
      %825 = vmatprep.subr.bf16.mxu0 0
      %826 = vmatpush1.bf16.msra.mxu0 0
      %827 = vmatprep.subr.bf16.mxu0 0
      %828 = vmatpush1.bf16.msra.mxu0 0
      %829 = vmatprep.mubr.bf16.mxu0 0
      %830 = vmatmul.mubr.bf16.gmra.mrb[0].mxu0 %v792
      %v831 = vpop.f32.mrb[0].mxu0
      %v832 = vadd.f32 0.0, %v831
      %v833 = vpop.f32.mrb[0].mxu0
      %v834 = vpop.f32.mrb[0].mxu0
      %v835 = vpop.f32.mrb[0].mxu0
      %836 = vdwg.mxu0
      %v837 = vld [vmem:[#allocation4] sm:$0xff]
      %839 = vset.pattern.permute.xlu0 0
      %840 = vperm.xlu0 %839, %v771
      %v841 = vpop.permute.xlu0 %840
      %v843 = vmul.f32 %v841, %v837
      %845 = vrot.lane.b32.xlu0 %v832, 16
      %v846 = vpop.permute.xlu0 %845
      %v848 = vadd.f32 %v843, %v846
      %vm849 = vcmask 195712
      %850 = vst.msk [vmem:[#allocation4] sm:$0xff] %vm849, %v848
      %851 = vst.msk [vmem:[%s763] sm:$0xff] %vm471, %v768
      %v852 = vld [vmem:[%s332] sm:$0xf]
      %v853 = vld [vmem:[%s339] sm:$0xf]
      %v854 = vld [vmem:[%s346] sm:$0xff]
      %s855 = scalar_lea.vmem %s353, 12
      %v856 = vld [vmem:[%s855] sm:$0xf]
      %v857 = vunpack.c.l.bf16 %v856
      %859 = vset.pattern.permute.xlu0 3
      %860 = vperm.xlu0 %859, %v854
      %v861 = vpop.permute.xlu0 %860
      %v863 = vmul.f32 %v861, %v857
      %v865 = vunpack.c.l.b16 %v852
      %v866 = vpack.c.b16 %v865, %v865
      %867 = vrot.lane.b32.xlu0 %v866, 104
      %v868 = vpop.permute.xlu0 %867
      %v870 = vunpack.c.l.b16 %v853
      %v871 = vpack.c.b16 %v870, %v870
      %872 = vrot.lane.b32.xlu0 %v871, 104
      %v873 = vpop.permute.xlu0 %872
      %v875 = vsel %vm395, %v868, 0
      %v878 = vsel %vm395, %v873, 0
      %880 = vmatprep.subr.bf16.mxu0 0
      %881 = vmatpush1.bf16.xpose.msra.mxu0 %v878
      %882 = vmatprep.subr.bf16.mxu0 0
      %883 = vmatpush1.bf16.xpose.msra.mxu0 0
      %884 = vmatprep.subr.bf16.mxu0 0
      %885 = vmatpush1.bf16.xpose.msra.mxu0 0
      %886 = vmatprep.subr.bf16.mxu0 0
      %887 = vmatpush1.bf16.xpose.msra.mxu0 0
      %888 = vmatprep.subr.bf16.mxu0 0
      %889 = vmatpush1.bf16.xpose.msra.mxu0 0
      %890 = vmatprep.subr.bf16.mxu0 0
      %891 = vmatpush1.bf16.xpose.msra.mxu0 0
      %892 = vmatprep.subr.bf16.mxu0 0
      %893 = vmatpush1.bf16.xpose.msra.mxu0 0
      %894 = vmatprep.subr.bf16.mxu0 0
      %895 = vmatpush1.bf16.xpose.msra.mxu0 0
      %896 = vmatprep.subr.bf16.mxu0 0
      %897 = vmatpush1.bf16.xpose.msra.mxu0 0
      %898 = vmatprep.subr.bf16.mxu0 0
      %899 = vmatpush1.bf16.xpose.msra.mxu0 0
      %900 = vmatprep.subr.bf16.mxu0 0
      %901 = vmatpush1.bf16.xpose.msra.mxu0 0
      %902 = vmatprep.subr.bf16.mxu0 0
      %903 = vmatpush1.bf16.xpose.msra.mxu0 0
      %904 = vmatprep.subr.bf16.mxu0 0
      %905 = vmatpush1.bf16.xpose.msra.mxu0 0
      %906 = vmatprep.subr.bf16.mxu0 0
      %907 = vmatpush1.bf16.xpose.msra.mxu0 0
      %908 = vmatprep.subr.bf16.mxu0 0
      %909 = vmatpush1.bf16.xpose.msra.mxu0 0
      %910 = vmatprep.subr.bf16.mxu0 0
      %911 = vmatpush1.bf16.xpose.msra.mxu0 0
      %912 = vmatprep.mubr.bf16.mxu0 0
      %913 = vmatmul.mubr.bf16.gmra.mrb[0].mxu0 %v875
      %v914 = vpop.f32.mrb[0].mxu0
      %v915 = vadd.f32 %v863, %v914
      %v916 = vpop.f32.mrb[0].mxu0
      %v917 = vpop.f32.mrb[0].mxu0
      %v918 = vpop.f32.mrb[0].mxu0
      %919 = vdwg.mxu0
      %v920 = vadd.f32 %v915, %v446
      %s921 = scalar_lea.vmem [#allocation2], 24
      %v922 = vld [vmem:[%s921] sm:$0xff]
      %v923 = vsel %vm395, %v920, -inf
      %924 = vmax.xlane.f32.xlu0 %v923
      %v925 = vpop.xlane.xlu0 %924
      %v926 = vmax.f32 %v922, %v925
      %v927 = vsub.f32 %v922, %v926
      %v928 = vmul.f32 %v927, 1.442695
      %v929 = vpow.pop %v928
      %931 = vset.pattern.permute.xlu0 0
      %932 = vperm.xlu0 %931, %v926
      %v933 = vpop.permute.xlu0 %932
      %v935 = vsub.f32 %v920, %v933
      %v936 = vmul.f32 %v935, 1.442695
      %v937 = vpow.pop %v936
      %s938 = scalar_lea.vmem [#allocation3], 24
      %v939 = vld [vmem:[%s938] sm:$0xff]
      %v940 = vmul.f32 %v929, %v939
      %v941 = vsel %vm395, %v937, 0.0
      %942 = vadd.xlane.f32.xlu0 %v941
      %v943 = vpop.xlane.xlu0 %942
      %v944 = vadd.f32 %v940, %v943
      %945 = vst.msk [vmem:[%s938] sm:$0xff] %vm471, %v944
      %v946 = vpack.c.bf16 %v937, %v937
      %947 = vrot.lane.b32.xlu0 %v871, 72
      %v948 = vpop.permute.xlu0 %947
      %v950 = vsel %vm395, %v946, 0
      %v953 = vsel %vm482, %v948, 0
      %955 = vmatprep.subr.bf16.mxu0 0
      %956 = vmatpush1.bf16.msra.mxu0 %v953
      %957 = vmatprep.subr.bf16.mxu0 0
      %958 = vmatpush1.bf16.msra.mxu0 0
      %959 = vmatprep.subr.bf16.mxu0 0
      %960 = vmatpush1.bf16.msra.mxu0 0
      %961 = vmatprep.subr.bf16.mxu0 0
      %962 = vmatpush1.bf16.msra.mxu0 0
      %963 = vmatprep.subr.bf16.mxu0 0
      %964 = vmatpush1.bf16.msra.mxu0 0
      %965 = vmatprep.subr.bf16.mxu0 0
      %966 = vmatpush1.bf16.msra.mxu0 0
      %967 = vmatprep.subr.bf16.mxu0 0
      %968 = vmatpush1.bf16.msra.mxu0 0
      %969 = vmatprep.subr.bf16.mxu0 0
      %970 = vmatpush1.bf16.msra.mxu0 0
      %971 = vmatprep.subr.bf16.mxu0 0
      %972 = vmatpush1.bf16.msra.mxu0 0
      %973 = vmatprep.subr.bf16.mxu0 0
      %974 = vmatpush1.bf16.msra.mxu0 0
      %975 = vmatprep.subr.bf16.mxu0 0
      %976 = vmatpush1.bf16.msra.mxu0 0
      %977 = vmatprep.subr.bf16.mxu0 0
      %978 = vmatpush1.bf16.msra.mxu0 0
      %979 = vmatprep.subr.bf16.mxu0 0
      %980 = vmatpush1.bf16.msra.mxu0 0
      %981 = vmatprep.subr.bf16.mxu0 0
      %982 = vmatpush1.bf16.msra.mxu0 0
      %983 = vmatprep.subr.bf16.mxu0 0
      %984 = vmatpush1.bf16.msra.mxu0 0
      %985 = vmatprep.subr.bf16.mxu0 0
      %986 = vmatpush1.bf16.msra.mxu0 0
      %987 = vmatprep.mubr.bf16.mxu0 0
      %988 = vmatmul.mubr.bf16.gmra.mrb[0].mxu0 %v950
      %v989 = vpop.f32.mrb[0].mxu0
      %v990 = vadd.f32 0.0, %v989
      %v991 = vpop.f32.mrb[0].mxu0
      %v992 = vpop.f32.mrb[0].mxu0
      %v993 = vpop.f32.mrb[0].mxu0
      %994 = vdwg.mxu0
      %v995 = vld [vmem:[#allocation4] sm:$0xff]
      %997 = vset.pattern.permute.xlu0 0
      %998 = vperm.xlu0 %997, %v929
      %v999 = vpop.permute.xlu0 %998
      %v1001 = vmul.f32 %v999, %v995
      %1003 = vrot.lane.b32.xlu0 %v990, 24
      %v1004 = vpop.permute.xlu0 %1003
      %v1006 = vadd.f32 %v1001, %v1004
      %vm1007 = vcmask 261312
      %1008 = vst.msk [vmem:[#allocation4] sm:$0xff] %vm1007, %v1006
      %1009 = vst.msk [vmem:[%s921] sm:$0xff] %vm471, %v926
      // Predicated region
      $region45: #{_lambda_.15} parent=39 // pred_check
        %p1010 = pneg %p368
      $region46: #{_lambda_.15} parent=39 // pred_check_branch
        %1012 = sbr.rel (%p1010) target = $region48
      $region47: #{_lambda_.15} parent=39 // pred_region
        %v1013 = vld [vmem:[#allocation3] sm:$0xff]
        %v1014 = vrcp.pop %v1013
        %v1015 = vld [vmem:[#allocation4] sm:$0xff]
        %1017 = vset.pattern.permute.xlu0 0
        %1018 = vperm.xlu0 %1017, %v1014
        %v1019 = vpop.permute.xlu0 %1018
        %v1021 = vmul.f32 %v1015, %v1019
        %v1022 = vld [vmem:[%s622] sm:$0xff]
        %v1023 = vrcp.pop %v1022
        %1025 = vset.pattern.permute.xlu0 0
        %1026 = vperm.xlu0 %1025, %v1023
        %v1027 = vpop.permute.xlu0 %1026
        %v1029 = vmul.f32 %v1015, %v1027
        %v1030 = vld [vmem:[%s780] sm:$0xff]
        %v1031 = vrcp.pop %v1030
        %1033 = vset.pattern.permute.xlu0 0
        %1034 = vperm.xlu0 %1033, %v1031
        %v1035 = vpop.permute.xlu0 %1034
        %v1037 = vmul.f32 %v1015, %v1035
        %v1038 = vld [vmem:[%s938] sm:$0xff]
        %v1039 = vrcp.pop %v1038
        %1041 = vset.pattern.permute.xlu0 0
        %1042 = vperm.xlu0 %1041, %v1039
        %v1043 = vpop.permute.xlu0 %1042
        %v1045 = vmul.f32 %v1015, %v1043
        %v1046 = vsel %vm395, %v1021, %v1029
        %vm1047 = vcmask 130048
        %v1048 = vsel %vm1047, %v1046, %v1037
        %vm1049 = vcmask 195584
        %v1050 = vsel %vm1049, %v1048, %v1045
        %v1051 = vpack.c.bf16 %v1050, %v1050
        %vm1052 = vcmask 257024
        %1053 = vst.msk [vmem:[%s366] sm:$0xf] %vm1052, %v1051
      $region48: #{_lambda_.15} parent=39 // pred_fallthru
        _
      %p1054 = scmp.lt.s32.totalorder %s21, 1
      %s1055 = scalar_select %p1054, %s21, 1
      %p1056 = scmp.lt.s32.totalorder %s22, 0
      %s1057 = scalar_select %p1056, %s22, 0
      %s1058 = sadd.s32 %s1057, %s1055
      %s1059 = smul.addr %s1058, 4
      %s1060 = scalar_lea.vmem %s5, %s1059
      // Predicated region
      $region49: #{_lambda_.15} parent=39 // pred_check
        %p1061 = pneg %p195
      $region50: #{_lambda_.15} parent=39 // pred_check_branch
        %1063 = sbr.rel (%p1061) target = $region52
      $region51: #{_lambda_.15} parent=39 // pred_region
        _
      $region52: #{_lambda_.15} parent=39 // pred_fallthru
        _
    $region40: #{_lambda_.15} parent=5 // pred_fallthru
      _
    %p1064 = scmp.le.s32.totalorder 2, %s11
    // Predicated region
    $region53: #{_lambda_.15} parent=5 // pred_check
      %p1065 = pneg %p1064
    $region54: #{_lambda_.15} parent=5 // pred_check_branch
      %1067 = sbr.rel (%p1065) target = $region56
    $region55: #{_lambda_.15} parent=5 // pred_region
      %s1068 = ssub.s32 %s11, 2
      // Predicated region
      $region57: #{_lambda_.15} parent=55 // pred_check
        %p1069 = pneg %p201
      $region58: #{_lambda_.15} parent=55 // pred_check_branch
        %1071 = sbr.rel (%p1069) target = $region60
      $region59: #{_lambda_.15} parent=55 // pred_region
        %p1072 = scmp.lt.s32.totalorder %s24, 1
        %s1073 = scalar_select %p1072, %s24, 1
        %p1074 = scmp.lt.s32.totalorder %s25, 0
        %s1075 = scalar_select %p1074, %s25, 0
        %s1076 = sadd.s32 %s1075, %s1073
        %s1077 = smul.addr %s1076, 4
        %s1078 = scalar_lea.vmem %s5, %s1077
      $region60: #{_lambda_.15} parent=55 // pred_fallthru
        _
    $region56: #{_lambda_.15} parent=5 // pred_fallthru
      _
  $region6: #{_lambda_.15} parent=0 // loop_footer
    %s15 = sadd.s32 1, %s11
  $region7: #{_lambda_.15} parent=0 // loop_footer_branch
    %10 = sbr.rel target = $region3
  $region8: #{_lambda_.15} parent=0 // loop_exit
    _

// kernel: _lambda_.16
$region0: #{_lambda_.16}
  #allocation0 [shape = 'u32[]', space=smem, size = 0x4, offset = 0x4, fixed_abs, tag = 'smem constant byte address 0x4 - core index']
  #allocation1 [shape = 'u32[144,128]{1,0:T(1,128)}', space=vmem, size = 0x12000, scoped, tag = 'internal scratch']
  %s0 = inlined_call_operand.vmem [shape: bf16[16,32], index: 0, kind: input, shape index: {}]
  %s1 = inlined_call_operand.vmem [shape: bf16[32,32], index: 1, kind: input, shape index: {}]
  %s2 = inlined_call_operand.vmem [shape: f32[1,32], index: 2, kind: input, shape index: {}]
  %s3 = inlined_call_operand.vmem [shape: f32[16,32], index: 3, kind: input, shape index: {}]
  %s4 = inlined_call_operand.vmem [shape: f32[1,32], index: 4, kind: input, shape index: {}]
  %s5 = inlined_call_operand.vmem [shape: f32[1,32], index: 5, kind: input, shape index: {}]
  %s6 = inlined_call_operand.vmem [shape: f32[16,32], index: 6, kind: output, shape index: {}]
  %s7 = sld [smem:[#allocation0]]
  $region34: #{_lambda_.16} parent=0
    _
  %s9 = ssub.s32 1, %s7
  %s10 = scalar_select 0, %s9, %s7
  // Predicated region
  $region2: #{_lambda_.16} parent=0 // pred_check
    _
  $region3: #{_lambda_.16} parent=0 // pred_check_branch
    %12 = sbr.rel (0) target = $region5
  $region4: #{_lambda_.16} parent=0 // pred_region
    _
  $region5: #{_lambda_.16} parent=0 // pred_fallthru
    _
  // Predicated region
  $region6: #{_lambda_.16} parent=0 // pred_check
    _
  $region7: #{_lambda_.16} parent=0 // pred_check_branch
    %14 = sbr.rel (0) target = $region9
  $region8: #{_lambda_.16} parent=0 // pred_region
    _
  $region9: #{_lambda_.16} parent=0 // pred_fallthru
    _
  // Predicated region
  $region10: #{_lambda_.16} parent=0 // pred_check
    _
  $region11: #{_lambda_.16} parent=0 // pred_check_branch
    %16 = sbr.rel (0) target = $region13
  $region12: #{_lambda_.16} parent=0 // pred_region
    _
  $region13: #{_lambda_.16} parent=0 // pred_fallthru
    _
  // Predicated region
  $region14: #{_lambda_.16} parent=0 // pred_check
    _
  $region15: #{_lambda_.16} parent=0 // pred_check_branch
    %18 = sbr.rel (0) target = $region17
  $region16: #{_lambda_.16} parent=0 // pred_region
    _
  $region17: #{_lambda_.16} parent=0 // pred_fallthru
    _
  // Predicated region
  $region18: #{_lambda_.16} parent=0 // pred_check
    _
  $region19: #{_lambda_.16} parent=0 // pred_check_branch
    %20 = sbr.rel (0) target = $region21
  $region20: #{_lambda_.16} parent=0 // pred_region
    _
  $region21: #{_lambda_.16} parent=0 // pred_fallthru
    _
  // Predicated region
  $region22: #{_lambda_.16} parent=0 // pred_check
    _
  $region23: #{_lambda_.16} parent=0 // pred_check_branch
    %22 = sbr.rel (0) target = $region25
  $region24: #{_lambda_.16} parent=0 // pred_region
    _
  $region25: #{_lambda_.16} parent=0 // pred_fallthru
    _
  %v24 = vld [vmem:[%s0] sm:$0xf]
  %v25 = vld [vmem:[%s0 + $0x4] sm:$0xf]
  %v26 = vld [vmem:[%s1] sm:$0xf]
  %v27 = vld [vmem:[%s1 + $0x4] sm:$0xf]
  %v28 = vld [vmem:[%s1 + $0x8] sm:$0xf]
  %v29 = vld [vmem:[%s1 + $0xc] sm:$0xf]
  %v30 = vld [vmem:[%s2] sm:$0x1]
  %v32 = vlaneseq
  %v33 = vshrl.u32 %v32, 7
  %v34 = vsub.s32 0, %v33
  %v35 = vrot.slane %v30, %v34
  %v39 = vunpack.c.l.b16 %v24
  %v40 = vunpack.c.l.b16 %v25
  %v41 = vpack.c.b16 %v40, %v39
  %v46 = vunpack.c.l.b16 %v26
  %v47 = vunpack.c.l.b16 %v27
  %v48 = vunpack.c.l.b16 %v28
  %v49 = vunpack.c.l.b16 %v29
  %v50 = vpack.c.b16 %v47, %v46
  %v51 = vpack.c.b16 %v49, %v48
  %vm54 = vcmask 261120
  %v56 = vsel %vm54, %v41, 0
  %58 = vmatprep.subr.bf16.mxu0 0
  %59 = vmatpush1.bf16.msra.mxu0 %v50
  %60 = vmatprep.subr.bf16.mxu0 0
  %61 = vmatpush1.bf16.msra.mxu0 %v51
  %62 = vmatprep.subr.bf16.mxu0 0
  %63 = vmatpush1.bf16.msra.mxu0 0
  %64 = vmatprep.subr.bf16.mxu0 0
  %65 = vmatpush1.bf16.msra.mxu0 0
  %66 = vmatprep.subr.bf16.mxu0 0
  %67 = vmatpush1.bf16.msra.mxu0 0
  %68 = vmatprep.subr.bf16.mxu0 0
  %69 = vmatpush1.bf16.msra.mxu0 0
  %70 = vmatprep.subr.bf16.mxu0 0
  %71 = vmatpush1.bf16.msra.mxu0 0
  %72 = vmatprep.subr.bf16.mxu0 0
  %73 = vmatpush1.bf16.msra.mxu0 0
  %74 = vmatprep.subr.bf16.mxu0 0
  %75 = vmatpush1.bf16.msra.mxu0 0
  %76 = vmatprep.subr.bf16.mxu0 0
  %77 = vmatpush1.bf16.msra.mxu0 0
  %78 = vmatprep.subr.bf16.mxu0 0
  %79 = vmatpush1.bf16.msra.mxu0 0
  %80 = vmatprep.subr.bf16.mxu0 0
  %81 = vmatpush1.bf16.msra.mxu0 0
  %82 = vmatprep.subr.bf16.mxu0 0
  %83 = vmatpush1.bf16.msra.mxu0 0
  %84 = vmatprep.subr.bf16.mxu0 0
  %85 = vmatpush1.bf16.msra.mxu0 0
  %86 = vmatprep.subr.bf16.mxu0 0
  %87 = vmatpush1.bf16.msra.mxu0 0
  %88 = vmatprep.subr.bf16.mxu0 0
  %89 = vmatpush1.bf16.msra.mxu0 0
  %90 = vmatprep.mubr.bf16.mxu0 0
  %91 = vmatmul.mubr.bf16.gmra.mrb[0].mxu0 %v56
  %v92 = vpop.f32.mrb[0].mxu0
  %v93 = vadd.f32 %v35, %v92
  %v94 = vpop.f32.mrb[0].mxu0
  %v95 = vpop.f32.mrb[0].mxu0
  %v96 = vadd.f32 %v35, %v95
  %v97 = vpop.f32.mrb[0].mxu0
  %98 = vdwg.mxu0
  %v99 = vld [vmem:[%s3] sm:$0xff]
  %v100 = vld [vmem:[%s3 + $0x8] sm:$0xff]
  %v101 = vadd.f32 %v93, %v99
  %v102 = vadd.f32 %v96, %v100
  %v103 = vsel %vm54, %v101, 0.0
  %104 = vadd.xlane.f32.xlu0 %v103
  %v105 = vpop.xlane.xlu0 %104
  %v106 = vsel %vm54, %v102, 0.0
  %107 = vadd.xlane.f32.xlu0 %v106
  %v108 = vpop.xlane.xlu0 %107
  %v109 = vrcp.pop 32.0
  %v110 = vmul.f32 %v105, %v109
  %v111 = vmul.f32 %v108, %v109
  %v112 = vsub.f32 %v101, %v110
  %v113 = vsub.f32 %v102, %v111
  %v114 = vmul.f32 %v112, %v112
  %v115 = vmul.f32 %v113, %v113
  %v116 = vsel %vm54, %v114, 0.0
  %117 = vadd.xlane.f32.xlu0 %v116
  %v118 = vpop.xlane.xlu0 %117
  %v119 = vsel %vm54, %v115, 0.0
  %120 = vadd.xlane.f32.xlu0 %v119
  %v121 = vpop.xlane.xlu0 %120
  %v122 = vmul.f32 %v118, %v109
  %v123 = vmul.f32 %v121, %v109
  %v124 = vadd.f32 %v122, 1e-05
  %v125 = vadd.f32 %v123, 1e-05
  %v126 = vrsqrt.pop %v124
  %v127 = vrsqrt.pop %v125
  %v128 = vmul.f32 %v112, %v126
  %v129 = vmul.f32 %v113, %v127
  %v130 = vld [vmem:[%s4] sm:$0x1]
  %v132 = vlaneseq
  %v133 = vshrl.u32 %v132, 7
  %v134 = vsub.s32 0, %v133
  %v135 = vrot.slane %v130, %v134
  %v137 = vmul.f32 %v128, %v135
  %v138 = vmul.f32 %v129, %v135
  %v139 = vld [vmem:[%s5] sm:$0x1]
  %v141 = vlaneseq
  %v142 = vshrl.u32 %v141, 7
  %v143 = vsub.s32 0, %v142
  %v144 = vrot.slane %v139, %v143
  %v146 = vadd.f32 %v137, %v144
  %v147 = vadd.f32 %v138, %v144
  %148 = vst.msk [vmem:[%s6] sm:$0xff] %vm54, %v146
  %149 = vst.msk [vmem:[%s6 + $0x8] sm:$0xff] %vm54, %v147
  // Predicated region
  $region26: #{_lambda_.16} parent=0 // pred_check
    _
  $region27: #{_lambda_.16} parent=0 // pred_check_branch
    %151 = sbr.rel (0) target = $region29
  $region28: #{_lambda_.16} parent=0 // pred_region
    _
  $region29: #{_lambda_.16} parent=0 // pred_fallthru
    _
  // Predicated region
  $region30: #{_lambda_.16} parent=0 // pred_check
    _
  $region31: #{_lambda_.16} parent=0 // pred_check_branch
    %153 = sbr.rel (0) target = $region33
  $region32: #{_lambda_.16} parent=0 // pred_region
    _
  $region33: #{_lambda_.16} parent=0 // pred_fallthru
    _

// kernel: _lambda_.17
$region0: #{_lambda_.17}
  #allocation0 [shape = 'u32[]', space=smem, size = 0x4, offset = 0x4, fixed_abs, tag = 'smem constant byte address 0x4 - core index']
  #allocation1 [shape = 'u32[144,128]{1,0:T(1,128)}', space=vmem, size = 0x12000, scoped, tag = 'internal scratch']
  %s0 = inlined_call_operand.vmem [shape: f32[16,32], index: 0, kind: input, shape index: {}]
  %s1 = inlined_call_operand.vmem [shape: bf16[32,64], index: 1, kind: input, shape index: {}]
  %s2 = inlined_call_operand.vmem [shape: f32[1,64], index: 2, kind: input, shape index: {}]
  %s3 = inlined_call_operand.vmem [shape: bf16[16,64], index: 3, kind: output, shape index: {}]
  %s4 = sld [smem:[#allocation0]]
  $region22: #{_lambda_.17} parent=0
    _
  %s6 = ssub.s32 1, %s4
  %s7 = scalar_select 0, %s6, %s4
  // Predicated region
  $region2: #{_lambda_.17} parent=0 // pred_check
    _
  $region3: #{_lambda_.17} parent=0 // pred_check_branch
    %9 = sbr.rel (0) target = $region5
  $region4: #{_lambda_.17} parent=0 // pred_region
    _
  $region5: #{_lambda_.17} parent=0 // pred_fallthru
    _
  // Predicated region
  $region6: #{_lambda_.17} parent=0 // pred_check
    _
  $region7: #{_lambda_.17} parent=0 // pred_check_branch
    %11 = sbr.rel (0) target = $region9
  $region8: #{_lambda_.17} parent=0 // pred_region
    _
  $region9: #{_lambda_.17} parent=0 // pred_fallthru
    _
  // Predicated region
  $region10: #{_lambda_.17} parent=0 // pred_check
    _
  $region11: #{_lambda_.17} parent=0 // pred_check_branch
    %13 = sbr.rel (0) target = $region13
  $region12: #{_lambda_.17} parent=0 // pred_region
    _
  $region13: #{_lambda_.17} parent=0 // pred_fallthru
    _
  %v15 = vld [vmem:[%s0] sm:$0xff]
  %v16 = vld [vmem:[%s0 + $0x8] sm:$0xff]
  %v17 = vpack.c.bf16 %v16, %v15
  %v18 = vld [vmem:[%s1] sm:$0xf]
  %v19 = vld [vmem:[%s1 + $0x4] sm:$0xf]
  %v20 = vld [vmem:[%s1 + $0x8] sm:$0xf]
  %v21 = vld [vmem:[%s1 + $0xc] sm:$0xf]
  %v22 = vld [vmem:[%s2] sm:$0x1]
  %v24 = vlaneseq
  %v25 = vshrl.u32 %v24, 7
  %v26 = vsub.s32 0, %v25
  %v27 = vrot.slane %v22, %v26
  %v33 = vunpack.c.l.b16 %v18
  %v34 = vunpack.c.l.b16 %v19
  %v35 = vunpack.c.l.b16 %v20
  %v36 = vunpack.c.l.b16 %v21
  %v37 = vpack.c.b16 %v34, %v33
  %v38 = vpack.c.b16 %v36, %v35
  %vm41 = vcmask 261120
  %v43 = vsel %vm41, %v17, 0
  %45 = vmatprep.subr.bf16.mxu0 0
  %46 = vmatpush1.bf16.msra.mxu0 %v37
  %47 = vmatprep.subr.bf16.mxu0 0
  %48 = vmatpush1.bf16.msra.mxu0 %v38
  %49 = vmatprep.subr.bf16.mxu0 0
  %50 = vmatpush1.bf16.msra.mxu0 0
  %51 = vmatprep.subr.bf16.mxu0 0
  %52 = vmatpush1.bf16.msra.mxu0 0
  %53 = vmatprep.subr.bf16.mxu0 0
  %54 = vmatpush1.bf16.msra.mxu0 0
  %55 = vmatprep.subr.bf16.mxu0 0
  %56 = vmatpush1.bf16.msra.mxu0 0
  %57 = vmatprep.subr.bf16.mxu0 0
  %58 = vmatpush1.bf16.msra.mxu0 0
  %59 = vmatprep.subr.bf16.mxu0 0
  %60 = vmatpush1.bf16.msra.mxu0 0
  %61 = vmatprep.subr.bf16.mxu0 0
  %62 = vmatpush1.bf16.msra.mxu0 0
  %63 = vmatprep.subr.bf16.mxu0 0
  %64 = vmatpush1.bf16.msra.mxu0 0
  %65 = vmatprep.subr.bf16.mxu0 0
  %66 = vmatpush1.bf16.msra.mxu0 0
  %67 = vmatprep.subr.bf16.mxu0 0
  %68 = vmatpush1.bf16.msra.mxu0 0
  %69 = vmatprep.subr.bf16.mxu0 0
  %70 = vmatpush1.bf16.msra.mxu0 0
  %71 = vmatprep.subr.bf16.mxu0 0
  %72 = vmatpush1.bf16.msra.mxu0 0
  %73 = vmatprep.subr.bf16.mxu0 0
  %74 = vmatpush1.bf16.msra.mxu0 0
  %75 = vmatprep.subr.bf16.mxu0 0
  %76 = vmatpush1.bf16.msra.mxu0 0
  %77 = vmatprep.mubr.bf16.mxu0 0
  %78 = vmatmul.mubr.bf16.gmra.mrb[0].mxu0 %v43
  %v79 = vpop.f32.mrb[0].mxu0
  %v80 = vadd.f32 %v27, %v79
  %v81 = vpop.f32.mrb[0].mxu0
  %v82 = vpop.f32.mrb[0].mxu0
  %v83 = vadd.f32 %v27, %v82
  %v84 = vpop.f32.mrb[0].mxu0
  %85 = vdwg.mxu0
  %v86 = vmul.f32 %v80, 0.70710677
  %v87 = vmul.f32 %v83, 0.70710677
  %vm88 = vcmp.ge.f32.partialorder %v86, 0.0
  %vm89 = vcmp.ge.f32.partialorder %v87, 0.0
  %v90 = vsel %vm88, 1.0, -1.0
  %v91 = vsel %vm89, 1.0, -1.0
  %v92 = vand.u32 2147483647, %v86
  %v93 = vand.u32 2147483647, %v87
  %v94 = vmul.f32 %v92, 0.3275911
  %v95 = vmul.f32 %v93, 0.3275911
  %v96 = vadd.f32 %v94, 1.0
  %v97 = vadd.f32 %v95, 1.0
  %v98 = vrcp.pop %v96
  %v99 = vmul.f32 1.0, %v98
  %v100 = vrcp.pop %v97
  %v101 = vmul.f32 1.0, %v100
  %v102 = vmul.f32 %v99, 1.0614054
  %v103 = vmul.f32 %v101, 1.0614054
  %v104 = vsub.f32 %v102, 1.4531521
  %v105 = vsub.f32 %v103, 1.4531521
  %v106 = vmul.f32 %v104, %v99
  %v107 = vmul.f32 %v105, %v101
  %v108 = vadd.f32 %v106, 1.4214138
  %v109 = vadd.f32 %v107, 1.4214138
  %v110 = vmul.f32 %v108, %v99
  %v111 = vmul.f32 %v109, %v101
  %v112 = vsub.f32 %v110, 0.28449672
  %v113 = vsub.f32 %v111, 0.28449672
  %v114 = vmul.f32 %v112, %v99
  %v115 = vmul.f32 %v113, %v101
  %v116 = vadd.f32 %v114, 0.2548296
  %v117 = vadd.f32 %v115, 0.2548296
  %v118 = vmul.f32 %v116, %v99
  %v119 = vmul.f32 %v117, %v101
  %v120 = vsub.f32 0.0, %v92
  %v121 = vsub.f32 0.0, %v93
  %v122 = vmul.f32 %v120, %v92
  %v123 = vmul.f32 %v121, %v93
  %v124 = vmul.f32 %v122, 1.442695
  %v125 = vpow.pop %v124
  %v126 = vmul.f32 %v123, 1.442695
  %v127 = vpow.pop %v126
  %v128 = vmul.f32 %v118, %v125
  %v129 = vmul.f32 %v119, %v127
  %v130 = vsub.f32 1.0, %v128
  %v131 = vsub.f32 1.0, %v129
  %v132 = vmul.f32 %v90, %v130
  %v133 = vmul.f32 %v91, %v131
  %v134 = vmul.f32 %v80, 0.5
  %v135 = vmul.f32 %v83, 0.5
  %v136 = vadd.f32 %v132, 1.0
  %v137 = vadd.f32 %v133, 1.0
  %v138 = vmul.f32 %v134, %v136
  %v139 = vmul.f32 %v135, %v137
  %v140 = vpack.c.bf16 %v139, %v138
  %v142 = vunpack.c.l.b16 %v140
  %v143 = vunpack.c.h.b16 %v140
  %v144 = vpack.c.b16 %v142, %v142
  %v145 = vpack.c.b16 %v143, %v143
  %vm148 = vcmask 519168
  %149 = vst.msk [vmem:[%s3] sm:$0xf] %vm148, %v144
  %150 = vst.msk [vmem:[%s3 + $0x4] sm:$0xf] %vm148, %v145
  // Predicated region
  $region14: #{_lambda_.17} parent=0 // pred_check
    _
  $region15: #{_lambda_.17} parent=0 // pred_check_branch
    %152 = sbr.rel (0) target = $region17
  $region16: #{_lambda_.17} parent=0 // pred_region
    _
  $region17: #{_lambda_.17} parent=0 // pred_fallthru
    _
  // Predicated region
  $region18: #{_lambda_.17} parent=0 // pred_check
    _
  $region19: #{_lambda_.17} parent=0 // pred_check_branch
    %154 = sbr.rel (0) target = $region21
  $region20: #{_lambda_.17} parent=0 // pred_region
    _
  $region21: #{_lambda_.17} parent=0 // pred_fallthru
    _

// kernel: _lambda_.23
$region0: #{_lambda_.23}
  #allocation0 [shape = 'u32[]', space=smem, size = 0x4, offset = 0x4, fixed_abs, tag = 'smem constant byte address 0x4 - core index']
  #allocation1 [shape = 'u32[144,128]{1,0:T(1,128)}', space=vmem, size = 0x12000, scoped, tag = 'internal scratch']
  %s0 = inlined_call_operand.vmem [shape: bf16[16,64], index: 0, kind: input, shape index: {}]
  %s1 = inlined_call_operand.vmem [shape: bf16[64,32], index: 1, kind: input, shape index: {}]
  %s2 = inlined_call_operand.vmem [shape: f32[1,32], index: 2, kind: input, shape index: {}]
  %s3 = inlined_call_operand.vmem [shape: f32[16,32], index: 3, kind: input, shape index: {}]
  %s4 = inlined_call_operand.vmem [shape: f32[1,32], index: 4, kind: input, shape index: {}]
  %s5 = inlined_call_operand.vmem [shape: f32[1,32], index: 5, kind: input, shape index: {}]
  %s6 = inlined_call_operand.hbm [shape: f32[16,32], index: 6, kind: output, shape index: {}]
  %s7 = sld [smem:[#allocation0]]
  $region34: #{_lambda_.23} parent=0
    _
  %s9 = ssub.s32 1, %s7
  %s10 = scalar_select 0, %s9, %s7
  $region1: #{_lambda_.23} parent=0
    #allocation2 [shape = 'u8[8192]{0}', space=vmem, size = 0x2000, scoped, tag = 'output window, operand 0, single buffered']
    #allocation3 [shape = 's32[1]{0}', space=sflag, size = 0x4, scoped, tag = 'scoped memory for _lambda_.23']
    %11 = vsyncpa [#allocation3], 0
    // Predicated region
    $region2: #{_lambda_.23} parent=1 // pred_check
      _
    $region3: #{_lambda_.23} parent=1 // pred_check_branch
      %13 = sbr.rel (0) target = $region5
    $region4: #{_lambda_.23} parent=1 // pred_region
      _
    $region5: #{_lambda_.23} parent=1 // pred_fallthru
      _
    // Predicated region
    $region6: #{_lambda_.23} parent=1 // pred_check
      _
    $region7: #{_lambda_.23} parent=1 // pred_check_branch
      %15 = sbr.rel (0) target = $region9
    $region8: #{_lambda_.23} parent=1 // pred_region
      _
    $region9: #{_lambda_.23} parent=1 // pred_fallthru
      _
    // Predicated region
    $region10: #{_lambda_.23} parent=1 // pred_check
      _
    $region11: #{_lambda_.23} parent=1 // pred_check_branch
      %17 = sbr.rel (0) target = $region13
    $region12: #{_lambda_.23} parent=1 // pred_region
      _
    $region13: #{_lambda_.23} parent=1 // pred_fallthru
      _
    // Predicated region
    $region14: #{_lambda_.23} parent=1 // pred_check
      _
    $region15: #{_lambda_.23} parent=1 // pred_check_branch
      %19 = sbr.rel (0) target = $region17
    $region16: #{_lambda_.23} parent=1 // pred_region
      _
    $region17: #{_lambda_.23} parent=1 // pred_fallthru
      _
    // Predicated region
    $region18: #{_lambda_.23} parent=1 // pred_check
      _
    $region19: #{_lambda_.23} parent=1 // pred_check_branch
      %21 = sbr.rel (0) target = $region21
    $region20: #{_lambda_.23} parent=1 // pred_region
      _
    $region21: #{_lambda_.23} parent=1 // pred_fallthru
      _
    // Predicated region
    $region22: #{_lambda_.23} parent=1 // pred_check
      _
    $region23: #{_lambda_.23} parent=1 // pred_check_branch
      %23 = sbr.rel (0) target = $region25
    $region24: #{_lambda_.23} parent=1 // pred_region
      _
    $region25: #{_lambda_.23} parent=1 // pred_fallthru
      _
    %v25 = vld [vmem:[%s0] sm:$0xf]
    %v26 = vld [vmem:[%s0 + $0x4] sm:$0xf]
    %v27 = vld [vmem:[%s1] sm:$0xf]
    %v28 = vld [vmem:[%s1 + $0x4] sm:$0xf]
    %v29 = vld [vmem:[%s1 + $0x8] sm:$0xf]
    %v30 = vld [vmem:[%s1 + $0xc] sm:$0xf]
    %v31 = vld [vmem:[%s1 + $0x10] sm:$0xf]
    %v32 = vld [vmem:[%s1 + $0x14] sm:$0xf]
    %v33 = vld [vmem:[%s1 + $0x18] sm:$0xf]
    %v34 = vld [vmem:[%s1 + $0x1c] sm:$0xf]
    %v35 = vld [vmem:[%s2] sm:$0x1]
    %v37 = vlaneseq
    %v38 = vshrl.u32 %v37, 7
    %v39 = vsub.s32 0, %v38
    %v40 = vrot.slane %v35, %v39
    %v44 = vunpack.c.l.b16 %v25
    %v45 = vunpack.c.l.b16 %v26
    %v46 = vpack.c.b16 %v45, %v44
    %v55 = vunpack.c.l.b16 %v27
    %v56 = vunpack.c.l.b16 %v28
    %v57 = vunpack.c.l.b16 %v29
    %v58 = vunpack.c.l.b16 %v30
    %v59 = vunpack.c.l.b16 %v31
    %v60 = vunpack.c.l.b16 %v32
    %v61 = vunpack.c.l.b16 %v33
    %v62 = vunpack.c.l.b16 %v34
    %v63 = vpack.c.b16 %v56, %v55
    %v64 = vpack.c.b16 %v58, %v57
    %v65 = vpack.c.b16 %v60, %v59
    %v66 = vpack.c.b16 %v62, %v61
    %vm71 = vcmask 523264
    %v73 = vsel %vm71, %v46, 0
    %75 = vmatprep.subr.bf16.mxu0 0
    %76 = vmatpush1.bf16.msra.mxu0 %v63
    %77 = vmatprep.subr.bf16.mxu0 0
    %78 = vmatpush1.bf16.msra.mxu0 %v64
    %79 = vmatprep.subr.bf16.mxu0 0
    %80 = vmatpush1.bf16.msra.mxu0 %v65
    %81 = vmatprep.subr.bf16.mxu0 0
    %82 = vmatpush1.bf16.msra.mxu0 %v66
    %83 = vmatprep.subr.bf16.mxu0 0
    %84 = vmatpush1.bf16.msra.mxu0 0
    %85 = vmatprep.subr.bf16.mxu0 0
    %86 = vmatpush1.bf16.msra.mxu0 0
    %87 = vmatprep.subr.bf16.mxu0 0
    %88 = vmatpush1.bf16.msra.mxu0 0
    %89 = vmatprep.subr.bf16.mxu0 0
    %90 = vmatpush1.bf16.msra.mxu0 0
    %91 = vmatprep.subr.bf16.mxu0 0
    %92 = vmatpush1.bf16.msra.mxu0 0
    %93 = vmatprep.subr.bf16.mxu0 0
    %94 = vmatpush1.bf16.msra.mxu0 0
    %95 = vmatprep.subr.bf16.mxu0 0
    %96 = vmatpush1.bf16.msra.mxu0 0
    %97 = vmatprep.subr.bf16.mxu0 0
    %98 = vmatpush1.bf16.msra.mxu0 0
    %99 = vmatprep.subr.bf16.mxu0 0
    %100 = vmatpush1.bf16.msra.mxu0 0
    %101 = vmatprep.subr.bf16.mxu0 0
    %102 = vmatpush1.bf16.msra.mxu0 0
    %103 = vmatprep.subr.bf16.mxu0 0
    %104 = vmatpush1.bf16.msra.mxu0 0
    %105 = vmatprep.subr.bf16.mxu0 0
    %106 = vmatpush1.bf16.msra.mxu0 0
    %107 = vmatprep.mubr.bf16.mxu0 0
    %108 = vmatmul.mubr.bf16.gmra.mrb[0].mxu0 %v73
    %v109 = vpop.f32.mrb[0].mxu0
    %v110 = vadd.f32 %v40, %v109
    %v111 = vpop.f32.mrb[0].mxu0
    %v112 = vpop.f32.mrb[0].mxu0
    %v113 = vadd.f32 %v40, %v112
    %v114 = vpop.f32.mrb[0].mxu0
    %115 = vdwg.mxu0
    %v116 = vld [vmem:[%s3] sm:$0xff]
    %v117 = vld [vmem:[%s3 + $0x8] sm:$0xff]
    %v118 = vadd.f32 %v110, %v116
    %v119 = vadd.f32 %v113, %v117
    %vm120 = vcmask 261120
    %v121 = vsel %vm120, %v118, 0.0
    %122 = vadd.xlane.f32.xlu0 %v121
    %v123 = vpop.xlane.xlu0 %122
    %v124 = vsel %vm120, %v119, 0.0
    %125 = vadd.xlane.f32.xlu0 %v124
    %v126 = vpop.xlane.xlu0 %125
    %v127 = vrcp.pop 32.0
    %v128 = vmul.f32 %v123, %v127
    %v129 = vmul.f32 %v126, %v127
    %v130 = vsub.f32 %v118, %v128
    %v131 = vsub.f32 %v119, %v129
    %v132 = vmul.f32 %v130, %v130
    %v133 = vmul.f32 %v131, %v131
    %v134 = vsel %vm120, %v132, 0.0
    %135 = vadd.xlane.f32.xlu0 %v134
    %v136 = vpop.xlane.xlu0 %135
    %v137 = vsel %vm120, %v133, 0.0
    %138 = vadd.xlane.f32.xlu0 %v137
    %v139 = vpop.xlane.xlu0 %138
    %v140 = vmul.f32 %v136, %v127
    %v141 = vmul.f32 %v139, %v127
    %v142 = vadd.f32 %v140, 1e-05
    %v143 = vadd.f32 %v141, 1e-05
    %v144 = vrsqrt.pop %v142
    %v145 = vrsqrt.pop %v143
    %v146 = vmul.f32 %v130, %v144
    %v147 = vmul.f32 %v131, %v145
    %v148 = vld [vmem:[%s4] sm:$0x1]
    %v150 = vlaneseq
    %v151 = vshrl.u32 %v150, 7
    %v152 = vsub.s32 0, %v151
    %v153 = vrot.slane %v148, %v152
    %v155 = vmul.f32 %v146, %v153
    %v156 = vmul.f32 %v147, %v153
    %v157 = vld [vmem:[%s5] sm:$0x1]
    %v159 = vlaneseq
    %v160 = vshrl.u32 %v159, 7
    %v161 = vsub.s32 0, %v160
    %v162 = vrot.slane %v157, %v161
    %v164 = vadd.f32 %v155, %v162
    %v165 = vadd.f32 %v156, %v162
    %166 = vst.msk [vmem:[#allocation2] sm:$0xff] %vm120, %v164
    %167 = vst.msk [vmem:[#allocation2 + $0x8] sm:$0xff] %vm120, %v165
    // Predicated region
    $region26: #{_lambda_.23} parent=1 // pred_check
      _
    $region27: #{_lambda_.23} parent=1 // pred_check_branch
      %169 = sbr.rel (0) target = $region29
    $region28: #{_lambda_.23} parent=1 // pred_region
      %s171 = ssub.s32 256, 256
      %172 = vsyncadd [#allocation3], %s171
      %s173 = sshll.u32 [#allocation2], 4
      %s174 = int_to_ptr.vmem [resolvable:$true] %s173
      %179 = dma.vmem_to_hbm [thread:$0]  %s174, 256, %s6, [#allocation3], 128, 128, 8
    $region29: #{_lambda_.23} parent=1 // pred_fallthru
      _
    // Predicated region
    $region30: #{_lambda_.23} parent=1 // pred_check
      _
    $region31: #{_lambda_.23} parent=1 // pred_check_branch
      %181 = sbr.rel (0) target = $region33
    $region32: #{_lambda_.23} parent=1 // pred_region
      %182 = dma.done [#allocation3], 256
    $region33: #{_lambda_.23} parent=1 // pred_fallthru
      _
    %183 = vsyncpa [#allocation3], 1

</llo_original>
